<compile_context>
chip_gen: v7x
topology: tpu7x:2x2x1
jax: 0.10.0
libtpu: 0.0.40
codegen_flags: <defaults>
</compile_context>

<pallas_src>
import functools

import jax
import jax.numpy as jnp
from jax.experimental import pallas as pl
from jax.experimental.pallas import tpu as pltpu

EPS = 1e-5


def _round_up(x, m):
    return (x + m - 1) // m * m


# ----------------------------------------------------------------------------
# Fused  out = act( (x @ w) * scale + bias )   Pallas kernel
# ----------------------------------------------------------------------------
def _fused_matmul_scale_act_kernel(x_ref, w_ref, s_ref, b_ref, o_ref, *, activation):
    acc = jnp.dot(x_ref[...], w_ref[...], preferred_element_type=jnp.float32)
    y = acc * s_ref[...] + b_ref[...]            # (tm, N) * (1, N) + (1, N), f32
    if activation == "relu":
        y = jnp.maximum(y, 0.0)
    elif activation == "sigmoid":
        y = 1.0 / (1.0 + jnp.exp(-y))
    o_ref[...] = y.astype(o_ref.dtype)


def fused_matmul_scale_act(x, w, scale, bias, *, activation="relu",
                           out_dtype=jnp.bfloat16, tm_max=256):
    """x: [M, K], w: [K, N], scale/bias: [N] (f32) -> [M, N] (out_dtype)."""
    M, K = x.shape
    N = w.shape[1]

    if M <= tm_max:
        tm, Mp = M, M                      # single full-extent block along M
    else:
        tm = tm_max                        # multiple of 8 -> valid tiled block
        Mp = _round_up(M, tm)

    xp = x.astype(jnp.bfloat16)
    if Mp != M:
        xp = jnp.pad(xp, ((0, Mp - M), (0, 0)))
    wp = w.astype(jnp.bfloat16)
    sp = scale.astype(jnp.float32).reshape(1, N)
    bp = bias.astype(jnp.float32).reshape(1, N)

    kernel = functools.partial(_fused_matmul_scale_act_kernel, activation=activation)
    out = pl.pallas_call(
        kernel,
        out_shape=jax.ShapeDtypeStruct((Mp, N), out_dtype),
        grid_spec=pltpu.PrefetchScalarGridSpec(
            num_scalar_prefetch=0,
            grid=(Mp // tm,),
            in_specs=[
                pl.BlockSpec((tm, K), lambda i: (i, 0)),
                pl.BlockSpec((K, N), lambda i: (0, 0)),
                pl.BlockSpec((1, N), lambda i: (0, 0)),
                pl.BlockSpec((1, N), lambda i: (0, 0)),
            ],
            out_specs=pl.BlockSpec((tm, N), lambda i: (i, 0)),
        ),
        compiler_params=pltpu.CompilerParams(
            dimension_semantics=("parallel",),
        ),
    )(xp, wp, sp, bp)
    if Mp != M:
        out = out[:M]
    return out


# ----------------------------------------------------------------------------
# ConvTranspose2d(k=3, s=2, p=1, op=1) sub-pixel decomposition helpers
# (pure data movement / weight reshuffling, plain JAX glue)
# ----------------------------------------------------------------------------
def _deconv_patches(x):
    """x: [B,H,W,C] -> [B*H*W, 4*C]; slot order (sy,sx) = (0,0),(0,1),(1,0),(1,1)."""
    B, H, W, C = x.shape
    xp = jnp.pad(x, ((0, 0), (0, 1), (0, 1), (0, 0)))
    slots = [xp[:, sy:sy + H, sx:sx + W, :] for sy in (0, 1) for sx in (0, 1)]
    return jnp.concatenate(slots, axis=-1).reshape(B * H * W, 4 * C)


def _deconv_weight_matrix(w):
    """w: [Cin, Cout, 3, 3] (PyTorch ConvTranspose2d layout) -> [4*Cin, 4*Cout].

    Row blocks = input slots (sy,sx); column blocks = output parities (dy,dx):
      out[2j+dy, 2i+dx] = sum_slots x[j+sy, i+sx] @ block[(sy,sx),(dy,dx)]
    """
    Cin, Cout = w.shape[0], w.shape[1]
    zero = jnp.zeros((Cin, Cout), w.dtype)
    t = lambda ky, kx: w[:, :, ky, kx]
    rows = [
        [t(1, 1), t(1, 2), t(2, 1), t(2, 2)],   # slot (0,0): x[j,   i  ]
        [zero,    t(1, 0), zero,    t(2, 0)],   # slot (0,1): x[j,   i+1]
        [zero,    zero,    t(0, 1), t(0, 2)],   # slot (1,0): x[j+1, i  ]
        [zero,    zero,    zero,    t(0, 0)],   # slot (1,1): x[j+1, i+1]
    ]
    return jnp.concatenate([jnp.concatenate(r, axis=1) for r in rows], axis=0)


def _depth_to_space(y, B, H, W, Cout):
    """y: [B*H*W, 4*Cout] with col = (dy*2+dx)*Cout + co -> [B, 2H, 2W, Cout]."""
    y = y.reshape(B, H, W, 2, 2, Cout)
    y = jnp.transpose(y, (0, 1, 3, 2, 4, 5))      # B, H, dy, W, dx, Cout
    return y.reshape(B, 2 * H, 2 * W, Cout)


# ----------------------------------------------------------------------------
# Parameters (deterministic synthetic init — shapes match the PyTorch module)
# ----------------------------------------------------------------------------
DECONV_SPECS = [(128, 64, True), (64, 32, True), (32, 16, True), (16, 3, False)]


def init_params(key):
    params = {}
    key, k1, k2 = jax.random.split(key, 3)
    params["fc"] = dict(
        w=jax.random.normal(k1, (128 * 4 * 6, 128), jnp.float32) * 0.05,
        b=jax.random.normal(k2, (128 * 4 * 6,), jnp.float32) * 0.01,
    )
    for i, (cin, cout, has_bn) in enumerate(DECONV_SPECS):
        key, k1, k2, k3, k4, k5, k6 = jax.random.split(key, 7)
        p = dict(
            w=jax.random.normal(k1, (cin, cout, 3, 3), jnp.float32) * 0.05,
            b=jax.random.normal(k2, (cout,), jnp.float32) * 0.01,
        )
        if has_bn:
            p.update(
                gamma=jax.random.uniform(k3, (cout,), jnp.float32, 0.8, 1.2),
                beta=jax.random.normal(k4, (cout,), jnp.float32) * 0.1,
                mean=jax.random.normal(k5, (cout,), jnp.float32) * 0.1,
                var=jax.random.uniform(k6, (cout,), jnp.float32, 0.5, 1.5),
            )
        params[f"deconv{i}"] = p
    return params


# ----------------------------------------------------------------------------
# Forward pass
# ----------------------------------------------------------------------------
def vision_decoder_forward(params, x):
    """x: [B, 128] -> [B, 3, 64, 96] (NCHW, sigmoid outputs in (0, 1))."""
    B = x.shape[0]

    # fc: Linear(128, 128*4*6) + ReLU   (no BN -> scale = 1)
    p = params["fc"]
    y = fused_matmul_scale_act(
        x, p["w"].T, jnp.ones((p["w"].shape[0],), jnp.float32), p["b"],
        activation="relu", out_dtype=jnp.bfloat16)               # [B, 3072]

    # view(-1, 128, 4, 6) in NCHW order -> NHWC for the deconv stack
    h = jnp.transpose(y.reshape(B, 128, 4, 6), (0, 2, 3, 1))     # [B, 4, 6, 128]

    for i, (cin, cout, has_bn) in enumerate(DECONV_SPECS):
        p = params[f"deconv{i}"]
        _, H, W, _ = h.shape
        patches = _deconv_patches(h)                             # [B*H*W, 4*Cin]
        wmat = _deconv_weight_matrix(p["w"])                     # [4*Cin, 4*Cout]
        if has_bn:
            s = p["gamma"] / jnp.sqrt(p["var"] + EPS)
            b = (p["b"] - p["mean"]) * s + p["beta"]
        else:
            s = jnp.ones((cout,), jnp.float32)
            b = p["b"]
        s4 = jnp.tile(s, 4)                                      # per parity*Cout col
        b4 = jnp.tile(b, 4)
        last = i == len(DECONV_SPECS) - 1
        y = fused_matmul_scale_act(
            patches, wmat, s4, b4,
            activation="sigmoid" if last else "relu",
            out_dtype=jnp.float32 if last else jnp.bfloat16)     # [B*H*W, 4*Cout]
        h = _depth_to_space(y, B, H, W, cout)                    # [B, 2H, 2W, Cout]

    return jnp.transpose(h, (0, 3, 1, 2))                        # [B, 3, 64, 96]


if __name__ == "__main__":
    key = jax.random.PRNGKey(0)
    kp, kx = jax.random.split(key)
    params = init_params(kp)

    # Latent input [B, 128]; decoder upsamples 4x6 -> 64x96 (four stride-2 deconvs).
    x = jax.random.normal(kx, (2, 128), jnp.float32)

    fwd = jax.jit(functools.partial(vision_decoder_forward, params))
    out = fwd(x)
    jax.block_until_ready(out)

    assert out.shape == (2, 3, 64, 96), out.shape
    assert bool(jnp.all(jnp.isfinite(out)))
    assert bool(jnp.all((out >= 0.0) & (out <= 1.0)))  # final Sigmoid
    print("KERNEL_OK")
</pallas_src>

<mosaic_0001>
module attributes {stable_mosaic.version = 11 : i64} {
  func.func @_fused_matmul_scale_act_kernel(%arg0: i32, %arg1: memref<2x128xbf16, #tpu.memory_space<vmem>>, %arg2: memref<128x3072xbf16, #tpu.memory_space<vmem>>, %arg3: memref<1x3072xf32, #tpu.memory_space<vmem>>, %arg4: memref<1x3072xf32, #tpu.memory_space<vmem>>, %arg5: memref<2x3072xbf16, #tpu.memory_space<vmem>>) attributes {dimension_semantics = [#tpu.dimension_semantics<parallel>], iteration_bounds = array<i64: 1>, scalar_prefetch = 0 : i64, scratch_operands = 0 : i64, tpu.core_type = #tpu.core_type<tc>, window_params = [{transform_indices = @transform_0, window_bounds = array<i64: 2, 128>}, {pipeline_mode = #tpu.pipeline_mode<synchronous>, transform_indices = @transform_1, window_bounds = array<i64: 128, 3072>}, {pipeline_mode = #tpu.pipeline_mode<synchronous>, transform_indices = @transform_2, window_bounds = array<i64: 1, 3072>}, {pipeline_mode = #tpu.pipeline_mode<synchronous>, transform_indices = @transform_3, window_bounds = array<i64: 1, 3072>}, {transform_indices = @transform_4, window_bounds = array<i64: 2, 3072>}]} {
    %c0 = arith.constant 0 : index
    %c0_0 = arith.constant 0 : index
    %0 = vector.load %arg1[%c0, %c0_0] : memref<2x128xbf16, #tpu.memory_space<vmem>>, vector<2x128xbf16>
    %c0_1 = arith.constant 0 : index
    %c0_2 = arith.constant 0 : index
    %1 = vector.load %arg2[%c0_1, %c0_2] : memref<128x3072xbf16, #tpu.memory_space<vmem>>, vector<128x3072xbf16>
    %cst = arith.constant dense<0.000000e+00> : vector<2x3072xf32>
    %2 = tpu.matmul %0, %1, %cst {dimension_numbers = #tpu.dot_dimension_numbers<[1], [0], [0], [1], [0, 0, 1, 1], [], []>} : vector<2x128xbf16>, vector<128x3072xbf16>, vector<2x3072xf32> -> vector<2x3072xf32>
    %c0_3 = arith.constant 0 : index
    %c0_4 = arith.constant 0 : index
    %3 = vector.load %arg3[%c0_3, %c0_4] : memref<1x3072xf32, #tpu.memory_space<vmem>>, vector<1x3072xf32>
    %4 = vector.broadcast %3 : vector<1x3072xf32> to vector<2x3072xf32>
    %5 = arith.mulf %2, %4 : vector<2x3072xf32>
    %c0_5 = arith.constant 0 : index
    %c0_6 = arith.constant 0 : index
    %6 = vector.load %arg4[%c0_5, %c0_6] : memref<1x3072xf32, #tpu.memory_space<vmem>>, vector<1x3072xf32>
    %7 = vector.broadcast %6 : vector<1x3072xf32> to vector<2x3072xf32>
    %8 = arith.addf %5, %7 : vector<2x3072xf32>
    %cst_7 = arith.constant 0.000000e+00 : f32
    %9 = vector.broadcast %cst_7 : f32 to vector<2x3072xf32>
    %10 = arith.maximumf %8, %9 : vector<2x3072xf32>
    %11 = arith.truncf %10 : vector<2x3072xf32> to vector<2x3072xbf16>
    %c0_8 = arith.constant 0 : index
    %c0_9 = arith.constant 0 : index
    %12 = vector.load %arg5[%c0_8, %c0_9] : memref<2x3072xbf16, #tpu.memory_space<vmem>>, vector<2x3072xbf16>
    tpu.vector_store %arg5[%c0_8, %c0_9], %11 {strides = array<i32>} : memref<2x3072xbf16, #tpu.memory_space<vmem>>, vector<2x3072xbf16>,
    return
  }
  func.func @transform_0(%arg0: i32) -> (i32, i32) {
    %c0_i32 = arith.constant 0 : i32
    %c0_i32_0 = arith.constant 0 : i32
    return %arg0, %c0_i32 : i32, i32
  }
  func.func @transform_1(%arg0: i32) -> (i32, i32) {
    %c0_i32 = arith.constant 0 : i32
    %c0_i32_0 = arith.constant 0 : i32
    %c0_i32_1 = arith.constant 0 : i32
    return %c0_i32, %c0_i32_0 : i32, i32
  }
  func.func @transform_2(%arg0: i32) -> (i32, i32) {
    %c0_i32 = arith.constant 0 : i32
    %c0_i32_0 = arith.constant 0 : i32
    %c0_i32_1 = arith.constant 0 : i32
    return %c0_i32, %c0_i32_0 : i32, i32
  }
  func.func @transform_3(%arg0: i32) -> (i32, i32) {
    %c0_i32 = arith.constant 0 : i32
    %c0_i32_0 = arith.constant 0 : i32
    %c0_i32_1 = arith.constant 0 : i32
    return %c0_i32, %c0_i32_0 : i32, i32
  }
  func.func @transform_4(%arg0: i32) -> (i32, i32) {
    %c0_i32 = arith.constant 0 : i32
    %c0_i32_0 = arith.constant 0 : i32
    return %arg0, %c0_i32 : i32, i32
  }
}

module attributes {stable_mosaic.version = 11 : i64} {
  func.func @_fused_matmul_scale_act_kernel(%arg0: i32, %arg1: memref<48x512xbf16, #tpu.memory_space<vmem>>, %arg2: memref<512x256xbf16, #tpu.memory_space<vmem>>, %arg3: memref<1x256xf32, #tpu.memory_space<vmem>>, %arg4: memref<1x256xf32, #tpu.memory_space<vmem>>, %arg5: memref<48x256xbf16, #tpu.memory_space<vmem>>) attributes {dimension_semantics = [#tpu.dimension_semantics<parallel>], iteration_bounds = array<i64: 1>, scalar_prefetch = 0 : i64, scratch_operands = 0 : i64, tpu.core_type = #tpu.core_type<tc>, window_params = [{transform_indices = @transform_0, window_bounds = array<i64: 48, 512>}, {pipeline_mode = #tpu.pipeline_mode<synchronous>, transform_indices = @transform_1, window_bounds = array<i64: 512, 256>}, {pipeline_mode = #tpu.pipeline_mode<synchronous>, transform_indices = @transform_2, window_bounds = array<i64: 1, 256>}, {pipeline_mode = #tpu.pipeline_mode<synchronous>, transform_indices = @transform_3, window_bounds = array<i64: 1, 256>}, {transform_indices = @transform_4, window_bounds = array<i64: 48, 256>}]} {
    %c0 = arith.constant 0 : index
    %c0_0 = arith.constant 0 : index
    %0 = vector.load %arg1[%c0, %c0_0] : memref<48x512xbf16, #tpu.memory_space<vmem>>, vector<48x512xbf16>
    %c0_1 = arith.constant 0 : index
    %c0_2 = arith.constant 0 : index
    %1 = vector.load %arg2[%c0_1, %c0_2] : memref<512x256xbf16, #tpu.memory_space<vmem>>, vector<512x256xbf16>
    %cst = arith.constant dense<0.000000e+00> : vector<48x256xf32>
    %2 = tpu.matmul %0, %1, %cst {dimension_numbers = #tpu.dot_dimension_numbers<[1], [0], [0], [1], [0, 0, 1, 1], [], []>} : vector<48x512xbf16>, vector<512x256xbf16>, vector<48x256xf32> -> vector<48x256xf32>
    %c0_3 = arith.constant 0 : index
    %c0_4 = arith.constant 0 : index
    %3 = vector.load %arg3[%c0_3, %c0_4] : memref<1x256xf32, #tpu.memory_space<vmem>>, vector<1x256xf32>
    %4 = vector.broadcast %3 : vector<1x256xf32> to vector<48x256xf32>
    %5 = arith.mulf %2, %4 : vector<48x256xf32>
    %c0_5 = arith.constant 0 : index
    %c0_6 = arith.constant 0 : index
    %6 = vector.load %arg4[%c0_5, %c0_6] : memref<1x256xf32, #tpu.memory_space<vmem>>, vector<1x256xf32>
    %7 = vector.broadcast %6 : vector<1x256xf32> to vector<48x256xf32>
    %8 = arith.addf %5, %7 : vector<48x256xf32>
    %cst_7 = arith.constant 0.000000e+00 : f32
    %9 = vector.broadcast %cst_7 : f32 to vector<48x256xf32>
    %10 = arith.maximumf %8, %9 : vector<48x256xf32>
    %11 = arith.truncf %10 : vector<48x256xf32> to vector<48x256xbf16>
    %c0_8 = arith.constant 0 : index
    %c0_9 = arith.constant 0 : index
    %12 = vector.load %arg5[%c0_8, %c0_9] : memref<48x256xbf16, #tpu.memory_space<vmem>>, vector<48x256xbf16>
    tpu.vector_store %arg5[%c0_8, %c0_9], %11 {strides = array<i32>} : memref<48x256xbf16, #tpu.memory_space<vmem>>, vector<48x256xbf16>,
    return
  }
  func.func @transform_0(%arg0: i32) -> (i32, i32) {
    %c0_i32 = arith.constant 0 : i32
    %c0_i32_0 = arith.constant 0 : i32
    return %arg0, %c0_i32 : i32, i32
  }
  func.func @transform_1(%arg0: i32) -> (i32, i32) {
    %c0_i32 = arith.constant 0 : i32
    %c0_i32_0 = arith.constant 0 : i32
    %c0_i32_1 = arith.constant 0 : i32
    return %c0_i32, %c0_i32_0 : i32, i32
  }
  func.func @transform_2(%arg0: i32) -> (i32, i32) {
    %c0_i32 = arith.constant 0 : i32
    %c0_i32_0 = arith.constant 0 : i32
    %c0_i32_1 = arith.constant 0 : i32
    return %c0_i32, %c0_i32_0 : i32, i32
  }
  func.func @transform_3(%arg0: i32) -> (i32, i32) {
    %c0_i32 = arith.constant 0 : i32
    %c0_i32_0 = arith.constant 0 : i32
    %c0_i32_1 = arith.constant 0 : i32
    return %c0_i32, %c0_i32_0 : i32, i32
  }
  func.func @transform_4(%arg0: i32) -> (i32, i32) {
    %c0_i32 = arith.constant 0 : i32
    %c0_i32_0 = arith.constant 0 : i32
    return %arg0, %c0_i32 : i32, i32
  }
}

module attributes {stable_mosaic.version = 11 : i64} {
  func.func @_fused_matmul_scale_act_kernel(%arg0: i32, %arg1: memref<192x256xbf16, #tpu.memory_space<vmem>>, %arg2: memref<256x128xbf16, #tpu.memory_space<vmem>>, %arg3: memref<1x128xf32, #tpu.memory_space<vmem>>, %arg4: memref<1x128xf32, #tpu.memory_space<vmem>>, %arg5: memref<192x128xbf16, #tpu.memory_space<vmem>>) attributes {dimension_semantics = [#tpu.dimension_semantics<parallel>], iteration_bounds = array<i64: 1>, scalar_prefetch = 0 : i64, scratch_operands = 0 : i64, tpu.core_type = #tpu.core_type<tc>, window_params = [{transform_indices = @transform_0, window_bounds = array<i64: 192, 256>}, {pipeline_mode = #tpu.pipeline_mode<synchronous>, transform_indices = @transform_1, window_bounds = array<i64: 256, 128>}, {pipeline_mode = #tpu.pipeline_mode<synchronous>, transform_indices = @transform_2, window_bounds = array<i64: 1, 128>}, {pipeline_mode = #tpu.pipeline_mode<synchronous>, transform_indices = @transform_3, window_bounds = array<i64: 1, 128>}, {transform_indices = @transform_4, window_bounds = array<i64: 192, 128>}]} {
    %c0 = arith.constant 0 : index
    %c0_0 = arith.constant 0 : index
    %0 = vector.load %arg1[%c0, %c0_0] : memref<192x256xbf16, #tpu.memory_space<vmem>>, vector<192x256xbf16>
    %c0_1 = arith.constant 0 : index
    %c0_2 = arith.constant 0 : index
    %1 = vector.load %arg2[%c0_1, %c0_2] : memref<256x128xbf16, #tpu.memory_space<vmem>>, vector<256x128xbf16>
    %cst = arith.constant dense<0.000000e+00> : vector<192x128xf32>
    %2 = tpu.matmul %0, %1, %cst {dimension_numbers = #tpu.dot_dimension_numbers<[1], [0], [0], [1], [0, 0, 1, 1], [], []>} : vector<192x256xbf16>, vector<256x128xbf16>, vector<192x128xf32> -> vector<192x128xf32>
    %c0_3 = arith.constant 0 : index
    %c0_4 = arith.constant 0 : index
    %3 = vector.load %arg3[%c0_3, %c0_4] : memref<1x128xf32, #tpu.memory_space<vmem>>, vector<1x128xf32>
    %4 = vector.broadcast %3 : vector<1x128xf32> to vector<192x128xf32>
    %5 = arith.mulf %2, %4 : vector<192x128xf32>
    %c0_5 = arith.constant 0 : index
    %c0_6 = arith.constant 0 : index
    %6 = vector.load %arg4[%c0_5, %c0_6] : memref<1x128xf32, #tpu.memory_space<vmem>>, vector<1x128xf32>
    %7 = vector.broadcast %6 : vector<1x128xf32> to vector<192x128xf32>
    %8 = arith.addf %5, %7 : vector<192x128xf32>
    %cst_7 = arith.constant 0.000000e+00 : f32
    %9 = vector.broadcast %cst_7 : f32 to vector<192x128xf32>
    %10 = arith.maximumf %8, %9 : vector<192x128xf32>
    %11 = arith.truncf %10 : vector<192x128xf32> to vector<192x128xbf16>
    %c0_8 = arith.constant 0 : index
    %c0_9 = arith.constant 0 : index
    %12 = vector.load %arg5[%c0_8, %c0_9] : memref<192x128xbf16, #tpu.memory_space<vmem>>, vector<192x128xbf16>
    tpu.vector_store %arg5[%c0_8, %c0_9], %11 {strides = array<i32>} : memref<192x128xbf16, #tpu.memory_space<vmem>>, vector<192x128xbf16>,
    return
  }
  func.func @transform_0(%arg0: i32) -> (i32, i32) {
    %c0_i32 = arith.constant 0 : i32
    %c0_i32_0 = arith.constant 0 : i32
    return %arg0, %c0_i32 : i32, i32
  }
  func.func @transform_1(%arg0: i32) -> (i32, i32) {
    %c0_i32 = arith.constant 0 : i32
    %c0_i32_0 = arith.constant 0 : i32
    %c0_i32_1 = arith.constant 0 : i32
    return %c0_i32, %c0_i32_0 : i32, i32
  }
  func.func @transform_2(%arg0: i32) -> (i32, i32) {
    %c0_i32 = arith.constant 0 : i32
    %c0_i32_0 = arith.constant 0 : i32
    %c0_i32_1 = arith.constant 0 : i32
    return %c0_i32, %c0_i32_0 : i32, i32
  }
  func.func @transform_3(%arg0: i32) -> (i32, i32) {
    %c0_i32 = arith.constant 0 : i32
    %c0_i32_0 = arith.constant 0 : i32
    %c0_i32_1 = arith.constant 0 : i32
    return %c0_i32, %c0_i32_0 : i32, i32
  }
  func.func @transform_4(%arg0: i32) -> (i32, i32) {
    %c0_i32 = arith.constant 0 : i32
    %c0_i32_0 = arith.constant 0 : i32
    return %arg0, %c0_i32 : i32, i32
  }
}

module attributes {stable_mosaic.version = 11 : i64} {
  func.func @_fused_matmul_scale_act_kernel(%arg0: i32, %arg1: memref<256x128xbf16, #tpu.memory_space<vmem>>, %arg2: memref<128x64xbf16, #tpu.memory_space<vmem>>, %arg3: memref<1x64xf32, #tpu.memory_space<vmem>>, %arg4: memref<1x64xf32, #tpu.memory_space<vmem>>, %arg5: memref<256x64xbf16, #tpu.memory_space<vmem>>) attributes {dimension_semantics = [#tpu.dimension_semantics<parallel>], iteration_bounds = array<i64: 3>, scalar_prefetch = 0 : i64, scratch_operands = 0 : i64, tpu.core_type = #tpu.core_type<tc>, window_params = [{transform_indices = @transform_0, window_bounds = array<i64: 256, 128>}, {pipeline_mode = #tpu.pipeline_mode<synchronous>, transform_indices = @transform_1, window_bounds = array<i64: 128, 64>}, {pipeline_mode = #tpu.pipeline_mode<synchronous>, transform_indices = @transform_2, window_bounds = array<i64: 1, 64>}, {pipeline_mode = #tpu.pipeline_mode<synchronous>, transform_indices = @transform_3, window_bounds = array<i64: 1, 64>}, {transform_indices = @transform_4, window_bounds = array<i64: 256, 64>}]} {
    %c0 = arith.constant 0 : index
    %c0_0 = arith.constant 0 : index
    %0 = vector.load %arg1[%c0, %c0_0] : memref<256x128xbf16, #tpu.memory_space<vmem>>, vector<256x128xbf16>
    %c0_1 = arith.constant 0 : index
    %c0_2 = arith.constant 0 : index
    %1 = vector.load %arg2[%c0_1, %c0_2] : memref<128x64xbf16, #tpu.memory_space<vmem>>, vector<128x64xbf16>
    %cst = arith.constant dense<0.000000e+00> : vector<256x64xf32>
    %2 = tpu.matmul %0, %1, %cst {dimension_numbers = #tpu.dot_dimension_numbers<[1], [0], [0], [1], [0, 0, 1, 1], [], []>} : vector<256x128xbf16>, vector<128x64xbf16>, vector<256x64xf32> -> vector<256x64xf32>
    %c0_3 = arith.constant 0 : index
    %c0_4 = arith.constant 0 : index
    %3 = vector.load %arg3[%c0_3, %c0_4] : memref<1x64xf32, #tpu.memory_space<vmem>>, vector<1x64xf32>
    %4 = vector.broadcast %3 : vector<1x64xf32> to vector<256x64xf32>
    %5 = arith.mulf %2, %4 : vector<256x64xf32>
    %c0_5 = arith.constant 0 : index
    %c0_6 = arith.constant 0 : index
    %6 = vector.load %arg4[%c0_5, %c0_6] : memref<1x64xf32, #tpu.memory_space<vmem>>, vector<1x64xf32>
    %7 = vector.broadcast %6 : vector<1x64xf32> to vector<256x64xf32>
    %8 = arith.addf %5, %7 : vector<256x64xf32>
    %cst_7 = arith.constant 0.000000e+00 : f32
    %9 = vector.broadcast %cst_7 : f32 to vector<256x64xf32>
    %10 = arith.maximumf %8, %9 : vector<256x64xf32>
    %11 = arith.truncf %10 : vector<256x64xf32> to vector<256x64xbf16>
    %c0_8 = arith.constant 0 : index
    %c0_9 = arith.constant 0 : index
    %12 = vector.load %arg5[%c0_8, %c0_9] : memref<256x64xbf16, #tpu.memory_space<vmem>>, vector<256x64xbf16>
    tpu.vector_store %arg5[%c0_8, %c0_9], %11 {strides = array<i32>} : memref<256x64xbf16, #tpu.memory_space<vmem>>, vector<256x64xbf16>,
    return
  }
  func.func @transform_0(%arg0: i32) -> (i32, i32) {
    %c0_i32 = arith.constant 0 : i32
    %c0_i32_0 = arith.constant 0 : i32
    return %arg0, %c0_i32 : i32, i32
  }
  func.func @transform_1(%arg0: i32) -> (i32, i32) {
    %c0_i32 = arith.constant 0 : i32
    %c0_i32_0 = arith.constant 0 : i32
    %c0_i32_1 = arith.constant 0 : i32
    return %c0_i32, %c0_i32_0 : i32, i32
  }
  func.func @transform_2(%arg0: i32) -> (i32, i32) {
    %c0_i32 = arith.constant 0 : i32
    %c0_i32_0 = arith.constant 0 : i32
    %c0_i32_1 = arith.constant 0 : i32
    return %c0_i32, %c0_i32_0 : i32, i32
  }
  func.func @transform_3(%arg0: i32) -> (i32, i32) {
    %c0_i32 = arith.constant 0 : i32
    %c0_i32_0 = arith.constant 0 : i32
    %c0_i32_1 = arith.constant 0 : i32
    return %c0_i32, %c0_i32_0 : i32, i32
  }
  func.func @transform_4(%arg0: i32) -> (i32, i32) {
    %c0_i32 = arith.constant 0 : i32
    %c0_i32_0 = arith.constant 0 : i32
    return %arg0, %c0_i32 : i32, i32
  }
}

module attributes {stable_mosaic.version = 11 : i64} {
  func.func @_fused_matmul_scale_act_kernel(%arg0: i32, %arg1: memref<256x64xbf16, #tpu.memory_space<vmem>>, %arg2: memref<64x12xbf16, #tpu.memory_space<vmem>>, %arg3: memref<1x12xf32, #tpu.memory_space<vmem>>, %arg4: memref<1x12xf32, #tpu.memory_space<vmem>>, %arg5: memref<256x12xf32, #tpu.memory_space<vmem>>) attributes {dimension_semantics = [#tpu.dimension_semantics<parallel>], iteration_bounds = array<i64: 12>, scalar_prefetch = 0 : i64, scratch_operands = 0 : i64, tpu.core_type = #tpu.core_type<tc>, window_params = [{transform_indices = @transform_0, window_bounds = array<i64: 256, 64>}, {pipeline_mode = #tpu.pipeline_mode<synchronous>, transform_indices = @transform_1, window_bounds = array<i64: 64, 12>}, {pipeline_mode = #tpu.pipeline_mode<synchronous>, transform_indices = @transform_2, window_bounds = array<i64: 1, 12>}, {pipeline_mode = #tpu.pipeline_mode<synchronous>, transform_indices = @transform_3, window_bounds = array<i64: 1, 12>}, {transform_indices = @transform_4, window_bounds = array<i64: 256, 12>}]} {
    %c0 = arith.constant 0 : index
    %c0_0 = arith.constant 0 : index
    %0 = vector.load %arg1[%c0, %c0_0] : memref<256x64xbf16, #tpu.memory_space<vmem>>, vector<256x64xbf16>
    %c0_1 = arith.constant 0 : index
    %c0_2 = arith.constant 0 : index
    %1 = vector.load %arg2[%c0_1, %c0_2] : memref<64x12xbf16, #tpu.memory_space<vmem>>, vector<64x12xbf16>
    %cst = arith.constant dense<0.000000e+00> : vector<256x12xf32>
    %2 = tpu.matmul %0, %1, %cst {dimension_numbers = #tpu.dot_dimension_numbers<[1], [0], [0], [1], [0, 0, 1, 1], [], []>} : vector<256x64xbf16>, vector<64x12xbf16>, vector<256x12xf32> -> vector<256x12xf32>
    %c0_3 = arith.constant 0 : index
    %c0_4 = arith.constant 0 : index
    %3 = vector.load %arg3[%c0_3, %c0_4] : memref<1x12xf32, #tpu.memory_space<vmem>>, vector<1x12xf32>
    %4 = vector.broadcast %3 : vector<1x12xf32> to vector<256x12xf32>
    %5 = arith.mulf %2, %4 : vector<256x12xf32>
    %c0_5 = arith.constant 0 : index
    %c0_6 = arith.constant 0 : index
    %6 = vector.load %arg4[%c0_5, %c0_6] : memref<1x12xf32, #tpu.memory_space<vmem>>, vector<1x12xf32>
    %7 = vector.broadcast %6 : vector<1x12xf32> to vector<256x12xf32>
    %8 = arith.addf %5, %7 : vector<256x12xf32>
    %cst_7 = arith.constant 0.000000e+00 : f32
    %9 = vector.broadcast %cst_7 : f32 to vector<256x12xf32>
    %10 = arith.subf %9, %8 : vector<256x12xf32>
    %11 = math.exp %10 : vector<256x12xf32>
    %cst_8 = arith.constant 1.000000e+00 : f32
    %12 = vector.broadcast %cst_8 : f32 to vector<256x12xf32>
    %13 = arith.addf %12, %11 : vector<256x12xf32>
    %cst_9 = arith.constant 1.000000e+00 : f32
    %14 = vector.broadcast %cst_9 : f32 to vector<256x12xf32>
    %15 = arith.divf %14, %13 : vector<256x12xf32>
    %c0_10 = arith.constant 0 : index
    %c0_11 = arith.constant 0 : index
    %16 = vector.load %arg5[%c0_10, %c0_11] : memref<256x12xf32, #tpu.memory_space<vmem>>, vector<256x12xf32>
    tpu.vector_store %arg5[%c0_10, %c0_11], %15 {strides = array<i32>} : memref<256x12xf32, #tpu.memory_space<vmem>>, vector<256x12xf32>,
    return
  }
  func.func @transform_0(%arg0: i32) -> (i32, i32) {
    %c0_i32 = arith.constant 0 : i32
    %c0_i32_0 = arith.constant 0 : i32
    return %arg0, %c0_i32 : i32, i32
  }
  func.func @transform_1(%arg0: i32) -> (i32, i32) {
    %c0_i32 = arith.constant 0 : i32
    %c0_i32_0 = arith.constant 0 : i32
    %c0_i32_1 = arith.constant 0 : i32
    return %c0_i32, %c0_i32_0 : i32, i32
  }
  func.func @transform_2(%arg0: i32) -> (i32, i32) {
    %c0_i32 = arith.constant 0 : i32
    %c0_i32_0 = arith.constant 0 : i32
    %c0_i32_1 = arith.constant 0 : i32
    return %c0_i32, %c0_i32_0 : i32, i32
  }
  func.func @transform_3(%arg0: i32) -> (i32, i32) {
    %c0_i32 = arith.constant 0 : i32
    %c0_i32_0 = arith.constant 0 : i32
    %c0_i32_1 = arith.constant 0 : i32
    return %c0_i32, %c0_i32_0 : i32, i32
  }
  func.func @transform_4(%arg0: i32) -> (i32, i32) {
    %c0_i32 = arith.constant 0 : i32
    %c0_i32_0 = arith.constant 0 : i32
    return %arg0, %c0_i32 : i32, i32
  }
}

</mosaic_0001>

<llo_original>
// kernel: tile.38
$region0: #{tile.38}
  #allocation2 [shape = 's32[1]{0}', space=sflag, size = 0x4, scoped, tag = 'scoped memory for tile.38']
  %s0 = inlined_call_operand.hbm [shape: f32[32], index: 0, kind: input, shape index: {}]
  %s1 = inlined_call_operand.vmem [shape: f32[4,32], index: 1, kind: output, shape index: {}]
  $region1: #{tile.38} parent=0
    #allocation0 [shape = 'u8[512]{0}', space=vmem, size = 0x400, scoped, tag = 'operand span for operand 0']
    #allocation1 [shape = 's32[1]{0}', space=sflag, size = 0x4, scoped, tag = 'scoped memory for tile.38']
    %2 = vsyncpa [#allocation1], 0
    // Predicated region
    $region2: #{tile.38} parent=1 // pred_check
      _
    $region3: #{tile.38} parent=1 // pred_check_branch
      %4 = sbr.rel (0) target = $region5
    $region4: #{tile.38} parent=1 // pred_region
      %s6 = ssub.s32 16, 16
      %7 = vsyncadd [#allocation1], %s6
      %s9 = sshll.u32 [#allocation0], 4
      %s10 = int_to_ptr.vmem [resolvable:$true] %s9
      %12 = dma.hbm_to_vmem [thread:$0]  %s0, 16, %s10, [#allocation1]
    $region5: #{tile.38} parent=1 // pred_fallthru
      _
    // Predicated region
    $region6: #{tile.38} parent=1 // pred_check
      _
    $region7: #{tile.38} parent=1 // pred_check_branch
      %14 = sbr.rel (0) target = $region9
    $region8: #{tile.38} parent=1 // pred_region
      %15 = dma.done [#allocation1], 16
    $region9: #{tile.38} parent=1 // pred_fallthru
      _
    %v16 = vld [vmem:[#allocation0] ss:$0 sm:$0xff]
    %17 = vst [vmem:[%s1] sm:$0xf] %v16
    %18 = vsyncpa [#allocation1], 1

// kernel: tile.30
$region0: #{tile.30}
  #allocation2 [shape = 's32[1]{0}', space=sflag, size = 0x4, scoped, tag = 'scoped memory for tile.30']
  %s0 = inlined_call_operand.hbm [shape: f32[64], index: 0, kind: input, shape index: {}]
  %s1 = inlined_call_operand.vmem [shape: f32[4,64], index: 1, kind: output, shape index: {}]
  $region1: #{tile.30} parent=0
    #allocation0 [shape = 'u8[512]{0}', space=vmem, size = 0x400, scoped, tag = 'operand span for operand 0']
    #allocation1 [shape = 's32[1]{0}', space=sflag, size = 0x4, scoped, tag = 'scoped memory for tile.30']
    %2 = vsyncpa [#allocation1], 0
    // Predicated region
    $region2: #{tile.30} parent=1 // pred_check
      _
    $region3: #{tile.30} parent=1 // pred_check_branch
      %4 = sbr.rel (0) target = $region5
    $region4: #{tile.30} parent=1 // pred_region
      %s6 = ssub.s32 16, 16
      %7 = vsyncadd [#allocation1], %s6
      %s9 = sshll.u32 [#allocation0], 4
      %s10 = int_to_ptr.vmem [resolvable:$true] %s9
      %12 = dma.hbm_to_vmem [thread:$0]  %s0, 16, %s10, [#allocation1]
    $region5: #{tile.30} parent=1 // pred_fallthru
      _
    // Predicated region
    $region6: #{tile.30} parent=1 // pred_check
      _
    $region7: #{tile.30} parent=1 // pred_check_branch
      %14 = sbr.rel (0) target = $region9
    $region8: #{tile.30} parent=1 // pred_region
      %15 = dma.done [#allocation1], 16
    $region9: #{tile.30} parent=1 // pred_fallthru
      _
    %v16 = vld [vmem:[#allocation0] ss:$0 sm:$0xff]
    %17 = vst [vmem:[%s1] sm:$0xf] %v16
    %18 = vsyncpa [#allocation1], 1

// kernel: tile.34
$region0: #{tile.34}
  %s0 = inlined_call_operand.vmem [shape: f32[4,64], index: 0, kind: input, shape index: {}]
  %s1 = inlined_call_operand.vmem [shape: f32[1,256], index: 1, kind: output, shape index: {}]
  $region1: #{tile.34} parent=0
    #allocation0 [shape = 'u8[8192]{0}', space=vmem, size = 0x2000, scoped, tag = 'scoped mem for output reshape']
    #allocation1 [shape = 'u8[4096]{0}', space=vmem, size = 0x1000, scoped, tag = 'scoped mem for input reshape']
    %s3 = sshllo.u32 0, 4
    %v4 = vld [vmem:[%s0] sm:%s3]
    %5 = vst [vmem:[#allocation1] sm:%s3] %v4
    %s6 = smov 3
    %v7 = vld [vmem:[#allocation1] ss:$2 sm:%s6]
    %vm8 = vcmask 523264
    %9 = vst.msk [vmem:[#allocation0] ss:$8 sm:$0x3] %vm8, %v7
    %s10 = scalar_lea.vmem [#allocation1], 1
    %s11 = smov 3
    %v12 = vld [vmem:[%s10] ss:$2 sm:%s11]
    %13 = vrot.lane.b32.xlu0 %v12, 64
    %v14 = vpop.permute.xlu0 %13
    %vm15 = vcmask 1048064
    %16 = vst.msk [vmem:[#allocation0] ss:$8 sm:$0x3] %vm15, %v14
    %s18 = sshllo.u32 0, 1
    %v20 = vld [vmem:[#allocation0] sm:%s18]
    %s21 = sshllo.u32 0, 1
    %22 = vst [vmem:[%s1] sm:%s21] %v20
    %s23 = scalar_lea.vmem [#allocation0], 8
    %v24 = vld [vmem:[%s23] sm:%s18]
    %s25 = sshllo.u32 0, 1
    %s26 = scalar_lea.vmem %s1, 1
    %27 = vst [vmem:[%s26] sm:%s25] %v24

// kernel: tile.42
$region0: #{tile.42}
  %s0 = inlined_call_operand.vmem [shape: f32[4,32], index: 0, kind: input, shape index: {}]
  %s1 = inlined_call_operand.vmem [shape: f32[1,128], index: 1, kind: output, shape index: {}]
  $region1: #{tile.42} parent=0
    #allocation0 [shape = 'u8[4096]{0}', space=vmem, size = 0x1000, scoped, tag = 'scoped mem for output reshape']
    #allocation1 [shape = 'u8[4096]{0}', space=vmem, size = 0x1000, scoped, tag = 'scoped mem for input reshape']
    %s3 = sshllo.u32 0, 4
    %v4 = vld [vmem:[%s0] sm:%s3]
    %5 = vst [vmem:[#allocation1] sm:%s3] %v4
    %v6 = vld [vmem:[#allocation1] sm:$0x1]
    %vm7 = vcmask 261120
    %8 = vst.msk [vmem:[#allocation0] sm:$0x1] %vm7, %v6
    %s9 = scalar_lea.vmem [#allocation1], 3
    %v10 = vld [vmem:[%s9] sm:$0x1]
    %11 = vrot.lane.b32.xlu0 %v10, 96
    %v12 = vpop.permute.xlu0 %11
    %vm13 = vcmask 1048320
    %14 = vst.msk [vmem:[#allocation0] sm:$0x1] %vm13, %v12
    %s15 = scalar_lea.vmem [#allocation1], 2
    %v16 = vld [vmem:[%s15] sm:$0x1]
    %17 = vrot.lane.b32.xlu0 %v16, 64
    %v18 = vpop.permute.xlu0 %17
    %vm19 = vcmask 785920
    %20 = vst.msk [vmem:[#allocation0] sm:$0x1] %vm19, %v18
    %s21 = scalar_lea.vmem [#allocation1], 1
    %v22 = vld [vmem:[%s21] sm:$0x1]
    %23 = vrot.lane.b32.xlu0 %v22, 32
    %v24 = vpop.permute.xlu0 %23
    %vm25 = vcmask 523520
    %26 = vst.msk [vmem:[#allocation0] sm:$0x1] %vm25, %v24
    %s28 = sshllo.u32 0, 1
    %v30 = vld [vmem:[#allocation0] sm:%s28]
    %s31 = sshllo.u32 0, 1
    %32 = vst [vmem:[%s1] sm:%s31] %v30

// kernel: tile.46
$region0: #{tile.46}
  #allocation2 [shape = 's32[1]{0}', space=sflag, size = 0x4, scoped, tag = 'scoped memory for tile.46']
  %s0 = inlined_call_operand.hbm [shape: f32[16], index: 0, kind: input, shape index: {}]
  %s1 = inlined_call_operand.vmem [shape: f32[4,16], index: 1, kind: output, shape index: {}]
  $region1: #{tile.46} parent=0
    #allocation0 [shape = 'u8[512]{0}', space=vmem, size = 0x400, scoped, tag = 'operand span for operand 0']
    #allocation1 [shape = 's32[1]{0}', space=sflag, size = 0x4, scoped, tag = 'scoped memory for tile.46']
    %2 = vsyncpa [#allocation1], 0
    // Predicated region
    $region2: #{tile.46} parent=1 // pred_check
      _
    $region3: #{tile.46} parent=1 // pred_check_branch
      %4 = sbr.rel (0) target = $region5
    $region4: #{tile.46} parent=1 // pred_region
      %s6 = ssub.s32 16, 16
      %7 = vsyncadd [#allocation1], %s6
      %s9 = sshll.u32 [#allocation0], 4
      %s10 = int_to_ptr.vmem [resolvable:$true] %s9
      %12 = dma.hbm_to_vmem [thread:$0]  %s0, 16, %s10, [#allocation1]
    $region5: #{tile.46} parent=1 // pred_fallthru
      _
    // Predicated region
    $region6: #{tile.46} parent=1 // pred_check
      _
    $region7: #{tile.46} parent=1 // pred_check_branch
      %14 = sbr.rel (0) target = $region9
    $region8: #{tile.46} parent=1 // pred_region
      %15 = dma.done [#allocation1], 16
    $region9: #{tile.46} parent=1 // pred_fallthru
      _
    %v16 = vld [vmem:[#allocation0] ss:$0 sm:$0xff]
    %17 = vst [vmem:[%s1] sm:$0xf] %v16
    %18 = vsyncpa [#allocation1], 1

// kernel: tile.54
$region0: #{tile.54}
  #allocation2 [shape = 's32[1]{0}', space=sflag, size = 0x4, scoped, tag = 'scoped memory for tile.54']
  %s0 = inlined_call_operand.hbm [shape: f32[3], index: 0, kind: input, shape index: {}]
  %s1 = inlined_call_operand.vmem [shape: f32[4,3], index: 1, kind: output, shape index: {}]
  $region1: #{tile.54} parent=0
    #allocation0 [shape = 'u8[512]{0}', space=vmem, size = 0x400, scoped, tag = 'operand span for operand 0']
    #allocation1 [shape = 's32[1]{0}', space=sflag, size = 0x4, scoped, tag = 'scoped memory for tile.54']
    %2 = vsyncpa [#allocation1], 0
    // Predicated region
    $region2: #{tile.54} parent=1 // pred_check
      _
    $region3: #{tile.54} parent=1 // pred_check_branch
      %4 = sbr.rel (0) target = $region5
    $region4: #{tile.54} parent=1 // pred_region
      %s6 = ssub.s32 16, 16
      %7 = vsyncadd [#allocation1], %s6
      %s9 = sshll.u32 [#allocation0], 4
      %s10 = int_to_ptr.vmem [resolvable:$true] %s9
      %12 = dma.hbm_to_vmem [thread:$0]  %s0, 16, %s10, [#allocation1]
    $region5: #{tile.54} parent=1 // pred_fallthru
      _
    // Predicated region
    $region6: #{tile.54} parent=1 // pred_check
      _
    $region7: #{tile.54} parent=1 // pred_check_branch
      %14 = sbr.rel (0) target = $region9
    $region8: #{tile.54} parent=1 // pred_region
      %15 = dma.done [#allocation1], 16
    $region9: #{tile.54} parent=1 // pred_fallthru
      _
    %v16 = vld [vmem:[#allocation0] ss:$0 sm:$0xff]
    %17 = vst [vmem:[%s1] sm:$0xf] %v16
    %18 = vsyncpa [#allocation1], 1

// kernel: tile.50
$region0: #{tile.50}
  %s0 = inlined_call_operand.vmem [shape: f32[4,16], index: 0, kind: input, shape index: {}]
  %s1 = inlined_call_operand.vmem [shape: f32[1,64], index: 1, kind: output, shape index: {}]
  $region1: #{tile.50} parent=0
    #allocation0 [shape = 'u8[4096]{0}', space=vmem, size = 0x1000, scoped, tag = 'scoped mem for output reshape']
    #allocation1 [shape = 'u8[4096]{0}', space=vmem, size = 0x1000, scoped, tag = 'scoped mem for input reshape']
    %s3 = sshllo.u32 0, 4
    %v4 = vld [vmem:[%s0] sm:%s3]
    %5 = vst [vmem:[#allocation1] sm:%s3] %v4
    %v6 = vld [vmem:[#allocation1] sm:$0x1]
    %vm7 = vcmask 130048
    %8 = vst.msk [vmem:[#allocation0] sm:$0x1] %vm7, %v6
    %s9 = scalar_lea.vmem [#allocation1], 3
    %v10 = vld [vmem:[%s9] sm:$0x1]
    %11 = vrot.lane.b32.xlu0 %v10, 48
    %v12 = vpop.permute.xlu0 %11
    %vm13 = vcmask 523648
    %14 = vst.msk [vmem:[#allocation0] sm:$0x1] %vm13, %v12
    %s15 = scalar_lea.vmem [#allocation1], 2
    %v16 = vld [vmem:[%s15] sm:$0x1]
    %17 = vrot.lane.b32.xlu0 %v16, 32
    %v18 = vpop.permute.xlu0 %17
    %vm19 = vcmask 392448
    %20 = vst.msk [vmem:[#allocation0] sm:$0x1] %vm19, %v18
    %s21 = scalar_lea.vmem [#allocation1], 1
    %v22 = vld [vmem:[%s21] sm:$0x1]
    %23 = vrot.lane.b32.xlu0 %v22, 16
    %v24 = vpop.permute.xlu0 %23
    %vm25 = vcmask 261248
    %26 = vst.msk [vmem:[#allocation0] sm:$0x1] %vm25, %v24
    %s28 = sshllo.u32 0, 1
    %v30 = vld [vmem:[#allocation0] sm:%s28]
    %s31 = sshllo.u32 0, 1
    %32 = vst [vmem:[%s1] sm:%s31] %v30

// kernel: tile.55
$region0: #{tile.55}
  %s0 = inlined_call_operand.vmem [shape: f32[4,3], index: 0, kind: input, shape index: {}]
  %s1 = inlined_call_operand.vmem [shape: f32[1,12], index: 1, kind: output, shape index: {}]
  $region1: #{tile.55} parent=0
    #allocation0 [shape = 'u8[4096]{0}', space=vmem, size = 0x1000, scoped, tag = 'scoped mem for output reshape']
    #allocation1 [shape = 'u8[4096]{0}', space=vmem, size = 0x1000, scoped, tag = 'scoped mem for input reshape']
    %s3 = sshllo.u32 0, 4
    %v4 = vld [vmem:[%s0] sm:%s3]
    %5 = vst [vmem:[#allocation1] sm:%s3] %v4
    %v6 = vld [vmem:[#allocation1] sm:$0x1]
    %vm7 = vcmask 23552
    %8 = vst.msk [vmem:[#allocation0] sm:$0x1] %vm7, %v6
    %s9 = scalar_lea.vmem [#allocation1], 3
    %v10 = vld [vmem:[%s9] sm:$0x1]
    %11 = vrot.lane.b32.xlu0 %v10, 9
    %v12 = vpop.permute.xlu0 %11
    %vm13 = vcmask 97352
    %14 = vst.msk [vmem:[#allocation0] sm:$0x1] %vm13, %v12
    %s15 = scalar_lea.vmem [#allocation1], 2
    %v16 = vld [vmem:[%s15] sm:$0x1]
    %17 = vrot.lane.b32.xlu0 %v16, 6
    %v18 = vpop.permute.xlu0 %17
    %vm19 = vcmask 72752
    %20 = vst.msk [vmem:[#allocation0] sm:$0x1] %vm19, %v18
    %s21 = scalar_lea.vmem [#allocation1], 1
    %v22 = vld [vmem:[%s21] sm:$0x1]
    %23 = vrot.lane.b32.xlu0 %v22, 3
    %v24 = vpop.permute.xlu0 %23
    %vm25 = vcmask 48152
    %26 = vst.msk [vmem:[#allocation0] sm:$0x1] %vm25, %v24
    %s28 = sshllo.u32 0, 1
    %v30 = vld [vmem:[#allocation0] sm:%s28]
    %s31 = sshllo.u32 0, 1
    %32 = vst [vmem:[%s1] sm:%s31] %v30

// kernel: vision_decoder_forward.5
$region0: #{vision_decoder_forward.5}
  #allocation0 [shape = 'u32[]', space=smem, size = 0x4, offset = 0x4, fixed_abs, tag = 'smem constant byte address 0x4 - core index']
  #allocation1 [shape = 'u32[144,128]{1,0:T(1,128)}', space=vmem, size = 0x12000, scoped, tag = 'internal scratch']
  %s0 = inlined_call_operand.vmem [shape: bf16[2,128], index: 0, kind: input, shape index: {}]
  %s1 = inlined_call_operand.vmem [shape: bf16[128,3072], index: 1, kind: input, shape index: {}]
  %s2 = inlined_call_operand.vmem [shape: f32[1,3072], index: 2, kind: input, shape index: {}]
  %s3 = inlined_call_operand.hbm [shape: f32[1,3072], index: 3, kind: input, shape index: {}]
  %s4 = inlined_call_operand.vmem [shape: bf16[2,3072], index: 4, kind: output, shape index: {}]
  %s5 = sld [smem:[#allocation0]]
  $region30: #{vision_decoder_forward.5} parent=0
    _
  %s7 = ssub.s32 1, %s5
  %s8 = scalar_select 0, %s7, %s5
  $region1: #{vision_decoder_forward.5} parent=0
    #allocation2 [shape = 'u8[12288]{0}', space=vmem, size = 0x3000, scoped, tag = 'input window, operand 3, single buffered']
    #allocation3 [shape = 's32[1]{0}', space=sflag, size = 0x4, scoped, tag = 'scoped memory for vision_decoder_forward.5']
    %9 = vsyncpa [#allocation3], 0
    // Predicated region
    $region2: #{vision_decoder_forward.5} parent=1 // pred_check
      _
    $region3: #{vision_decoder_forward.5} parent=1 // pred_check_branch
      %11 = sbr.rel (0) target = $region5
    $region4: #{vision_decoder_forward.5} parent=1 // pred_region
      _
    $region5: #{vision_decoder_forward.5} parent=1 // pred_fallthru
      _
    // Predicated region
    $region6: #{vision_decoder_forward.5} parent=1 // pred_check
      _
    $region7: #{vision_decoder_forward.5} parent=1 // pred_check_branch
      %13 = sbr.rel (0) target = $region9
    $region8: #{vision_decoder_forward.5} parent=1 // pred_region
      _
    $region9: #{vision_decoder_forward.5} parent=1 // pred_fallthru
      _
    // Predicated region
    $region10: #{vision_decoder_forward.5} parent=1 // pred_check
      _
    $region11: #{vision_decoder_forward.5} parent=1 // pred_check_branch
      %15 = sbr.rel (0) target = $region13
    $region12: #{vision_decoder_forward.5} parent=1 // pred_region
      _
    $region13: #{vision_decoder_forward.5} parent=1 // pred_fallthru
      _
    // Predicated region
    $region14: #{vision_decoder_forward.5} parent=1 // pred_check
      _
    $region15: #{vision_decoder_forward.5} parent=1 // pred_check_branch
      %17 = sbr.rel (0) target = $region17
    $region16: #{vision_decoder_forward.5} parent=1 // pred_region
      %s19 = ssub.s32 384, 384
      %20 = vsyncadd [#allocation3], %s19
      %s22 = sshll.u32 [#allocation2], 4
      %s23 = int_to_ptr.vmem [resolvable:$true] %s22
      %25 = dma.hbm_to_vmem [thread:$0]  %s3, 384, %s23, [#allocation3]
    $region17: #{vision_decoder_forward.5} parent=1 // pred_fallthru
      _
    // Predicated region
    $region18: #{vision_decoder_forward.5} parent=1 // pred_check
      _
    $region19: #{vision_decoder_forward.5} parent=1 // pred_check_branch
      %27 = sbr.rel (0) target = $region21
    $region20: #{vision_decoder_forward.5} parent=1 // pred_region
      %28 = dma.done [#allocation3], 384
    $region21: #{vision_decoder_forward.5} parent=1 // pred_fallthru
      _
    %v30 = vld [vmem:[%s0] sm:$0x1]
    %v31 = vld [vmem:[%s1] sm:$0xff]
    %v32 = vld [vmem:[%s1 + $0x8] sm:$0xff]
    %v33 = vld [vmem:[%s1 + $0x10] sm:$0xff]
    %v34 = vld [vmem:[%s1 + $0x18] sm:$0xff]
    %v35 = vld [vmem:[%s1 + $0x20] sm:$0xff]
    %v36 = vld [vmem:[%s1 + $0x28] sm:$0xff]
    %v37 = vld [vmem:[%s1 + $0x30] sm:$0xff]
    %v38 = vld [vmem:[%s1 + $0x38] sm:$0xff]
    %v39 = vld [vmem:[%s1 + $0x40] sm:$0xff]
    %v40 = vld [vmem:[%s1 + $0x48] sm:$0xff]
    %v41 = vld [vmem:[%s1 + $0x50] sm:$0xff]
    %v42 = vld [vmem:[%s1 + $0x58] sm:$0xff]
    %v43 = vld [vmem:[%s1 + $0x60] sm:$0xff]
    %v44 = vld [vmem:[%s1 + $0x68] sm:$0xff]
    %v45 = vld [vmem:[%s1 + $0x70] sm:$0xff]
    %v46 = vld [vmem:[%s1 + $0x78] sm:$0xff]
    %v47 = vld [vmem:[%s1 + $0x80] sm:$0xff]
    %v48 = vld [vmem:[%s1 + $0x88] sm:$0xff]
    %v49 = vld [vmem:[%s1 + $0x90] sm:$0xff]
    %v50 = vld [vmem:[%s1 + $0x98] sm:$0xff]
    %v51 = vld [vmem:[%s1 + $0xa0] sm:$0xff]
    %v52 = vld [vmem:[%s1 + $0xa8] sm:$0xff]
    %v53 = vld [vmem:[%s1 + $0xb0] sm:$0xff]
    %v54 = vld [vmem:[%s1 + $0xb8] sm:$0xff]
    %v55 = vld [vmem:[%s1 + $0xc0] sm:$0xff]
    %v56 = vld [vmem:[%s1 + $0xc8] sm:$0xff]
    %v57 = vld [vmem:[%s1 + $0xd0] sm:$0xff]
    %v58 = vld [vmem:[%s1 + $0xd8] sm:$0xff]
    %v59 = vld [vmem:[%s1 + $0xe0] sm:$0xff]
    %v60 = vld [vmem:[%s1 + $0xe8] sm:$0xff]
    %v61 = vld [vmem:[%s1 + $0xf0] sm:$0xff]
    %v62 = vld [vmem:[%s1 + $0xf8] sm:$0xff]
    %v63 = vld [vmem:[%s1 + $0x100] sm:$0xff]
    %v64 = vld [vmem:[%s1 + $0x108] sm:$0xff]
    %v65 = vld [vmem:[%s1 + $0x110] sm:$0xff]
    %v66 = vld [vmem:[%s1 + $0x118] sm:$0xff]
    %v67 = vld [vmem:[%s1 + $0x120] sm:$0xff]
    %v68 = vld [vmem:[%s1 + $0x128] sm:$0xff]
    %v69 = vld [vmem:[%s1 + $0x130] sm:$0xff]
    %v70 = vld [vmem:[%s1 + $0x138] sm:$0xff]
    %v71 = vld [vmem:[%s1 + $0x140] sm:$0xff]
    %v72 = vld [vmem:[%s1 + $0x148] sm:$0xff]
    %v73 = vld [vmem:[%s1 + $0x150] sm:$0xff]
    %v74 = vld [vmem:[%s1 + $0x158] sm:$0xff]
    %v75 = vld [vmem:[%s1 + $0x160] sm:$0xff]
    %v76 = vld [vmem:[%s1 + $0x168] sm:$0xff]
    %v77 = vld [vmem:[%s1 + $0x170] sm:$0xff]
    %v78 = vld [vmem:[%s1 + $0x178] sm:$0xff]
    %v79 = vld [vmem:[%s1 + $0x180] sm:$0xff]
    %v80 = vld [vmem:[%s1 + $0x188] sm:$0xff]
    %v81 = vld [vmem:[%s1 + $0x190] sm:$0xff]
    %v82 = vld [vmem:[%s1 + $0x198] sm:$0xff]
    %v83 = vld [vmem:[%s1 + $0x1a0] sm:$0xff]
    %v84 = vld [vmem:[%s1 + $0x1a8] sm:$0xff]
    %v85 = vld [vmem:[%s1 + $0x1b0] sm:$0xff]
    %v86 = vld [vmem:[%s1 + $0x1b8] sm:$0xff]
    %v87 = vld [vmem:[%s1 + $0x1c0] sm:$0xff]
    %v88 = vld [vmem:[%s1 + $0x1c8] sm:$0xff]
    %v89 = vld [vmem:[%s1 + $0x1d0] sm:$0xff]
    %v90 = vld [vmem:[%s1 + $0x1d8] sm:$0xff]
    %v91 = vld [vmem:[%s1 + $0x1e0] sm:$0xff]
    %v92 = vld [vmem:[%s1 + $0x1e8] sm:$0xff]
    %v93 = vld [vmem:[%s1 + $0x1f0] sm:$0xff]
    %v94 = vld [vmem:[%s1 + $0x1f8] sm:$0xff]
    %v95 = vld [vmem:[%s1 + $0x200] sm:$0xff]
    %v96 = vld [vmem:[%s1 + $0x208] sm:$0xff]
    %v97 = vld [vmem:[%s1 + $0x210] sm:$0xff]
    %v98 = vld [vmem:[%s1 + $0x218] sm:$0xff]
    %v99 = vld [vmem:[%s1 + $0x220] sm:$0xff]
    %v100 = vld [vmem:[%s1 + $0x228] sm:$0xff]
    %v101 = vld [vmem:[%s1 + $0x230] sm:$0xff]
    %v102 = vld [vmem:[%s1 + $0x238] sm:$0xff]
    %v103 = vld [vmem:[%s1 + $0x240] sm:$0xff]
    %v104 = vld [vmem:[%s1 + $0x248] sm:$0xff]
    %v105 = vld [vmem:[%s1 + $0x250] sm:$0xff]
    %v106 = vld [vmem:[%s1 + $0x258] sm:$0xff]
    %v107 = vld [vmem:[%s1 + $0x260] sm:$0xff]
    %v108 = vld [vmem:[%s1 + $0x268] sm:$0xff]
    %v109 = vld [vmem:[%s1 + $0x270] sm:$0xff]
    %v110 = vld [vmem:[%s1 + $0x278] sm:$0xff]
    %v111 = vld [vmem:[%s1 + $0x280] sm:$0xff]
    %v112 = vld [vmem:[%s1 + $0x288] sm:$0xff]
    %v113 = vld [vmem:[%s1 + $0x290] sm:$0xff]
    %v114 = vld [vmem:[%s1 + $0x298] sm:$0xff]
    %v115 = vld [vmem:[%s1 + $0x2a0] sm:$0xff]
    %v116 = vld [vmem:[%s1 + $0x2a8] sm:$0xff]
    %v117 = vld [vmem:[%s1 + $0x2b0] sm:$0xff]
    %v118 = vld [vmem:[%s1 + $0x2b8] sm:$0xff]
    %v119 = vld [vmem:[%s1 + $0x2c0] sm:$0xff]
    %v120 = vld [vmem:[%s1 + $0x2c8] sm:$0xff]
    %v121 = vld [vmem:[%s1 + $0x2d0] sm:$0xff]
    %v122 = vld [vmem:[%s1 + $0x2d8] sm:$0xff]
    %v123 = vld [vmem:[%s1 + $0x2e0] sm:$0xff]
    %v124 = vld [vmem:[%s1 + $0x2e8] sm:$0xff]
    %v125 = vld [vmem:[%s1 + $0x2f0] sm:$0xff]
    %v126 = vld [vmem:[%s1 + $0x2f8] sm:$0xff]
    %v127 = vld [vmem:[%s1 + $0x300] sm:$0xff]
    %v128 = vld [vmem:[%s1 + $0x308] sm:$0xff]
    %v129 = vld [vmem:[%s1 + $0x310] sm:$0xff]
    %v130 = vld [vmem:[%s1 + $0x318] sm:$0xff]
    %v131 = vld [vmem:[%s1 + $0x320] sm:$0xff]
    %v132 = vld [vmem:[%s1 + $0x328] sm:$0xff]
    %v133 = vld [vmem:[%s1 + $0x330] sm:$0xff]
    %v134 = vld [vmem:[%s1 + $0x338] sm:$0xff]
    %v135 = vld [vmem:[%s1 + $0x340] sm:$0xff]
    %v136 = vld [vmem:[%s1 + $0x348] sm:$0xff]
    %v137 = vld [vmem:[%s1 + $0x350] sm:$0xff]
    %v138 = vld [vmem:[%s1 + $0x358] sm:$0xff]
    %v139 = vld [vmem:[%s1 + $0x360] sm:$0xff]
    %v140 = vld [vmem:[%s1 + $0x368] sm:$0xff]
    %v141 = vld [vmem:[%s1 + $0x370] sm:$0xff]
    %v142 = vld [vmem:[%s1 + $0x378] sm:$0xff]
    %v143 = vld [vmem:[%s1 + $0x380] sm:$0xff]
    %v144 = vld [vmem:[%s1 + $0x388] sm:$0xff]
    %v145 = vld [vmem:[%s1 + $0x390] sm:$0xff]
    %v146 = vld [vmem:[%s1 + $0x398] sm:$0xff]
    %v147 = vld [vmem:[%s1 + $0x3a0] sm:$0xff]
    %v148 = vld [vmem:[%s1 + $0x3a8] sm:$0xff]
    %v149 = vld [vmem:[%s1 + $0x3b0] sm:$0xff]
    %v150 = vld [vmem:[%s1 + $0x3b8] sm:$0xff]
    %v151 = vld [vmem:[%s1 + $0x3c0] sm:$0xff]
    %v152 = vld [vmem:[%s1 + $0x3c8] sm:$0xff]
    %v153 = vld [vmem:[%s1 + $0x3d0] sm:$0xff]
    %v154 = vld [vmem:[%s1 + $0x3d8] sm:$0xff]
    %v155 = vld [vmem:[%s1 + $0x3e0] sm:$0xff]
    %v156 = vld [vmem:[%s1 + $0x3e8] sm:$0xff]
    %v157 = vld [vmem:[%s1 + $0x3f0] sm:$0xff]
    %v158 = vld [vmem:[%s1 + $0x3f8] sm:$0xff]
    %v159 = vld [vmem:[%s1 + $0x400] sm:$0xff]
    %v160 = vld [vmem:[%s1 + $0x408] sm:$0xff]
    %v161 = vld [vmem:[%s1 + $0x410] sm:$0xff]
    %v162 = vld [vmem:[%s1 + $0x418] sm:$0xff]
    %v163 = vld [vmem:[%s1 + $0x420] sm:$0xff]
    %v164 = vld [vmem:[%s1 + $0x428] sm:$0xff]
    %v165 = vld [vmem:[%s1 + $0x430] sm:$0xff]
    %v166 = vld [vmem:[%s1 + $0x438] sm:$0xff]
    %v167 = vld [vmem:[%s1 + $0x440] sm:$0xff]
    %v168 = vld [vmem:[%s1 + $0x448] sm:$0xff]
    %v169 = vld [vmem:[%s1 + $0x450] sm:$0xff]
    %v170 = vld [vmem:[%s1 + $0x458] sm:$0xff]
    %v171 = vld [vmem:[%s1 + $0x460] sm:$0xff]
    %v172 = vld [vmem:[%s1 + $0x468] sm:$0xff]
    %v173 = vld [vmem:[%s1 + $0x470] sm:$0xff]
    %v174 = vld [vmem:[%s1 + $0x478] sm:$0xff]
    %v175 = vld [vmem:[%s1 + $0x480] sm:$0xff]
    %v176 = vld [vmem:[%s1 + $0x488] sm:$0xff]
    %v177 = vld [vmem:[%s1 + $0x490] sm:$0xff]
    %v178 = vld [vmem:[%s1 + $0x498] sm:$0xff]
    %v179 = vld [vmem:[%s1 + $0x4a0] sm:$0xff]
    %v180 = vld [vmem:[%s1 + $0x4a8] sm:$0xff]
    %v181 = vld [vmem:[%s1 + $0x4b0] sm:$0xff]
    %v182 = vld [vmem:[%s1 + $0x4b8] sm:$0xff]
    %v183 = vld [vmem:[%s1 + $0x4c0] sm:$0xff]
    %v184 = vld [vmem:[%s1 + $0x4c8] sm:$0xff]
    %v185 = vld [vmem:[%s1 + $0x4d0] sm:$0xff]
    %v186 = vld [vmem:[%s1 + $0x4d8] sm:$0xff]
    %v187 = vld [vmem:[%s1 + $0x4e0] sm:$0xff]
    %v188 = vld [vmem:[%s1 + $0x4e8] sm:$0xff]
    %v189 = vld [vmem:[%s1 + $0x4f0] sm:$0xff]
    %v190 = vld [vmem:[%s1 + $0x4f8] sm:$0xff]
    %v191 = vld [vmem:[%s1 + $0x500] sm:$0xff]
    %v192 = vld [vmem:[%s1 + $0x508] sm:$0xff]
    %v193 = vld [vmem:[%s1 + $0x510] sm:$0xff]
    %v194 = vld [vmem:[%s1 + $0x518] sm:$0xff]
    %v195 = vld [vmem:[%s1 + $0x520] sm:$0xff]
    %v196 = vld [vmem:[%s1 + $0x528] sm:$0xff]
    %v197 = vld [vmem:[%s1 + $0x530] sm:$0xff]
    %v198 = vld [vmem:[%s1 + $0x538] sm:$0xff]
    %v199 = vld [vmem:[%s1 + $0x540] sm:$0xff]
    %v200 = vld [vmem:[%s1 + $0x548] sm:$0xff]
    %v201 = vld [vmem:[%s1 + $0x550] sm:$0xff]
    %v202 = vld [vmem:[%s1 + $0x558] sm:$0xff]
    %v203 = vld [vmem:[%s1 + $0x560] sm:$0xff]
    %v204 = vld [vmem:[%s1 + $0x568] sm:$0xff]
    %v205 = vld [vmem:[%s1 + $0x570] sm:$0xff]
    %v206 = vld [vmem:[%s1 + $0x578] sm:$0xff]
    %v207 = vld [vmem:[%s1 + $0x580] sm:$0xff]
    %v208 = vld [vmem:[%s1 + $0x588] sm:$0xff]
    %v209 = vld [vmem:[%s1 + $0x590] sm:$0xff]
    %v210 = vld [vmem:[%s1 + $0x598] sm:$0xff]
    %v211 = vld [vmem:[%s1 + $0x5a0] sm:$0xff]
    %v212 = vld [vmem:[%s1 + $0x5a8] sm:$0xff]
    %v213 = vld [vmem:[%s1 + $0x5b0] sm:$0xff]
    %v214 = vld [vmem:[%s1 + $0x5b8] sm:$0xff]
    %v215 = vld [vmem:[%s1 + $0x5c0] sm:$0xff]
    %v216 = vld [vmem:[%s1 + $0x5c8] sm:$0xff]
    %v217 = vld [vmem:[%s1 + $0x5d0] sm:$0xff]
    %v218 = vld [vmem:[%s1 + $0x5d8] sm:$0xff]
    %v219 = vld [vmem:[%s1 + $0x5e0] sm:$0xff]
    %v220 = vld [vmem:[%s1 + $0x5e8] sm:$0xff]
    %v221 = vld [vmem:[%s1 + $0x5f0] sm:$0xff]
    %v222 = vld [vmem:[%s1 + $0x5f8] sm:$0xff]
    %v415 = vunpack.c.l.b16 %v31
    %v416 = vunpack.c.h.b16 %v31
    %v417 = vunpack.c.l.b16 %v32
    %v418 = vunpack.c.h.b16 %v32
    %v419 = vunpack.c.l.b16 %v33
    %v420 = vunpack.c.h.b16 %v33
    %v421 = vunpack.c.l.b16 %v34
    %v422 = vunpack.c.h.b16 %v34
    %v423 = vunpack.c.l.b16 %v35
    %v424 = vunpack.c.h.b16 %v35
    %v425 = vunpack.c.l.b16 %v36
    %v426 = vunpack.c.h.b16 %v36
    %v427 = vunpack.c.l.b16 %v37
    %v428 = vunpack.c.h.b16 %v37
    %v429 = vunpack.c.l.b16 %v38
    %v430 = vunpack.c.h.b16 %v38
    %v431 = vunpack.c.l.b16 %v39
    %v432 = vunpack.c.h.b16 %v39
    %v433 = vunpack.c.l.b16 %v40
    %v434 = vunpack.c.h.b16 %v40
    %v435 = vunpack.c.l.b16 %v41
    %v436 = vunpack.c.h.b16 %v41
    %v437 = vunpack.c.l.b16 %v42
    %v438 = vunpack.c.h.b16 %v42
    %v439 = vunpack.c.l.b16 %v43
    %v440 = vunpack.c.h.b16 %v43
    %v441 = vunpack.c.l.b16 %v44
    %v442 = vunpack.c.h.b16 %v44
    %v443 = vunpack.c.l.b16 %v45
    %v444 = vunpack.c.h.b16 %v45
    %v445 = vunpack.c.l.b16 %v46
    %v446 = vunpack.c.h.b16 %v46
    %v447 = vunpack.c.l.b16 %v47
    %v448 = vunpack.c.h.b16 %v47
    %v449 = vunpack.c.l.b16 %v48
    %v450 = vunpack.c.h.b16 %v48
    %v451 = vunpack.c.l.b16 %v49
    %v452 = vunpack.c.h.b16 %v49
    %v453 = vunpack.c.l.b16 %v50
    %v454 = vunpack.c.h.b16 %v50
    %v455 = vunpack.c.l.b16 %v51
    %v456 = vunpack.c.h.b16 %v51
    %v457 = vunpack.c.l.b16 %v52
    %v458 = vunpack.c.h.b16 %v52
    %v459 = vunpack.c.l.b16 %v53
    %v460 = vunpack.c.h.b16 %v53
    %v461 = vunpack.c.l.b16 %v54
    %v462 = vunpack.c.h.b16 %v54
    %v463 = vunpack.c.l.b16 %v55
    %v464 = vunpack.c.h.b16 %v55
    %v465 = vunpack.c.l.b16 %v56
    %v466 = vunpack.c.h.b16 %v56
    %v467 = vunpack.c.l.b16 %v57
    %v468 = vunpack.c.h.b16 %v57
    %v469 = vunpack.c.l.b16 %v58
    %v470 = vunpack.c.h.b16 %v58
    %v471 = vunpack.c.l.b16 %v59
    %v472 = vunpack.c.h.b16 %v59
    %v473 = vunpack.c.l.b16 %v60
    %v474 = vunpack.c.h.b16 %v60
    %v475 = vunpack.c.l.b16 %v61
    %v476 = vunpack.c.h.b16 %v61
    %v477 = vunpack.c.l.b16 %v62
    %v478 = vunpack.c.h.b16 %v62
    %v479 = vunpack.c.l.b16 %v63
    %v480 = vunpack.c.h.b16 %v63
    %v481 = vunpack.c.l.b16 %v64
    %v482 = vunpack.c.h.b16 %v64
    %v483 = vunpack.c.l.b16 %v65
    %v484 = vunpack.c.h.b16 %v65
    %v485 = vunpack.c.l.b16 %v66
    %v486 = vunpack.c.h.b16 %v66
    %v487 = vunpack.c.l.b16 %v67
    %v488 = vunpack.c.h.b16 %v67
    %v489 = vunpack.c.l.b16 %v68
    %v490 = vunpack.c.h.b16 %v68
    %v491 = vunpack.c.l.b16 %v69
    %v492 = vunpack.c.h.b16 %v69
    %v493 = vunpack.c.l.b16 %v70
    %v494 = vunpack.c.h.b16 %v70
    %v495 = vunpack.c.l.b16 %v71
    %v496 = vunpack.c.h.b16 %v71
    %v497 = vunpack.c.l.b16 %v72
    %v498 = vunpack.c.h.b16 %v72
    %v499 = vunpack.c.l.b16 %v73
    %v500 = vunpack.c.h.b16 %v73
    %v501 = vunpack.c.l.b16 %v74
    %v502 = vunpack.c.h.b16 %v74
    %v503 = vunpack.c.l.b16 %v75
    %v504 = vunpack.c.h.b16 %v75
    %v505 = vunpack.c.l.b16 %v76
    %v506 = vunpack.c.h.b16 %v76
    %v507 = vunpack.c.l.b16 %v77
    %v508 = vunpack.c.h.b16 %v77
    %v509 = vunpack.c.l.b16 %v78
    %v510 = vunpack.c.h.b16 %v78
    %v511 = vunpack.c.l.b16 %v79
    %v512 = vunpack.c.h.b16 %v79
    %v513 = vunpack.c.l.b16 %v80
    %v514 = vunpack.c.h.b16 %v80
    %v515 = vunpack.c.l.b16 %v81
    %v516 = vunpack.c.h.b16 %v81
    %v517 = vunpack.c.l.b16 %v82
    %v518 = vunpack.c.h.b16 %v82
    %v519 = vunpack.c.l.b16 %v83
    %v520 = vunpack.c.h.b16 %v83
    %v521 = vunpack.c.l.b16 %v84
    %v522 = vunpack.c.h.b16 %v84
    %v523 = vunpack.c.l.b16 %v85
    %v524 = vunpack.c.h.b16 %v85
    %v525 = vunpack.c.l.b16 %v86
    %v526 = vunpack.c.h.b16 %v86
    %v527 = vunpack.c.l.b16 %v87
    %v528 = vunpack.c.h.b16 %v87
    %v529 = vunpack.c.l.b16 %v88
    %v530 = vunpack.c.h.b16 %v88
    %v531 = vunpack.c.l.b16 %v89
    %v532 = vunpack.c.h.b16 %v89
    %v533 = vunpack.c.l.b16 %v90
    %v534 = vunpack.c.h.b16 %v90
    %v535 = vunpack.c.l.b16 %v91
    %v536 = vunpack.c.h.b16 %v91
    %v537 = vunpack.c.l.b16 %v92
    %v538 = vunpack.c.h.b16 %v92
    %v539 = vunpack.c.l.b16 %v93
    %v540 = vunpack.c.h.b16 %v93
    %v541 = vunpack.c.l.b16 %v94
    %v542 = vunpack.c.h.b16 %v94
    %v543 = vunpack.c.l.b16 %v95
    %v544 = vunpack.c.h.b16 %v95
    %v545 = vunpack.c.l.b16 %v96
    %v546 = vunpack.c.h.b16 %v96
    %v547 = vunpack.c.l.b16 %v97
    %v548 = vunpack.c.h.b16 %v97
    %v549 = vunpack.c.l.b16 %v98
    %v550 = vunpack.c.h.b16 %v98
    %v551 = vunpack.c.l.b16 %v99
    %v552 = vunpack.c.h.b16 %v99
    %v553 = vunpack.c.l.b16 %v100
    %v554 = vunpack.c.h.b16 %v100
    %v555 = vunpack.c.l.b16 %v101
    %v556 = vunpack.c.h.b16 %v101
    %v557 = vunpack.c.l.b16 %v102
    %v558 = vunpack.c.h.b16 %v102
    %v559 = vunpack.c.l.b16 %v103
    %v560 = vunpack.c.h.b16 %v103
    %v561 = vunpack.c.l.b16 %v104
    %v562 = vunpack.c.h.b16 %v104
    %v563 = vunpack.c.l.b16 %v105
    %v564 = vunpack.c.h.b16 %v105
    %v565 = vunpack.c.l.b16 %v106
    %v566 = vunpack.c.h.b16 %v106
    %v567 = vunpack.c.l.b16 %v107
    %v568 = vunpack.c.h.b16 %v107
    %v569 = vunpack.c.l.b16 %v108
    %v570 = vunpack.c.h.b16 %v108
    %v571 = vunpack.c.l.b16 %v109
    %v572 = vunpack.c.h.b16 %v109
    %v573 = vunpack.c.l.b16 %v110
    %v574 = vunpack.c.h.b16 %v110
    %v575 = vunpack.c.l.b16 %v111
    %v576 = vunpack.c.h.b16 %v111
    %v577 = vunpack.c.l.b16 %v112
    %v578 = vunpack.c.h.b16 %v112
    %v579 = vunpack.c.l.b16 %v113
    %v580 = vunpack.c.h.b16 %v113
    %v581 = vunpack.c.l.b16 %v114
    %v582 = vunpack.c.h.b16 %v114
    %v583 = vunpack.c.l.b16 %v115
    %v584 = vunpack.c.h.b16 %v115
    %v585 = vunpack.c.l.b16 %v116
    %v586 = vunpack.c.h.b16 %v116
    %v587 = vunpack.c.l.b16 %v117
    %v588 = vunpack.c.h.b16 %v117
    %v589 = vunpack.c.l.b16 %v118
    %v590 = vunpack.c.h.b16 %v118
    %v591 = vunpack.c.l.b16 %v119
    %v592 = vunpack.c.h.b16 %v119
    %v593 = vunpack.c.l.b16 %v120
    %v594 = vunpack.c.h.b16 %v120
    %v595 = vunpack.c.l.b16 %v121
    %v596 = vunpack.c.h.b16 %v121
    %v597 = vunpack.c.l.b16 %v122
    %v598 = vunpack.c.h.b16 %v122
    %v599 = vunpack.c.l.b16 %v123
    %v600 = vunpack.c.h.b16 %v123
    %v601 = vunpack.c.l.b16 %v124
    %v602 = vunpack.c.h.b16 %v124
    %v603 = vunpack.c.l.b16 %v125
    %v604 = vunpack.c.h.b16 %v125
    %v605 = vunpack.c.l.b16 %v126
    %v606 = vunpack.c.h.b16 %v126
    %v607 = vunpack.c.l.b16 %v127
    %v608 = vunpack.c.h.b16 %v127
    %v609 = vunpack.c.l.b16 %v128
    %v610 = vunpack.c.h.b16 %v128
    %v611 = vunpack.c.l.b16 %v129
    %v612 = vunpack.c.h.b16 %v129
    %v613 = vunpack.c.l.b16 %v130
    %v614 = vunpack.c.h.b16 %v130
    %v615 = vunpack.c.l.b16 %v131
    %v616 = vunpack.c.h.b16 %v131
    %v617 = vunpack.c.l.b16 %v132
    %v618 = vunpack.c.h.b16 %v132
    %v619 = vunpack.c.l.b16 %v133
    %v620 = vunpack.c.h.b16 %v133
    %v621 = vunpack.c.l.b16 %v134
    %v622 = vunpack.c.h.b16 %v134
    %v623 = vunpack.c.l.b16 %v135
    %v624 = vunpack.c.h.b16 %v135
    %v625 = vunpack.c.l.b16 %v136
    %v626 = vunpack.c.h.b16 %v136
    %v627 = vunpack.c.l.b16 %v137
    %v628 = vunpack.c.h.b16 %v137
    %v629 = vunpack.c.l.b16 %v138
    %v630 = vunpack.c.h.b16 %v138
    %v631 = vunpack.c.l.b16 %v139
    %v632 = vunpack.c.h.b16 %v139
    %v633 = vunpack.c.l.b16 %v140
    %v634 = vunpack.c.h.b16 %v140
    %v635 = vunpack.c.l.b16 %v141
    %v636 = vunpack.c.h.b16 %v141
    %v637 = vunpack.c.l.b16 %v142
    %v638 = vunpack.c.h.b16 %v142
    %v639 = vunpack.c.l.b16 %v143
    %v640 = vunpack.c.h.b16 %v143
    %v641 = vunpack.c.l.b16 %v144
    %v642 = vunpack.c.h.b16 %v144
    %v643 = vunpack.c.l.b16 %v145
    %v644 = vunpack.c.h.b16 %v145
    %v645 = vunpack.c.l.b16 %v146
    %v646 = vunpack.c.h.b16 %v146
    %v647 = vunpack.c.l.b16 %v147
    %v648 = vunpack.c.h.b16 %v147
    %v649 = vunpack.c.l.b16 %v148
    %v650 = vunpack.c.h.b16 %v148
    %v651 = vunpack.c.l.b16 %v149
    %v652 = vunpack.c.h.b16 %v149
    %v653 = vunpack.c.l.b16 %v150
    %v654 = vunpack.c.h.b16 %v150
    %v655 = vunpack.c.l.b16 %v151
    %v656 = vunpack.c.h.b16 %v151
    %v657 = vunpack.c.l.b16 %v152
    %v658 = vunpack.c.h.b16 %v152
    %v659 = vunpack.c.l.b16 %v153
    %v660 = vunpack.c.h.b16 %v153
    %v661 = vunpack.c.l.b16 %v154
    %v662 = vunpack.c.h.b16 %v154
    %v663 = vunpack.c.l.b16 %v155
    %v664 = vunpack.c.h.b16 %v155
    %v665 = vunpack.c.l.b16 %v156
    %v666 = vunpack.c.h.b16 %v156
    %v667 = vunpack.c.l.b16 %v157
    %v668 = vunpack.c.h.b16 %v157
    %v669 = vunpack.c.l.b16 %v158
    %v670 = vunpack.c.h.b16 %v158
    %v671 = vunpack.c.l.b16 %v159
    %v672 = vunpack.c.h.b16 %v159
    %v673 = vunpack.c.l.b16 %v160
    %v674 = vunpack.c.h.b16 %v160
    %v675 = vunpack.c.l.b16 %v161
    %v676 = vunpack.c.h.b16 %v161
    %v677 = vunpack.c.l.b16 %v162
    %v678 = vunpack.c.h.b16 %v162
    %v679 = vunpack.c.l.b16 %v163
    %v680 = vunpack.c.h.b16 %v163
    %v681 = vunpack.c.l.b16 %v164
    %v682 = vunpack.c.h.b16 %v164
    %v683 = vunpack.c.l.b16 %v165
    %v684 = vunpack.c.h.b16 %v165
    %v685 = vunpack.c.l.b16 %v166
    %v686 = vunpack.c.h.b16 %v166
    %v687 = vunpack.c.l.b16 %v167
    %v688 = vunpack.c.h.b16 %v167
    %v689 = vunpack.c.l.b16 %v168
    %v690 = vunpack.c.h.b16 %v168
    %v691 = vunpack.c.l.b16 %v169
    %v692 = vunpack.c.h.b16 %v169
    %v693 = vunpack.c.l.b16 %v170
    %v694 = vunpack.c.h.b16 %v170
    %v695 = vunpack.c.l.b16 %v171
    %v696 = vunpack.c.h.b16 %v171
    %v697 = vunpack.c.l.b16 %v172
    %v698 = vunpack.c.h.b16 %v172
    %v699 = vunpack.c.l.b16 %v173
    %v700 = vunpack.c.h.b16 %v173
    %v701 = vunpack.c.l.b16 %v174
    %v702 = vunpack.c.h.b16 %v174
    %v703 = vunpack.c.l.b16 %v175
    %v704 = vunpack.c.h.b16 %v175
    %v705 = vunpack.c.l.b16 %v176
    %v706 = vunpack.c.h.b16 %v176
    %v707 = vunpack.c.l.b16 %v177
    %v708 = vunpack.c.h.b16 %v177
    %v709 = vunpack.c.l.b16 %v178
    %v710 = vunpack.c.h.b16 %v178
    %v711 = vunpack.c.l.b16 %v179
    %v712 = vunpack.c.h.b16 %v179
    %v713 = vunpack.c.l.b16 %v180
    %v714 = vunpack.c.h.b16 %v180
    %v715 = vunpack.c.l.b16 %v181
    %v716 = vunpack.c.h.b16 %v181
    %v717 = vunpack.c.l.b16 %v182
    %v718 = vunpack.c.h.b16 %v182
    %v719 = vunpack.c.l.b16 %v183
    %v720 = vunpack.c.h.b16 %v183
    %v721 = vunpack.c.l.b16 %v184
    %v722 = vunpack.c.h.b16 %v184
    %v723 = vunpack.c.l.b16 %v185
    %v724 = vunpack.c.h.b16 %v185
    %v725 = vunpack.c.l.b16 %v186
    %v726 = vunpack.c.h.b16 %v186
    %v727 = vunpack.c.l.b16 %v187
    %v728 = vunpack.c.h.b16 %v187
    %v729 = vunpack.c.l.b16 %v188
    %v730 = vunpack.c.h.b16 %v188
    %v731 = vunpack.c.l.b16 %v189
    %v732 = vunpack.c.h.b16 %v189
    %v733 = vunpack.c.l.b16 %v190
    %v734 = vunpack.c.h.b16 %v190
    %v735 = vunpack.c.l.b16 %v191
    %v736 = vunpack.c.h.b16 %v191
    %v737 = vunpack.c.l.b16 %v192
    %v738 = vunpack.c.h.b16 %v192
    %v739 = vunpack.c.l.b16 %v193
    %v740 = vunpack.c.h.b16 %v193
    %v741 = vunpack.c.l.b16 %v194
    %v742 = vunpack.c.h.b16 %v194
    %v743 = vunpack.c.l.b16 %v195
    %v744 = vunpack.c.h.b16 %v195
    %v745 = vunpack.c.l.b16 %v196
    %v746 = vunpack.c.h.b16 %v196
    %v747 = vunpack.c.l.b16 %v197
    %v748 = vunpack.c.h.b16 %v197
    %v749 = vunpack.c.l.b16 %v198
    %v750 = vunpack.c.h.b16 %v198
    %v751 = vunpack.c.l.b16 %v199
    %v752 = vunpack.c.h.b16 %v199
    %v753 = vunpack.c.l.b16 %v200
    %v754 = vunpack.c.h.b16 %v200
    %v755 = vunpack.c.l.b16 %v201
    %v756 = vunpack.c.h.b16 %v201
    %v757 = vunpack.c.l.b16 %v202
    %v758 = vunpack.c.h.b16 %v202
    %v759 = vunpack.c.l.b16 %v203
    %v760 = vunpack.c.h.b16 %v203
    %v761 = vunpack.c.l.b16 %v204
    %v762 = vunpack.c.h.b16 %v204
    %v763 = vunpack.c.l.b16 %v205
    %v764 = vunpack.c.h.b16 %v205
    %v765 = vunpack.c.l.b16 %v206
    %v766 = vunpack.c.h.b16 %v206
    %v767 = vunpack.c.l.b16 %v207
    %v768 = vunpack.c.h.b16 %v207
    %v769 = vunpack.c.l.b16 %v208
    %v770 = vunpack.c.h.b16 %v208
    %v771 = vunpack.c.l.b16 %v209
    %v772 = vunpack.c.h.b16 %v209
    %v773 = vunpack.c.l.b16 %v210
    %v774 = vunpack.c.h.b16 %v210
    %v775 = vunpack.c.l.b16 %v211
    %v776 = vunpack.c.h.b16 %v211
    %v777 = vunpack.c.l.b16 %v212
    %v778 = vunpack.c.h.b16 %v212
    %v779 = vunpack.c.l.b16 %v213
    %v780 = vunpack.c.h.b16 %v213
    %v781 = vunpack.c.l.b16 %v214
    %v782 = vunpack.c.h.b16 %v214
    %v783 = vunpack.c.l.b16 %v215
    %v784 = vunpack.c.h.b16 %v215
    %v785 = vunpack.c.l.b16 %v216
    %v786 = vunpack.c.h.b16 %v216
    %v787 = vunpack.c.l.b16 %v217
    %v788 = vunpack.c.h.b16 %v217
    %v789 = vunpack.c.l.b16 %v218
    %v790 = vunpack.c.h.b16 %v218
    %v791 = vunpack.c.l.b16 %v219
    %v792 = vunpack.c.h.b16 %v219
    %v793 = vunpack.c.l.b16 %v220
    %v794 = vunpack.c.h.b16 %v220
    %v795 = vunpack.c.l.b16 %v221
    %v796 = vunpack.c.h.b16 %v221
    %v797 = vunpack.c.l.b16 %v222
    %v798 = vunpack.c.h.b16 %v222
    %v799 = vpack.c.b16 %v439, %v415
    %v800 = vpack.c.b16 %v440, %v416
    %v801 = vpack.c.b16 %v441, %v417
    %v802 = vpack.c.b16 %v442, %v418
    %v803 = vpack.c.b16 %v443, %v419
    %v804 = vpack.c.b16 %v444, %v420
    %v805 = vpack.c.b16 %v445, %v421
    %v806 = vpack.c.b16 %v446, %v422
    %v807 = vpack.c.b16 %v447, %v423
    %v808 = vpack.c.b16 %v448, %v424
    %v809 = vpack.c.b16 %v449, %v425
    %v810 = vpack.c.b16 %v450, %v426
    %v811 = vpack.c.b16 %v451, %v427
    %v812 = vpack.c.b16 %v452, %v428
    %v813 = vpack.c.b16 %v453, %v429
    %v814 = vpack.c.b16 %v454, %v430
    %v815 = vpack.c.b16 %v455, %v431
    %v816 = vpack.c.b16 %v456, %v432
    %v817 = vpack.c.b16 %v457, %v433
    %v818 = vpack.c.b16 %v458, %v434
    %v819 = vpack.c.b16 %v459, %v435
    %v820 = vpack.c.b16 %v460, %v436
    %v821 = vpack.c.b16 %v461, %v437
    %v822 = vpack.c.b16 %v462, %v438
    %v823 = vpack.c.b16 %v487, %v463
    %v824 = vpack.c.b16 %v488, %v464
    %v825 = vpack.c.b16 %v489, %v465
    %v826 = vpack.c.b16 %v490, %v466
    %v827 = vpack.c.b16 %v491, %v467
    %v828 = vpack.c.b16 %v492, %v468
    %v829 = vpack.c.b16 %v493, %v469
    %v830 = vpack.c.b16 %v494, %v470
    %v831 = vpack.c.b16 %v495, %v471
    %v832 = vpack.c.b16 %v496, %v472
    %v833 = vpack.c.b16 %v497, %v473
    %v834 = vpack.c.b16 %v498, %v474
    %v835 = vpack.c.b16 %v499, %v475
    %v836 = vpack.c.b16 %v500, %v476
    %v837 = vpack.c.b16 %v501, %v477
    %v838 = vpack.c.b16 %v502, %v478
    %v839 = vpack.c.b16 %v503, %v479
    %v840 = vpack.c.b16 %v504, %v480
    %v841 = vpack.c.b16 %v505, %v481
    %v842 = vpack.c.b16 %v506, %v482
    %v843 = vpack.c.b16 %v507, %v483
    %v844 = vpack.c.b16 %v508, %v484
    %v845 = vpack.c.b16 %v509, %v485
    %v846 = vpack.c.b16 %v510, %v486
    %v847 = vpack.c.b16 %v535, %v511
    %v848 = vpack.c.b16 %v536, %v512
    %v849 = vpack.c.b16 %v537, %v513
    %v850 = vpack.c.b16 %v538, %v514
    %v851 = vpack.c.b16 %v539, %v515
    %v852 = vpack.c.b16 %v540, %v516
    %v853 = vpack.c.b16 %v541, %v517
    %v854 = vpack.c.b16 %v542, %v518
    %v855 = vpack.c.b16 %v543, %v519
    %v856 = vpack.c.b16 %v544, %v520
    %v857 = vpack.c.b16 %v545, %v521
    %v858 = vpack.c.b16 %v546, %v522
    %v859 = vpack.c.b16 %v547, %v523
    %v860 = vpack.c.b16 %v548, %v524
    %v861 = vpack.c.b16 %v549, %v525
    %v862 = vpack.c.b16 %v550, %v526
    %v863 = vpack.c.b16 %v551, %v527
    %v864 = vpack.c.b16 %v552, %v528
    %v865 = vpack.c.b16 %v553, %v529
    %v866 = vpack.c.b16 %v554, %v530
    %v867 = vpack.c.b16 %v555, %v531
    %v868 = vpack.c.b16 %v556, %v532
    %v869 = vpack.c.b16 %v557, %v533
    %v870 = vpack.c.b16 %v558, %v534
    %v871 = vpack.c.b16 %v583, %v559
    %v872 = vpack.c.b16 %v584, %v560
    %v873 = vpack.c.b16 %v585, %v561
    %v874 = vpack.c.b16 %v586, %v562
    %v875 = vpack.c.b16 %v587, %v563
    %v876 = vpack.c.b16 %v588, %v564
    %v877 = vpack.c.b16 %v589, %v565
    %v878 = vpack.c.b16 %v590, %v566
    %v879 = vpack.c.b16 %v591, %v567
    %v880 = vpack.c.b16 %v592, %v568
    %v881 = vpack.c.b16 %v593, %v569
    %v882 = vpack.c.b16 %v594, %v570
    %v883 = vpack.c.b16 %v595, %v571
    %v884 = vpack.c.b16 %v596, %v572
    %v885 = vpack.c.b16 %v597, %v573
    %v886 = vpack.c.b16 %v598, %v574
    %v887 = vpack.c.b16 %v599, %v575
    %v888 = vpack.c.b16 %v600, %v576
    %v889 = vpack.c.b16 %v601, %v577
    %v890 = vpack.c.b16 %v602, %v578
    %v891 = vpack.c.b16 %v603, %v579
    %v892 = vpack.c.b16 %v604, %v580
    %v893 = vpack.c.b16 %v605, %v581
    %v894 = vpack.c.b16 %v606, %v582
    %v895 = vpack.c.b16 %v631, %v607
    %v896 = vpack.c.b16 %v632, %v608
    %v897 = vpack.c.b16 %v633, %v609
    %v898 = vpack.c.b16 %v634, %v610
    %v899 = vpack.c.b16 %v635, %v611
    %v900 = vpack.c.b16 %v636, %v612
    %v901 = vpack.c.b16 %v637, %v613
    %v902 = vpack.c.b16 %v638, %v614
    %v903 = vpack.c.b16 %v639, %v615
    %v904 = vpack.c.b16 %v640, %v616
    %v905 = vpack.c.b16 %v641, %v617
    %v906 = vpack.c.b16 %v642, %v618
    %v907 = vpack.c.b16 %v643, %v619
    %v908 = vpack.c.b16 %v644, %v620
    %v909 = vpack.c.b16 %v645, %v621
    %v910 = vpack.c.b16 %v646, %v622
    %v911 = vpack.c.b16 %v647, %v623
    %v912 = vpack.c.b16 %v648, %v624
    %v913 = vpack.c.b16 %v649, %v625
    %v914 = vpack.c.b16 %v650, %v626
    %v915 = vpack.c.b16 %v651, %v627
    %v916 = vpack.c.b16 %v652, %v628
    %v917 = vpack.c.b16 %v653, %v629
    %v918 = vpack.c.b16 %v654, %v630
    %v919 = vpack.c.b16 %v679, %v655
    %v920 = vpack.c.b16 %v680, %v656
    %v921 = vpack.c.b16 %v681, %v657
    %v922 = vpack.c.b16 %v682, %v658
    %v923 = vpack.c.b16 %v683, %v659
    %v924 = vpack.c.b16 %v684, %v660
    %v925 = vpack.c.b16 %v685, %v661
    %v926 = vpack.c.b16 %v686, %v662
    %v927 = vpack.c.b16 %v687, %v663
    %v928 = vpack.c.b16 %v688, %v664
    %v929 = vpack.c.b16 %v689, %v665
    %v930 = vpack.c.b16 %v690, %v666
    %v931 = vpack.c.b16 %v691, %v667
    %v932 = vpack.c.b16 %v692, %v668
    %v933 = vpack.c.b16 %v693, %v669
    %v934 = vpack.c.b16 %v694, %v670
    %v935 = vpack.c.b16 %v695, %v671
    %v936 = vpack.c.b16 %v696, %v672
    %v937 = vpack.c.b16 %v697, %v673
    %v938 = vpack.c.b16 %v698, %v674
    %v939 = vpack.c.b16 %v699, %v675
    %v940 = vpack.c.b16 %v700, %v676
    %v941 = vpack.c.b16 %v701, %v677
    %v942 = vpack.c.b16 %v702, %v678
    %v943 = vpack.c.b16 %v727, %v703
    %v944 = vpack.c.b16 %v728, %v704
    %v945 = vpack.c.b16 %v729, %v705
    %v946 = vpack.c.b16 %v730, %v706
    %v947 = vpack.c.b16 %v731, %v707
    %v948 = vpack.c.b16 %v732, %v708
    %v949 = vpack.c.b16 %v733, %v709
    %v950 = vpack.c.b16 %v734, %v710
    %v951 = vpack.c.b16 %v735, %v711
    %v952 = vpack.c.b16 %v736, %v712
    %v953 = vpack.c.b16 %v737, %v713
    %v954 = vpack.c.b16 %v738, %v714
    %v955 = vpack.c.b16 %v739, %v715
    %v956 = vpack.c.b16 %v740, %v716
    %v957 = vpack.c.b16 %v741, %v717
    %v958 = vpack.c.b16 %v742, %v718
    %v959 = vpack.c.b16 %v743, %v719
    %v960 = vpack.c.b16 %v744, %v720
    %v961 = vpack.c.b16 %v745, %v721
    %v962 = vpack.c.b16 %v746, %v722
    %v963 = vpack.c.b16 %v747, %v723
    %v964 = vpack.c.b16 %v748, %v724
    %v965 = vpack.c.b16 %v749, %v725
    %v966 = vpack.c.b16 %v750, %v726
    %v967 = vpack.c.b16 %v775, %v751
    %v968 = vpack.c.b16 %v776, %v752
    %v969 = vpack.c.b16 %v777, %v753
    %v970 = vpack.c.b16 %v778, %v754
    %v971 = vpack.c.b16 %v779, %v755
    %v972 = vpack.c.b16 %v780, %v756
    %v973 = vpack.c.b16 %v781, %v757
    %v974 = vpack.c.b16 %v782, %v758
    %v975 = vpack.c.b16 %v783, %v759
    %v976 = vpack.c.b16 %v784, %v760
    %v977 = vpack.c.b16 %v785, %v761
    %v978 = vpack.c.b16 %v786, %v762
    %v979 = vpack.c.b16 %v787, %v763
    %v980 = vpack.c.b16 %v788, %v764
    %v981 = vpack.c.b16 %v789, %v765
    %v982 = vpack.c.b16 %v790, %v766
    %v983 = vpack.c.b16 %v791, %v767
    %v984 = vpack.c.b16 %v792, %v768
    %v985 = vpack.c.b16 %v793, %v769
    %v986 = vpack.c.b16 %v794, %v770
    %v987 = vpack.c.b16 %v795, %v771
    %v988 = vpack.c.b16 %v796, %v772
    %v989 = vpack.c.b16 %v797, %v773
    %v990 = vpack.c.b16 %v798, %v774
    %1183 = vmatprep.subr.bf16.mxu0 %v800
    %1184 = vmatpush1.bf16.msra.mxu0 %v799
    %1185 = vmatprep.subr.bf16.mxu0 %v824
    %1186 = vmatpush1.bf16.msra.mxu0 %v823
    %1187 = vmatprep.subr.bf16.mxu0 %v848
    %1188 = vmatpush1.bf16.msra.mxu0 %v847
    %1189 = vmatprep.subr.bf16.mxu0 %v872
    %1190 = vmatpush1.bf16.msra.mxu0 %v871
    %1191 = vmatprep.subr.bf16.mxu0 %v896
    %1192 = vmatpush1.bf16.msra.mxu0 %v895
    %1193 = vmatprep.subr.bf16.mxu0 %v920
    %1194 = vmatpush1.bf16.msra.mxu0 %v919
    %1195 = vmatprep.subr.bf16.mxu0 %v944
    %1196 = vmatpush1.bf16.msra.mxu0 %v943
    %1197 = vmatprep.subr.bf16.mxu0 %v968
    %1198 = vmatpush1.bf16.msra.mxu0 %v967
    %1199 = vmatprep.subr.bf16.mxu0 0
    %1200 = vmatpush1.bf16.msra.mxu0 0
    %1201 = vmatprep.subr.bf16.mxu0 0
    %1202 = vmatpush1.bf16.msra.mxu0 0
    %1203 = vmatprep.subr.bf16.mxu0 0
    %1204 = vmatpush1.bf16.msra.mxu0 0
    %1205 = vmatprep.subr.bf16.mxu0 0
    %1206 = vmatpush1.bf16.msra.mxu0 0
    %1207 = vmatprep.subr.bf16.mxu0 0
    %1208 = vmatpush1.bf16.msra.mxu0 0
    %1209 = vmatprep.subr.bf16.mxu0 0
    %1210 = vmatpush1.bf16.msra.mxu0 0
    %1211 = vmatprep.subr.bf16.mxu0 0
    %1212 = vmatpush1.bf16.msra.mxu0 0
    %1213 = vmatprep.subr.bf16.mxu0 0
    %1214 = vmatpush1.bf16.msra.mxu0 0
    %1215 = vmatprep.mubr.bf16.mxu0 0
    %1216 = vmatmul.mubr.bf16.gmra.mrb[0].mxu0 %v30
    %v1217 = vpop.f32.mrb[0].mxu0
    %v1218 = vadd.f32 0.0, %v1217
    %v1219 = vpop.f32.mrb[0].mxu0
    %v1220 = vadd.f32 0.0, %v1219
    %v1221 = vpop.f32.mrb[0].mxu0
    %v1222 = vpop.f32.mrb[0].mxu0
    %1223 = vdwg.mxu0
    %1224 = vmatprep.subr.bf16.mxu0 %v802
    %1225 = vmatpush1.bf16.msra.mxu0 %v801
    %1226 = vmatprep.subr.bf16.mxu0 %v826
    %1227 = vmatpush1.bf16.msra.mxu0 %v825
    %1228 = vmatprep.subr.bf16.mxu0 %v850
    %1229 = vmatpush1.bf16.msra.mxu0 %v849
    %1230 = vmatprep.subr.bf16.mxu0 %v874
    %1231 = vmatpush1.bf16.msra.mxu0 %v873
    %1232 = vmatprep.subr.bf16.mxu0 %v898
    %1233 = vmatpush1.bf16.msra.mxu0 %v897
    %1234 = vmatprep.subr.bf16.mxu0 %v922
    %1235 = vmatpush1.bf16.msra.mxu0 %v921
    %1236 = vmatprep.subr.bf16.mxu0 %v946
    %1237 = vmatpush1.bf16.msra.mxu0 %v945
    %1238 = vmatprep.subr.bf16.mxu0 %v970
    %1239 = vmatpush1.bf16.msra.mxu0 %v969
    %1240 = vmatprep.subr.bf16.mxu0 0
    %1241 = vmatpush1.bf16.msra.mxu0 0
    %1242 = vmatprep.subr.bf16.mxu0 0
    %1243 = vmatpush1.bf16.msra.mxu0 0
    %1244 = vmatprep.subr.bf16.mxu0 0
    %1245 = vmatpush1.bf16.msra.mxu0 0
    %1246 = vmatprep.subr.bf16.mxu0 0
    %1247 = vmatpush1.bf16.msra.mxu0 0
    %1248 = vmatprep.subr.bf16.mxu0 0
    %1249 = vmatpush1.bf16.msra.mxu0 0
    %1250 = vmatprep.subr.bf16.mxu0 0
    %1251 = vmatpush1.bf16.msra.mxu0 0
    %1252 = vmatprep.subr.bf16.mxu0 0
    %1253 = vmatpush1.bf16.msra.mxu0 0
    %1254 = vmatprep.subr.bf16.mxu0 0
    %1255 = vmatpush1.bf16.msra.mxu0 0
    %1256 = vmatprep.mubr.bf16.mxu0 0
    %1257 = vmatmul.mubr.bf16.gmra.mrb[0].mxu0 %v30
    %v1258 = vpop.f32.mrb[0].mxu0
    %v1259 = vadd.f32 0.0, %v1258
    %v1260 = vpop.f32.mrb[0].mxu0
    %v1261 = vadd.f32 0.0, %v1260
    %v1262 = vpop.f32.mrb[0].mxu0
    %v1263 = vpop.f32.mrb[0].mxu0
    %1264 = vdwg.mxu0
    %1265 = vmatprep.subr.bf16.mxu0 %v804
    %1266 = vmatpush1.bf16.msra.mxu0 %v803
    %1267 = vmatprep.subr.bf16.mxu0 %v828
    %1268 = vmatpush1.bf16.msra.mxu0 %v827
    %1269 = vmatprep.subr.bf16.mxu0 %v852
    %1270 = vmatpush1.bf16.msra.mxu0 %v851
    %1271 = vmatprep.subr.bf16.mxu0 %v876
    %1272 = vmatpush1.bf16.msra.mxu0 %v875
    %1273 = vmatprep.subr.bf16.mxu0 %v900
    %1274 = vmatpush1.bf16.msra.mxu0 %v899
    %1275 = vmatprep.subr.bf16.mxu0 %v924
    %1276 = vmatpush1.bf16.msra.mxu0 %v923
    %1277 = vmatprep.subr.bf16.mxu0 %v948
    %1278 = vmatpush1.bf16.msra.mxu0 %v947
    %1279 = vmatprep.subr.bf16.mxu0 %v972
    %1280 = vmatpush1.bf16.msra.mxu0 %v971
    %1281 = vmatprep.subr.bf16.mxu0 0
    %1282 = vmatpush1.bf16.msra.mxu0 0
    %1283 = vmatprep.subr.bf16.mxu0 0
    %1284 = vmatpush1.bf16.msra.mxu0 0
    %1285 = vmatprep.subr.bf16.mxu0 0
    %1286 = vmatpush1.bf16.msra.mxu0 0
    %1287 = vmatprep.subr.bf16.mxu0 0
    %1288 = vmatpush1.bf16.msra.mxu0 0
    %1289 = vmatprep.subr.bf16.mxu0 0
    %1290 = vmatpush1.bf16.msra.mxu0 0
    %1291 = vmatprep.subr.bf16.mxu0 0
    %1292 = vmatpush1.bf16.msra.mxu0 0
    %1293 = vmatprep.subr.bf16.mxu0 0
    %1294 = vmatpush1.bf16.msra.mxu0 0
    %1295 = vmatprep.subr.bf16.mxu0 0
    %1296 = vmatpush1.bf16.msra.mxu0 0
    %1297 = vmatprep.mubr.bf16.mxu0 0
    %1298 = vmatmul.mubr.bf16.gmra.mrb[0].mxu0 %v30
    %v1299 = vpop.f32.mrb[0].mxu0
    %v1300 = vadd.f32 0.0, %v1299
    %v1301 = vpop.f32.mrb[0].mxu0
    %v1302 = vadd.f32 0.0, %v1301
    %v1303 = vpop.f32.mrb[0].mxu0
    %v1304 = vpop.f32.mrb[0].mxu0
    %1305 = vdwg.mxu0
    %1306 = vmatprep.subr.bf16.mxu0 %v806
    %1307 = vmatpush1.bf16.msra.mxu0 %v805
    %1308 = vmatprep.subr.bf16.mxu0 %v830
    %1309 = vmatpush1.bf16.msra.mxu0 %v829
    %1310 = vmatprep.subr.bf16.mxu0 %v854
    %1311 = vmatpush1.bf16.msra.mxu0 %v853
    %1312 = vmatprep.subr.bf16.mxu0 %v878
    %1313 = vmatpush1.bf16.msra.mxu0 %v877
    %1314 = vmatprep.subr.bf16.mxu0 %v902
    %1315 = vmatpush1.bf16.msra.mxu0 %v901
    %1316 = vmatprep.subr.bf16.mxu0 %v926
    %1317 = vmatpush1.bf16.msra.mxu0 %v925
    %1318 = vmatprep.subr.bf16.mxu0 %v950
    %1319 = vmatpush1.bf16.msra.mxu0 %v949
    %1320 = vmatprep.subr.bf16.mxu0 %v974
    %1321 = vmatpush1.bf16.msra.mxu0 %v973
    %1322 = vmatprep.subr.bf16.mxu0 0
    %1323 = vmatpush1.bf16.msra.mxu0 0
    %1324 = vmatprep.subr.bf16.mxu0 0
    %1325 = vmatpush1.bf16.msra.mxu0 0
    %1326 = vmatprep.subr.bf16.mxu0 0
    %1327 = vmatpush1.bf16.msra.mxu0 0
    %1328 = vmatprep.subr.bf16.mxu0 0
    %1329 = vmatpush1.bf16.msra.mxu0 0
    %1330 = vmatprep.subr.bf16.mxu0 0
    %1331 = vmatpush1.bf16.msra.mxu0 0
    %1332 = vmatprep.subr.bf16.mxu0 0
    %1333 = vmatpush1.bf16.msra.mxu0 0
    %1334 = vmatprep.subr.bf16.mxu0 0
    %1335 = vmatpush1.bf16.msra.mxu0 0
    %1336 = vmatprep.subr.bf16.mxu0 0
    %1337 = vmatpush1.bf16.msra.mxu0 0
    %1338 = vmatprep.mubr.bf16.mxu0 0
    %1339 = vmatmul.mubr.bf16.gmra.mrb[0].mxu0 %v30
    %v1340 = vpop.f32.mrb[0].mxu0
    %v1341 = vadd.f32 0.0, %v1340
    %v1342 = vpop.f32.mrb[0].mxu0
    %v1343 = vadd.f32 0.0, %v1342
    %v1344 = vpop.f32.mrb[0].mxu0
    %v1345 = vpop.f32.mrb[0].mxu0
    %1346 = vdwg.mxu0
    %1347 = vmatprep.subr.bf16.mxu0 %v808
    %1348 = vmatpush1.bf16.msra.mxu0 %v807
    %1349 = vmatprep.subr.bf16.mxu0 %v832
    %1350 = vmatpush1.bf16.msra.mxu0 %v831
    %1351 = vmatprep.subr.bf16.mxu0 %v856
    %1352 = vmatpush1.bf16.msra.mxu0 %v855
    %1353 = vmatprep.subr.bf16.mxu0 %v880
    %1354 = vmatpush1.bf16.msra.mxu0 %v879
    %1355 = vmatprep.subr.bf16.mxu0 %v904
    %1356 = vmatpush1.bf16.msra.mxu0 %v903
    %1357 = vmatprep.subr.bf16.mxu0 %v928
    %1358 = vmatpush1.bf16.msra.mxu0 %v927
    %1359 = vmatprep.subr.bf16.mxu0 %v952
    %1360 = vmatpush1.bf16.msra.mxu0 %v951
    %1361 = vmatprep.subr.bf16.mxu0 %v976
    %1362 = vmatpush1.bf16.msra.mxu0 %v975
    %1363 = vmatprep.subr.bf16.mxu0 0
    %1364 = vmatpush1.bf16.msra.mxu0 0
    %1365 = vmatprep.subr.bf16.mxu0 0
    %1366 = vmatpush1.bf16.msra.mxu0 0
    %1367 = vmatprep.subr.bf16.mxu0 0
    %1368 = vmatpush1.bf16.msra.mxu0 0
    %1369 = vmatprep.subr.bf16.mxu0 0
    %1370 = vmatpush1.bf16.msra.mxu0 0
    %1371 = vmatprep.subr.bf16.mxu0 0
    %1372 = vmatpush1.bf16.msra.mxu0 0
    %1373 = vmatprep.subr.bf16.mxu0 0
    %1374 = vmatpush1.bf16.msra.mxu0 0
    %1375 = vmatprep.subr.bf16.mxu0 0
    %1376 = vmatpush1.bf16.msra.mxu0 0
    %1377 = vmatprep.subr.bf16.mxu0 0
    %1378 = vmatpush1.bf16.msra.mxu0 0
    %1379 = vmatprep.mubr.bf16.mxu0 0
    %1380 = vmatmul.mubr.bf16.gmra.mrb[0].mxu0 %v30
    %v1381 = vpop.f32.mrb[0].mxu0
    %v1382 = vadd.f32 0.0, %v1381
    %v1383 = vpop.f32.mrb[0].mxu0
    %v1384 = vadd.f32 0.0, %v1383
    %v1385 = vpop.f32.mrb[0].mxu0
    %v1386 = vpop.f32.mrb[0].mxu0
    %1387 = vdwg.mxu0
    %1388 = vmatprep.subr.bf16.mxu0 %v810
    %1389 = vmatpush1.bf16.msra.mxu0 %v809
    %1390 = vmatprep.subr.bf16.mxu0 %v834
    %1391 = vmatpush1.bf16.msra.mxu0 %v833
    %1392 = vmatprep.subr.bf16.mxu0 %v858
    %1393 = vmatpush1.bf16.msra.mxu0 %v857
    %1394 = vmatprep.subr.bf16.mxu0 %v882
    %1395 = vmatpush1.bf16.msra.mxu0 %v881
    %1396 = vmatprep.subr.bf16.mxu0 %v906
    %1397 = vmatpush1.bf16.msra.mxu0 %v905
    %1398 = vmatprep.subr.bf16.mxu0 %v930
    %1399 = vmatpush1.bf16.msra.mxu0 %v929
    %1400 = vmatprep.subr.bf16.mxu0 %v954
    %1401 = vmatpush1.bf16.msra.mxu0 %v953
    %1402 = vmatprep.subr.bf16.mxu0 %v978
    %1403 = vmatpush1.bf16.msra.mxu0 %v977
    %1404 = vmatprep.subr.bf16.mxu0 0
    %1405 = vmatpush1.bf16.msra.mxu0 0
    %1406 = vmatprep.subr.bf16.mxu0 0
    %1407 = vmatpush1.bf16.msra.mxu0 0
    %1408 = vmatprep.subr.bf16.mxu0 0
    %1409 = vmatpush1.bf16.msra.mxu0 0
    %1410 = vmatprep.subr.bf16.mxu0 0
    %1411 = vmatpush1.bf16.msra.mxu0 0
    %1412 = vmatprep.subr.bf16.mxu0 0
    %1413 = vmatpush1.bf16.msra.mxu0 0
    %1414 = vmatprep.subr.bf16.mxu0 0
    %1415 = vmatpush1.bf16.msra.mxu0 0
    %1416 = vmatprep.subr.bf16.mxu0 0
    %1417 = vmatpush1.bf16.msra.mxu0 0
    %1418 = vmatprep.subr.bf16.mxu0 0
    %1419 = vmatpush1.bf16.msra.mxu0 0
    %1420 = vmatprep.mubr.bf16.mxu0 0
    %1421 = vmatmul.mubr.bf16.gmra.mrb[0].mxu0 %v30
    %v1422 = vpop.f32.mrb[0].mxu0
    %v1423 = vadd.f32 0.0, %v1422
    %v1424 = vpop.f32.mrb[0].mxu0
    %v1425 = vadd.f32 0.0, %v1424
    %v1426 = vpop.f32.mrb[0].mxu0
    %v1427 = vpop.f32.mrb[0].mxu0
    %1428 = vdwg.mxu0
    %1429 = vmatprep.subr.bf16.mxu0 %v812
    %1430 = vmatpush1.bf16.msra.mxu0 %v811
    %1431 = vmatprep.subr.bf16.mxu0 %v836
    %1432 = vmatpush1.bf16.msra.mxu0 %v835
    %1433 = vmatprep.subr.bf16.mxu0 %v860
    %1434 = vmatpush1.bf16.msra.mxu0 %v859
    %1435 = vmatprep.subr.bf16.mxu0 %v884
    %1436 = vmatpush1.bf16.msra.mxu0 %v883
    %1437 = vmatprep.subr.bf16.mxu0 %v908
    %1438 = vmatpush1.bf16.msra.mxu0 %v907
    %1439 = vmatprep.subr.bf16.mxu0 %v932
    %1440 = vmatpush1.bf16.msra.mxu0 %v931
    %1441 = vmatprep.subr.bf16.mxu0 %v956
    %1442 = vmatpush1.bf16.msra.mxu0 %v955
    %1443 = vmatprep.subr.bf16.mxu0 %v980
    %1444 = vmatpush1.bf16.msra.mxu0 %v979
    %1445 = vmatprep.subr.bf16.mxu0 0
    %1446 = vmatpush1.bf16.msra.mxu0 0
    %1447 = vmatprep.subr.bf16.mxu0 0
    %1448 = vmatpush1.bf16.msra.mxu0 0
    %1449 = vmatprep.subr.bf16.mxu0 0
    %1450 = vmatpush1.bf16.msra.mxu0 0
    %1451 = vmatprep.subr.bf16.mxu0 0
    %1452 = vmatpush1.bf16.msra.mxu0 0
    %1453 = vmatprep.subr.bf16.mxu0 0
    %1454 = vmatpush1.bf16.msra.mxu0 0
    %1455 = vmatprep.subr.bf16.mxu0 0
    %1456 = vmatpush1.bf16.msra.mxu0 0
    %1457 = vmatprep.subr.bf16.mxu0 0
    %1458 = vmatpush1.bf16.msra.mxu0 0
    %1459 = vmatprep.subr.bf16.mxu0 0
    %1460 = vmatpush1.bf16.msra.mxu0 0
    %1461 = vmatprep.mubr.bf16.mxu0 0
    %1462 = vmatmul.mubr.bf16.gmra.mrb[0].mxu0 %v30
    %v1463 = vpop.f32.mrb[0].mxu0
    %v1464 = vadd.f32 0.0, %v1463
    %v1465 = vpop.f32.mrb[0].mxu0
    %v1466 = vadd.f32 0.0, %v1465
    %v1467 = vpop.f32.mrb[0].mxu0
    %v1468 = vpop.f32.mrb[0].mxu0
    %1469 = vdwg.mxu0
    %1470 = vmatprep.subr.bf16.mxu0 %v814
    %1471 = vmatpush1.bf16.msra.mxu0 %v813
    %1472 = vmatprep.subr.bf16.mxu0 %v838
    %1473 = vmatpush1.bf16.msra.mxu0 %v837
    %1474 = vmatprep.subr.bf16.mxu0 %v862
    %1475 = vmatpush1.bf16.msra.mxu0 %v861
    %1476 = vmatprep.subr.bf16.mxu0 %v886
    %1477 = vmatpush1.bf16.msra.mxu0 %v885
    %1478 = vmatprep.subr.bf16.mxu0 %v910
    %1479 = vmatpush1.bf16.msra.mxu0 %v909
    %1480 = vmatprep.subr.bf16.mxu0 %v934
    %1481 = vmatpush1.bf16.msra.mxu0 %v933
    %1482 = vmatprep.subr.bf16.mxu0 %v958
    %1483 = vmatpush1.bf16.msra.mxu0 %v957
    %1484 = vmatprep.subr.bf16.mxu0 %v982
    %1485 = vmatpush1.bf16.msra.mxu0 %v981
    %1486 = vmatprep.subr.bf16.mxu0 0
    %1487 = vmatpush1.bf16.msra.mxu0 0
    %1488 = vmatprep.subr.bf16.mxu0 0
    %1489 = vmatpush1.bf16.msra.mxu0 0
    %1490 = vmatprep.subr.bf16.mxu0 0
    %1491 = vmatpush1.bf16.msra.mxu0 0
    %1492 = vmatprep.subr.bf16.mxu0 0
    %1493 = vmatpush1.bf16.msra.mxu0 0
    %1494 = vmatprep.subr.bf16.mxu0 0
    %1495 = vmatpush1.bf16.msra.mxu0 0
    %1496 = vmatprep.subr.bf16.mxu0 0
    %1497 = vmatpush1.bf16.msra.mxu0 0
    %1498 = vmatprep.subr.bf16.mxu0 0
    %1499 = vmatpush1.bf16.msra.mxu0 0
    %1500 = vmatprep.subr.bf16.mxu0 0
    %1501 = vmatpush1.bf16.msra.mxu0 0
    %1502 = vmatprep.mubr.bf16.mxu0 0
    %1503 = vmatmul.mubr.bf16.gmra.mrb[0].mxu0 %v30
    %v1504 = vpop.f32.mrb[0].mxu0
    %v1505 = vadd.f32 0.0, %v1504
    %v1506 = vpop.f32.mrb[0].mxu0
    %v1507 = vadd.f32 0.0, %v1506
    %v1508 = vpop.f32.mrb[0].mxu0
    %v1509 = vpop.f32.mrb[0].mxu0
    %1510 = vdwg.mxu0
    %1511 = vmatprep.subr.bf16.mxu0 %v816
    %1512 = vmatpush1.bf16.msra.mxu0 %v815
    %1513 = vmatprep.subr.bf16.mxu0 %v840
    %1514 = vmatpush1.bf16.msra.mxu0 %v839
    %1515 = vmatprep.subr.bf16.mxu0 %v864
    %1516 = vmatpush1.bf16.msra.mxu0 %v863
    %1517 = vmatprep.subr.bf16.mxu0 %v888
    %1518 = vmatpush1.bf16.msra.mxu0 %v887
    %1519 = vmatprep.subr.bf16.mxu0 %v912
    %1520 = vmatpush1.bf16.msra.mxu0 %v911
    %1521 = vmatprep.subr.bf16.mxu0 %v936
    %1522 = vmatpush1.bf16.msra.mxu0 %v935
    %1523 = vmatprep.subr.bf16.mxu0 %v960
    %1524 = vmatpush1.bf16.msra.mxu0 %v959
    %1525 = vmatprep.subr.bf16.mxu0 %v984
    %1526 = vmatpush1.bf16.msra.mxu0 %v983
    %1527 = vmatprep.subr.bf16.mxu0 0
    %1528 = vmatpush1.bf16.msra.mxu0 0
    %1529 = vmatprep.subr.bf16.mxu0 0
    %1530 = vmatpush1.bf16.msra.mxu0 0
    %1531 = vmatprep.subr.bf16.mxu0 0
    %1532 = vmatpush1.bf16.msra.mxu0 0
    %1533 = vmatprep.subr.bf16.mxu0 0
    %1534 = vmatpush1.bf16.msra.mxu0 0
    %1535 = vmatprep.subr.bf16.mxu0 0
    %1536 = vmatpush1.bf16.msra.mxu0 0
    %1537 = vmatprep.subr.bf16.mxu0 0
    %1538 = vmatpush1.bf16.msra.mxu0 0
    %1539 = vmatprep.subr.bf16.mxu0 0
    %1540 = vmatpush1.bf16.msra.mxu0 0
    %1541 = vmatprep.subr.bf16.mxu0 0
    %1542 = vmatpush1.bf16.msra.mxu0 0
    %1543 = vmatprep.mubr.bf16.mxu0 0
    %1544 = vmatmul.mubr.bf16.gmra.mrb[0].mxu0 %v30
    %v1545 = vpop.f32.mrb[0].mxu0
    %v1546 = vadd.f32 0.0, %v1545
    %v1547 = vpop.f32.mrb[0].mxu0
    %v1548 = vadd.f32 0.0, %v1547
    %v1549 = vpop.f32.mrb[0].mxu0
    %v1550 = vpop.f32.mrb[0].mxu0
    %1551 = vdwg.mxu0
    %1552 = vmatprep.subr.bf16.mxu0 %v818
    %1553 = vmatpush1.bf16.msra.mxu0 %v817
    %1554 = vmatprep.subr.bf16.mxu0 %v842
    %1555 = vmatpush1.bf16.msra.mxu0 %v841
    %1556 = vmatprep.subr.bf16.mxu0 %v866
    %1557 = vmatpush1.bf16.msra.mxu0 %v865
    %1558 = vmatprep.subr.bf16.mxu0 %v890
    %1559 = vmatpush1.bf16.msra.mxu0 %v889
    %1560 = vmatprep.subr.bf16.mxu0 %v914
    %1561 = vmatpush1.bf16.msra.mxu0 %v913
    %1562 = vmatprep.subr.bf16.mxu0 %v938
    %1563 = vmatpush1.bf16.msra.mxu0 %v937
    %1564 = vmatprep.subr.bf16.mxu0 %v962
    %1565 = vmatpush1.bf16.msra.mxu0 %v961
    %1566 = vmatprep.subr.bf16.mxu0 %v986
    %1567 = vmatpush1.bf16.msra.mxu0 %v985
    %1568 = vmatprep.subr.bf16.mxu0 0
    %1569 = vmatpush1.bf16.msra.mxu0 0
    %1570 = vmatprep.subr.bf16.mxu0 0
    %1571 = vmatpush1.bf16.msra.mxu0 0
    %1572 = vmatprep.subr.bf16.mxu0 0
    %1573 = vmatpush1.bf16.msra.mxu0 0
    %1574 = vmatprep.subr.bf16.mxu0 0
    %1575 = vmatpush1.bf16.msra.mxu0 0
    %1576 = vmatprep.subr.bf16.mxu0 0
    %1577 = vmatpush1.bf16.msra.mxu0 0
    %1578 = vmatprep.subr.bf16.mxu0 0
    %1579 = vmatpush1.bf16.msra.mxu0 0
    %1580 = vmatprep.subr.bf16.mxu0 0
    %1581 = vmatpush1.bf16.msra.mxu0 0
    %1582 = vmatprep.subr.bf16.mxu0 0
    %1583 = vmatpush1.bf16.msra.mxu0 0
    %1584 = vmatprep.mubr.bf16.mxu0 0
    %1585 = vmatmul.mubr.bf16.gmra.mrb[0].mxu0 %v30
    %v1586 = vpop.f32.mrb[0].mxu0
    %v1587 = vadd.f32 0.0, %v1586
    %v1588 = vpop.f32.mrb[0].mxu0
    %v1589 = vadd.f32 0.0, %v1588
    %v1590 = vpop.f32.mrb[0].mxu0
    %v1591 = vpop.f32.mrb[0].mxu0
    %1592 = vdwg.mxu0
    %1593 = vmatprep.subr.bf16.mxu0 %v820
    %1594 = vmatpush1.bf16.msra.mxu0 %v819
    %1595 = vmatprep.subr.bf16.mxu0 %v844
    %1596 = vmatpush1.bf16.msra.mxu0 %v843
    %1597 = vmatprep.subr.bf16.mxu0 %v868
    %1598 = vmatpush1.bf16.msra.mxu0 %v867
    %1599 = vmatprep.subr.bf16.mxu0 %v892
    %1600 = vmatpush1.bf16.msra.mxu0 %v891
    %1601 = vmatprep.subr.bf16.mxu0 %v916
    %1602 = vmatpush1.bf16.msra.mxu0 %v915
    %1603 = vmatprep.subr.bf16.mxu0 %v940
    %1604 = vmatpush1.bf16.msra.mxu0 %v939
    %1605 = vmatprep.subr.bf16.mxu0 %v964
    %1606 = vmatpush1.bf16.msra.mxu0 %v963
    %1607 = vmatprep.subr.bf16.mxu0 %v988
    %1608 = vmatpush1.bf16.msra.mxu0 %v987
    %1609 = vmatprep.subr.bf16.mxu0 0
    %1610 = vmatpush1.bf16.msra.mxu0 0
    %1611 = vmatprep.subr.bf16.mxu0 0
    %1612 = vmatpush1.bf16.msra.mxu0 0
    %1613 = vmatprep.subr.bf16.mxu0 0
    %1614 = vmatpush1.bf16.msra.mxu0 0
    %1615 = vmatprep.subr.bf16.mxu0 0
    %1616 = vmatpush1.bf16.msra.mxu0 0
    %1617 = vmatprep.subr.bf16.mxu0 0
    %1618 = vmatpush1.bf16.msra.mxu0 0
    %1619 = vmatprep.subr.bf16.mxu0 0
    %1620 = vmatpush1.bf16.msra.mxu0 0
    %1621 = vmatprep.subr.bf16.mxu0 0
    %1622 = vmatpush1.bf16.msra.mxu0 0
    %1623 = vmatprep.subr.bf16.mxu0 0
    %1624 = vmatpush1.bf16.msra.mxu0 0
    %1625 = vmatprep.mubr.bf16.mxu0 0
    %1626 = vmatmul.mubr.bf16.gmra.mrb[0].mxu0 %v30
    %v1627 = vpop.f32.mrb[0].mxu0
    %v1628 = vadd.f32 0.0, %v1627
    %v1629 = vpop.f32.mrb[0].mxu0
    %v1630 = vadd.f32 0.0, %v1629
    %v1631 = vpop.f32.mrb[0].mxu0
    %v1632 = vpop.f32.mrb[0].mxu0
    %1633 = vdwg.mxu0
    %1634 = vmatprep.subr.bf16.mxu0 %v822
    %1635 = vmatpush1.bf16.msra.mxu0 %v821
    %1636 = vmatprep.subr.bf16.mxu0 %v846
    %1637 = vmatpush1.bf16.msra.mxu0 %v845
    %1638 = vmatprep.subr.bf16.mxu0 %v870
    %1639 = vmatpush1.bf16.msra.mxu0 %v869
    %1640 = vmatprep.subr.bf16.mxu0 %v894
    %1641 = vmatpush1.bf16.msra.mxu0 %v893
    %1642 = vmatprep.subr.bf16.mxu0 %v918
    %1643 = vmatpush1.bf16.msra.mxu0 %v917
    %1644 = vmatprep.subr.bf16.mxu0 %v942
    %1645 = vmatpush1.bf16.msra.mxu0 %v941
    %1646 = vmatprep.subr.bf16.mxu0 %v966
    %1647 = vmatpush1.bf16.msra.mxu0 %v965
    %1648 = vmatprep.subr.bf16.mxu0 %v990
    %1649 = vmatpush1.bf16.msra.mxu0 %v989
    %1650 = vmatprep.subr.bf16.mxu0 0
    %1651 = vmatpush1.bf16.msra.mxu0 0
    %1652 = vmatprep.subr.bf16.mxu0 0
    %1653 = vmatpush1.bf16.msra.mxu0 0
    %1654 = vmatprep.subr.bf16.mxu0 0
    %1655 = vmatpush1.bf16.msra.mxu0 0
    %1656 = vmatprep.subr.bf16.mxu0 0
    %1657 = vmatpush1.bf16.msra.mxu0 0
    %1658 = vmatprep.subr.bf16.mxu0 0
    %1659 = vmatpush1.bf16.msra.mxu0 0
    %1660 = vmatprep.subr.bf16.mxu0 0
    %1661 = vmatpush1.bf16.msra.mxu0 0
    %1662 = vmatprep.subr.bf16.mxu0 0
    %1663 = vmatpush1.bf16.msra.mxu0 0
    %1664 = vmatprep.subr.bf16.mxu0 0
    %1665 = vmatpush1.bf16.msra.mxu0 0
    %1666 = vmatprep.mubr.bf16.mxu0 0
    %1667 = vmatmul.mubr.bf16.gmra.mrb[0].mxu0 %v30
    %v1668 = vpop.f32.mrb[0].mxu0
    %v1669 = vadd.f32 0.0, %v1668
    %v1670 = vpop.f32.mrb[0].mxu0
    %v1671 = vadd.f32 0.0, %v1670
    %v1672 = vpop.f32.mrb[0].mxu0
    %v1673 = vpop.f32.mrb[0].mxu0
    %1674 = vdwg.mxu0
    %v1675 = vld [vmem:[%s2] sm:$0xff]
    %v1676 = vld [vmem:[%s2 + $0x8] sm:$0xff]
    %v1677 = vld [vmem:[%s2 + $0x10] sm:$0xff]
    %v1681 = vlaneseq
    %v1682 = vshrl.u32 %v1681, 7
    %v1683 = vsub.s32 0, %v1682
    %v1684 = vrot.slane %v1675, %v1683
    %v1685 = vlaneseq
    %v1686 = vshrl.u32 %v1685, 7
    %v1687 = vsub.s32 1, %v1686
    %v1688 = vrot.slane %v1675, %v1687
    %v1689 = vlaneseq
    %v1690 = vshrl.u32 %v1689, 7
    %v1691 = vsub.s32 2, %v1690
    %v1692 = vrot.slane %v1675, %v1691
    %v1693 = vlaneseq
    %v1694 = vshrl.u32 %v1693, 7
    %v1695 = vsub.s32 3, %v1694
    %v1696 = vrot.slane %v1675, %v1695
    %v1697 = vlaneseq
    %v1698 = vshrl.u32 %v1697, 7
    %v1699 = vsub.s32 4, %v1698
    %v1700 = vrot.slane %v1675, %v1699
    %v1701 = vlaneseq
    %v1702 = vshrl.u32 %v1701, 7
    %v1703 = vsub.s32 5, %v1702
    %v1704 = vrot.slane %v1675, %v1703
    %v1705 = vlaneseq
    %v1706 = vshrl.u32 %v1705, 7
    %v1707 = vsub.s32 6, %v1706
    %v1708 = vrot.slane %v1675, %v1707
    %v1709 = vlaneseq
    %v1710 = vshrl.u32 %v1709, 7
    %v1711 = vsub.s32 7, %v1710
    %v1712 = vrot.slane %v1675, %v1711
    %v1713 = vlaneseq
    %v1714 = vshrl.u32 %v1713, 7
    %v1715 = vsub.s32 0, %v1714
    %v1716 = vrot.slane %v1676, %v1715
    %v1717 = vlaneseq
    %v1718 = vshrl.u32 %v1717, 7
    %v1719 = vsub.s32 1, %v1718
    %v1720 = vrot.slane %v1676, %v1719
    %v1721 = vlaneseq
    %v1722 = vshrl.u32 %v1721, 7
    %v1723 = vsub.s32 2, %v1722
    %v1724 = vrot.slane %v1676, %v1723
    %v1725 = vlaneseq
    %v1726 = vshrl.u32 %v1725, 7
    %v1727 = vsub.s32 3, %v1726
    %v1728 = vrot.slane %v1676, %v1727
    %v1729 = vlaneseq
    %v1730 = vshrl.u32 %v1729, 7
    %v1731 = vsub.s32 4, %v1730
    %v1732 = vrot.slane %v1676, %v1731
    %v1733 = vlaneseq
    %v1734 = vshrl.u32 %v1733, 7
    %v1735 = vsub.s32 5, %v1734
    %v1736 = vrot.slane %v1676, %v1735
    %v1737 = vlaneseq
    %v1738 = vshrl.u32 %v1737, 7
    %v1739 = vsub.s32 6, %v1738
    %v1740 = vrot.slane %v1676, %v1739
    %v1741 = vlaneseq
    %v1742 = vshrl.u32 %v1741, 7
    %v1743 = vsub.s32 7, %v1742
    %v1744 = vrot.slane %v1676, %v1743
    %v1745 = vlaneseq
    %v1746 = vshrl.u32 %v1745, 7
    %v1747 = vsub.s32 0, %v1746
    %v1748 = vrot.slane %v1677, %v1747
    %v1749 = vlaneseq
    %v1750 = vshrl.u32 %v1749, 7
    %v1751 = vsub.s32 1, %v1750
    %v1752 = vrot.slane %v1677, %v1751
    %v1753 = vlaneseq
    %v1754 = vshrl.u32 %v1753, 7
    %v1755 = vsub.s32 2, %v1754
    %v1756 = vrot.slane %v1677, %v1755
    %v1757 = vlaneseq
    %v1758 = vshrl.u32 %v1757, 7
    %v1759 = vsub.s32 3, %v1758
    %v1760 = vrot.slane %v1677, %v1759
    %v1761 = vlaneseq
    %v1762 = vshrl.u32 %v1761, 7
    %v1763 = vsub.s32 4, %v1762
    %v1764 = vrot.slane %v1677, %v1763
    %v1765 = vlaneseq
    %v1766 = vshrl.u32 %v1765, 7
    %v1767 = vsub.s32 5, %v1766
    %v1768 = vrot.slane %v1677, %v1767
    %v1769 = vlaneseq
    %v1770 = vshrl.u32 %v1769, 7
    %v1771 = vsub.s32 6, %v1770
    %v1772 = vrot.slane %v1677, %v1771
    %v1773 = vlaneseq
    %v1774 = vshrl.u32 %v1773, 7
    %v1775 = vsub.s32 7, %v1774
    %v1776 = vrot.slane %v1677, %v1775
    %v1801 = vmul.f32 %v1218, %v1684
    %v1802 = vmul.f32 %v1220, %v1688
    %v1803 = vmul.f32 %v1259, %v1692
    %v1804 = vmul.f32 %v1261, %v1696
    %v1805 = vmul.f32 %v1300, %v1700
    %v1806 = vmul.f32 %v1302, %v1704
    %v1807 = vmul.f32 %v1341, %v1708
    %v1808 = vmul.f32 %v1343, %v1712
    %v1809 = vmul.f32 %v1382, %v1716
    %v1810 = vmul.f32 %v1384, %v1720
    %v1811 = vmul.f32 %v1423, %v1724
    %v1812 = vmul.f32 %v1425, %v1728
    %v1813 = vmul.f32 %v1464, %v1732
    %v1814 = vmul.f32 %v1466, %v1736
    %v1815 = vmul.f32 %v1505, %v1740
    %v1816 = vmul.f32 %v1507, %v1744
    %v1817 = vmul.f32 %v1546, %v1748
    %v1818 = vmul.f32 %v1548, %v1752
    %v1819 = vmul.f32 %v1587, %v1756
    %v1820 = vmul.f32 %v1589, %v1760
    %v1821 = vmul.f32 %v1628, %v1764
    %v1822 = vmul.f32 %v1630, %v1768
    %v1823 = vmul.f32 %v1669, %v1772
    %v1824 = vmul.f32 %v1671, %v1776
    %v1825 = vld [vmem:[#allocation2] sm:$0xff]
    %v1826 = vld [vmem:[#allocation2 + $0x8] sm:$0xff]
    %v1827 = vld [vmem:[#allocation2 + $0x10] sm:$0xff]
    %v1831 = vlaneseq
    %v1832 = vshrl.u32 %v1831, 7
    %v1833 = vsub.s32 0, %v1832
    %v1834 = vrot.slane %v1825, %v1833
    %v1835 = vlaneseq
    %v1836 = vshrl.u32 %v1835, 7
    %v1837 = vsub.s32 1, %v1836
    %v1838 = vrot.slane %v1825, %v1837
    %v1839 = vlaneseq
    %v1840 = vshrl.u32 %v1839, 7
    %v1841 = vsub.s32 2, %v1840
    %v1842 = vrot.slane %v1825, %v1841
    %v1843 = vlaneseq
    %v1844 = vshrl.u32 %v1843, 7
    %v1845 = vsub.s32 3, %v1844
    %v1846 = vrot.slane %v1825, %v1845
    %v1847 = vlaneseq
    %v1848 = vshrl.u32 %v1847, 7
    %v1849 = vsub.s32 4, %v1848
    %v1850 = vrot.slane %v1825, %v1849
    %v1851 = vlaneseq
    %v1852 = vshrl.u32 %v1851, 7
    %v1853 = vsub.s32 5, %v1852
    %v1854 = vrot.slane %v1825, %v1853
    %v1855 = vlaneseq
    %v1856 = vshrl.u32 %v1855, 7
    %v1857 = vsub.s32 6, %v1856
    %v1858 = vrot.slane %v1825, %v1857
    %v1859 = vlaneseq
    %v1860 = vshrl.u32 %v1859, 7
    %v1861 = vsub.s32 7, %v1860
    %v1862 = vrot.slane %v1825, %v1861
    %v1863 = vlaneseq
    %v1864 = vshrl.u32 %v1863, 7
    %v1865 = vsub.s32 0, %v1864
    %v1866 = vrot.slane %v1826, %v1865
    %v1867 = vlaneseq
    %v1868 = vshrl.u32 %v1867, 7
    %v1869 = vsub.s32 1, %v1868
    %v1870 = vrot.slane %v1826, %v1869
    %v1871 = vlaneseq
    %v1872 = vshrl.u32 %v1871, 7
    %v1873 = vsub.s32 2, %v1872
    %v1874 = vrot.slane %v1826, %v1873
    %v1875 = vlaneseq
    %v1876 = vshrl.u32 %v1875, 7
    %v1877 = vsub.s32 3, %v1876
    %v1878 = vrot.slane %v1826, %v1877
    %v1879 = vlaneseq
    %v1880 = vshrl.u32 %v1879, 7
    %v1881 = vsub.s32 4, %v1880
    %v1882 = vrot.slane %v1826, %v1881
    %v1883 = vlaneseq
    %v1884 = vshrl.u32 %v1883, 7
    %v1885 = vsub.s32 5, %v1884
    %v1886 = vrot.slane %v1826, %v1885
    %v1887 = vlaneseq
    %v1888 = vshrl.u32 %v1887, 7
    %v1889 = vsub.s32 6, %v1888
    %v1890 = vrot.slane %v1826, %v1889
    %v1891 = vlaneseq
    %v1892 = vshrl.u32 %v1891, 7
    %v1893 = vsub.s32 7, %v1892
    %v1894 = vrot.slane %v1826, %v1893
    %v1895 = vlaneseq
    %v1896 = vshrl.u32 %v1895, 7
    %v1897 = vsub.s32 0, %v1896
    %v1898 = vrot.slane %v1827, %v1897
    %v1899 = vlaneseq
    %v1900 = vshrl.u32 %v1899, 7
    %v1901 = vsub.s32 1, %v1900
    %v1902 = vrot.slane %v1827, %v1901
    %v1903 = vlaneseq
    %v1904 = vshrl.u32 %v1903, 7
    %v1905 = vsub.s32 2, %v1904
    %v1906 = vrot.slane %v1827, %v1905
    %v1907 = vlaneseq
    %v1908 = vshrl.u32 %v1907, 7
    %v1909 = vsub.s32 3, %v1908
    %v1910 = vrot.slane %v1827, %v1909
    %v1911 = vlaneseq
    %v1912 = vshrl.u32 %v1911, 7
    %v1913 = vsub.s32 4, %v1912
    %v1914 = vrot.slane %v1827, %v1913
    %v1915 = vlaneseq
    %v1916 = vshrl.u32 %v1915, 7
    %v1917 = vsub.s32 5, %v1916
    %v1918 = vrot.slane %v1827, %v1917
    %v1919 = vlaneseq
    %v1920 = vshrl.u32 %v1919, 7
    %v1921 = vsub.s32 6, %v1920
    %v1922 = vrot.slane %v1827, %v1921
    %v1923 = vlaneseq
    %v1924 = vshrl.u32 %v1923, 7
    %v1925 = vsub.s32 7, %v1924
    %v1926 = vrot.slane %v1827, %v1925
    %v1951 = vadd.f32 %v1801, %v1834
    %v1952 = vadd.f32 %v1802, %v1838
    %v1953 = vadd.f32 %v1803, %v1842
    %v1954 = vadd.f32 %v1804, %v1846
    %v1955 = vadd.f32 %v1805, %v1850
    %v1956 = vadd.f32 %v1806, %v1854
    %v1957 = vadd.f32 %v1807, %v1858
    %v1958 = vadd.f32 %v1808, %v1862
    %v1959 = vadd.f32 %v1809, %v1866
    %v1960 = vadd.f32 %v1810, %v1870
    %v1961 = vadd.f32 %v1811, %v1874
    %v1962 = vadd.f32 %v1812, %v1878
    %v1963 = vadd.f32 %v1813, %v1882
    %v1964 = vadd.f32 %v1814, %v1886
    %v1965 = vadd.f32 %v1815, %v1890
    %v1966 = vadd.f32 %v1816, %v1894
    %v1967 = vadd.f32 %v1817, %v1898
    %v1968 = vadd.f32 %v1818, %v1902
    %v1969 = vadd.f32 %v1819, %v1906
    %v1970 = vadd.f32 %v1820, %v1910
    %v1971 = vadd.f32 %v1821, %v1914
    %v1972 = vadd.f32 %v1822, %v1918
    %v1973 = vadd.f32 %v1823, %v1922
    %v1974 = vadd.f32 %v1824, %v1926
    %v1975 = vmax.f32 %v1951, 0.0
    %v1976 = vmax.f32 %v1952, 0.0
    %v1977 = vmax.f32 %v1953, 0.0
    %v1978 = vmax.f32 %v1954, 0.0
    %v1979 = vmax.f32 %v1955, 0.0
    %v1980 = vmax.f32 %v1956, 0.0
    %v1981 = vmax.f32 %v1957, 0.0
    %v1982 = vmax.f32 %v1958, 0.0
    %v1983 = vmax.f32 %v1959, 0.0
    %v1984 = vmax.f32 %v1960, 0.0
    %v1985 = vmax.f32 %v1961, 0.0
    %v1986 = vmax.f32 %v1962, 0.0
    %v1987 = vmax.f32 %v1963, 0.0
    %v1988 = vmax.f32 %v1964, 0.0
    %v1989 = vmax.f32 %v1965, 0.0
    %v1990 = vmax.f32 %v1966, 0.0
    %v1991 = vmax.f32 %v1967, 0.0
    %v1992 = vmax.f32 %v1968, 0.0
    %v1993 = vmax.f32 %v1969, 0.0
    %v1994 = vmax.f32 %v1970, 0.0
    %v1995 = vmax.f32 %v1971, 0.0
    %v1996 = vmax.f32 %v1972, 0.0
    %v1997 = vmax.f32 %v1973, 0.0
    %v1998 = vmax.f32 %v1974, 0.0
    %v1999 = vpack.c.bf16 %v1975, %v1975
    %v2000 = vpack.c.bf16 %v1976, %v1976
    %v2001 = vpack.c.bf16 %v1977, %v1977
    %v2002 = vpack.c.bf16 %v1978, %v1978
    %v2003 = vpack.c.bf16 %v1979, %v1979
    %v2004 = vpack.c.bf16 %v1980, %v1980
    %v2005 = vpack.c.bf16 %v1981, %v1981
    %v2006 = vpack.c.bf16 %v1982, %v1982
    %v2007 = vpack.c.bf16 %v1983, %v1983
    %v2008 = vpack.c.bf16 %v1984, %v1984
    %v2009 = vpack.c.bf16 %v1985, %v1985
    %v2010 = vpack.c.bf16 %v1986, %v1986
    %v2011 = vpack.c.bf16 %v1987, %v1987
    %v2012 = vpack.c.bf16 %v1988, %v1988
    %v2013 = vpack.c.bf16 %v1989, %v1989
    %v2014 = vpack.c.bf16 %v1990, %v1990
    %v2015 = vpack.c.bf16 %v1991, %v1991
    %v2016 = vpack.c.bf16 %v1992, %v1992
    %v2017 = vpack.c.bf16 %v1993, %v1993
    %v2018 = vpack.c.bf16 %v1994, %v1994
    %v2019 = vpack.c.bf16 %v1995, %v1995
    %v2020 = vpack.c.bf16 %v1996, %v1996
    %v2021 = vpack.c.bf16 %v1997, %v1997
    %v2022 = vpack.c.bf16 %v1998, %v1998
    %v2047 = vcombine.low %v1999, %v2000
    %v2048 = vcombine.low %v2001, %v2002
    %v2049 = vcombine.low %v2003, %v2004
    %v2050 = vcombine.low %v2005, %v2006
    %v2052 = vunpack.c.l.s4 1966171168
    %v2053 = vunpack.c.0.s8 %v2052
    %v2054 = vlaneseq
    %v2055 = vshrl.u32 %v2054, 7
    %v2056 = vsub.s32 %v2053, %v2055
    %v2057 = vrot.slane %v2047, %v2056
    %v2059 = vunpack.c.l.s4 1966171168
    %v2060 = vunpack.c.0.s8 %v2059
    %v2061 = vlaneseq
    %v2062 = vshrl.u32 %v2061, 7
    %v2063 = vsub.s32 %v2060, %v2062
    %v2064 = vrot.slane %v2048, %v2063
    %v2066 = vunpack.c.l.s4 1966171168
    %v2067 = vunpack.c.0.s8 %v2066
    %v2068 = vlaneseq
    %v2069 = vshrl.u32 %v2068, 7
    %v2070 = vsub.s32 %v2067, %v2069
    %v2071 = vrot.slane %v2049, %v2070
    %v2073 = vunpack.c.l.s4 1966171168
    %v2074 = vunpack.c.0.s8 %v2073
    %v2075 = vlaneseq
    %v2076 = vshrl.u32 %v2075, 7
    %v2077 = vsub.s32 %v2074, %v2076
    %v2078 = vrot.slane %v2050, %v2077
    %v2079 = vcombine.low %v2057, %v2064
    %v2080 = vcombine.low %v2071, %v2078
    %v2082 = vunpack.c.l.s4 1966171168
    %v2083 = vunpack.c.0.s8 %v2082
    %v2084 = vlaneseq
    %v2085 = vshrl.u32 %v2084, 7
    %v2086 = vsub.s32 %v2083, %v2085
    %v2087 = vrot.slane %v2079, %v2086
    %v2089 = vunpack.c.l.s4 1966171168
    %v2090 = vunpack.c.0.s8 %v2089
    %v2091 = vlaneseq
    %v2092 = vshrl.u32 %v2091, 7
    %v2093 = vsub.s32 %v2090, %v2092
    %v2094 = vrot.slane %v2080, %v2093
    %v2095 = vcombine.low %v2087, %v2094
    %v2096 = vcombine.low %v2007, %v2008
    %v2097 = vcombine.low %v2009, %v2010
    %v2098 = vcombine.low %v2011, %v2012
    %v2099 = vcombine.low %v2013, %v2014
    %v2101 = vunpack.c.l.s4 1966171168
    %v2102 = vunpack.c.0.s8 %v2101
    %v2103 = vlaneseq
    %v2104 = vshrl.u32 %v2103, 7
    %v2105 = vsub.s32 %v2102, %v2104
    %v2106 = vrot.slane %v2096, %v2105
    %v2108 = vunpack.c.l.s4 1966171168
    %v2109 = vunpack.c.0.s8 %v2108
    %v2110 = vlaneseq
    %v2111 = vshrl.u32 %v2110, 7
    %v2112 = vsub.s32 %v2109, %v2111
    %v2113 = vrot.slane %v2097, %v2112
    %v2115 = vunpack.c.l.s4 1966171168
    %v2116 = vunpack.c.0.s8 %v2115
    %v2117 = vlaneseq
    %v2118 = vshrl.u32 %v2117, 7
    %v2119 = vsub.s32 %v2116, %v2118
    %v2120 = vrot.slane %v2098, %v2119
    %v2122 = vunpack.c.l.s4 1966171168
    %v2123 = vunpack.c.0.s8 %v2122
    %v2124 = vlaneseq
    %v2125 = vshrl.u32 %v2124, 7
    %v2126 = vsub.s32 %v2123, %v2125
    %v2127 = vrot.slane %v2099, %v2126
    %v2128 = vcombine.low %v2106, %v2113
    %v2129 = vcombine.low %v2120, %v2127
    %v2131 = vunpack.c.l.s4 1966171168
    %v2132 = vunpack.c.0.s8 %v2131
    %v2133 = vlaneseq
    %v2134 = vshrl.u32 %v2133, 7
    %v2135 = vsub.s32 %v2132, %v2134
    %v2136 = vrot.slane %v2128, %v2135
    %v2138 = vunpack.c.l.s4 1966171168
    %v2139 = vunpack.c.0.s8 %v2138
    %v2140 = vlaneseq
    %v2141 = vshrl.u32 %v2140, 7
    %v2142 = vsub.s32 %v2139, %v2141
    %v2143 = vrot.slane %v2129, %v2142
    %v2144 = vcombine.low %v2136, %v2143
    %v2145 = vcombine.low %v2015, %v2016
    %v2146 = vcombine.low %v2017, %v2018
    %v2147 = vcombine.low %v2019, %v2020
    %v2148 = vcombine.low %v2021, %v2022
    %v2150 = vunpack.c.l.s4 1966171168
    %v2151 = vunpack.c.0.s8 %v2150
    %v2152 = vlaneseq
    %v2153 = vshrl.u32 %v2152, 7
    %v2154 = vsub.s32 %v2151, %v2153
    %v2155 = vrot.slane %v2145, %v2154
    %v2157 = vunpack.c.l.s4 1966171168
    %v2158 = vunpack.c.0.s8 %v2157
    %v2159 = vlaneseq
    %v2160 = vshrl.u32 %v2159, 7
    %v2161 = vsub.s32 %v2158, %v2160
    %v2162 = vrot.slane %v2146, %v2161
    %v2164 = vunpack.c.l.s4 1966171168
    %v2165 = vunpack.c.0.s8 %v2164
    %v2166 = vlaneseq
    %v2167 = vshrl.u32 %v2166, 7
    %v2168 = vsub.s32 %v2165, %v2167
    %v2169 = vrot.slane %v2147, %v2168
    %v2171 = vunpack.c.l.s4 1966171168
    %v2172 = vunpack.c.0.s8 %v2171
    %v2173 = vlaneseq
    %v2174 = vshrl.u32 %v2173, 7
    %v2175 = vsub.s32 %v2172, %v2174
    %v2176 = vrot.slane %v2148, %v2175
    %v2177 = vcombine.low %v2155, %v2162
    %v2178 = vcombine.low %v2169, %v2176
    %v2180 = vunpack.c.l.s4 1966171168
    %v2181 = vunpack.c.0.s8 %v2180
    %v2182 = vlaneseq
    %v2183 = vshrl.u32 %v2182, 7
    %v2184 = vsub.s32 %v2181, %v2183
    %v2185 = vrot.slane %v2177, %v2184
    %v2187 = vunpack.c.l.s4 1966171168
    %v2188 = vunpack.c.0.s8 %v2187
    %v2189 = vlaneseq
    %v2190 = vshrl.u32 %v2189, 7
    %v2191 = vsub.s32 %v2188, %v2190
    %v2192 = vrot.slane %v2178, %v2191
    %v2193 = vcombine.low %v2185, %v2192
    %2197 = vst [vmem:[%s4] sm:$0xff] %v2095
    %2198 = vst [vmem:[%s4 + $0x8] sm:$0xff] %v2144
    %2199 = vst [vmem:[%s4 + $0x10] sm:$0xff] %v2193
    // Predicated region
    $region22: #{vision_decoder_forward.5} parent=1 // pred_check
      _
    $region23: #{vision_decoder_forward.5} parent=1 // pred_check_branch
      %2201 = sbr.rel (0) target = $region25
    $region24: #{vision_decoder_forward.5} parent=1 // pred_region
      _
    $region25: #{vision_decoder_forward.5} parent=1 // pred_fallthru
      _
    // Predicated region
    $region26: #{vision_decoder_forward.5} parent=1 // pred_check
      _
    $region27: #{vision_decoder_forward.5} parent=1 // pred_check_branch
      %2203 = sbr.rel (0) target = $region29
    $region28: #{vision_decoder_forward.5} parent=1 // pred_region
      _
    $region29: #{vision_decoder_forward.5} parent=1 // pred_fallthru
      _
    %2204 = vsyncpa [#allocation3], 1

// kernel: vision_decoder_forward.6
$region0: #{vision_decoder_forward.6}
  #allocation0 [shape = 'u32[]', space=smem, size = 0x4, offset = 0x4, fixed_abs, tag = 'smem constant byte address 0x4 - core index']
  #allocation1 [shape = 'u32[144,128]{1,0:T(1,128)}', space=vmem, size = 0x12000, scoped, tag = 'internal scratch']
  %s0 = inlined_call_operand.vmem [shape: bf16[48,512], index: 0, kind: input, shape index: {}]
  %s1 = inlined_call_operand.vmem [shape: bf16[512,256], index: 1, kind: input, shape index: {}]
  %s2 = inlined_call_operand.vmem [shape: f32[1,256], index: 2, kind: input, shape index: {}]
  %s3 = inlined_call_operand.vmem [shape: f32[1,256], index: 3, kind: input, shape index: {}]
  %s4 = inlined_call_operand.vmem [shape: bf16[48,256], index: 4, kind: output, shape index: {}]
  %s5 = sld [smem:[#allocation0]]
  $region26: #{vision_decoder_forward.6} parent=0
    _
  %s7 = ssub.s32 1, %s5
  %s8 = scalar_select 0, %s7, %s5
  // Predicated region
  $region2: #{vision_decoder_forward.6} parent=0 // pred_check
    _
  $region3: #{vision_decoder_forward.6} parent=0 // pred_check_branch
    %10 = sbr.rel (0) target = $region5
  $region4: #{vision_decoder_forward.6} parent=0 // pred_region
    _
  $region5: #{vision_decoder_forward.6} parent=0 // pred_fallthru
    _
  // Predicated region
  $region6: #{vision_decoder_forward.6} parent=0 // pred_check
    _
  $region7: #{vision_decoder_forward.6} parent=0 // pred_check_branch
    %12 = sbr.rel (0) target = $region9
  $region8: #{vision_decoder_forward.6} parent=0 // pred_region
    _
  $region9: #{vision_decoder_forward.6} parent=0 // pred_fallthru
    _
  // Predicated region
  $region10: #{vision_decoder_forward.6} parent=0 // pred_check
    _
  $region11: #{vision_decoder_forward.6} parent=0 // pred_check_branch
    %14 = sbr.rel (0) target = $region13
  $region12: #{vision_decoder_forward.6} parent=0 // pred_region
    _
  $region13: #{vision_decoder_forward.6} parent=0 // pred_fallthru
    _
  // Predicated region
  $region14: #{vision_decoder_forward.6} parent=0 // pred_check
    _
  $region15: #{vision_decoder_forward.6} parent=0 // pred_check_branch
    %16 = sbr.rel (0) target = $region17
  $region16: #{vision_decoder_forward.6} parent=0 // pred_region
    _
  $region17: #{vision_decoder_forward.6} parent=0 // pred_fallthru
    _
  %v17 = vld [vmem:[%s0] sm:$0xff]
  %v18 = vld [vmem:[%s0 + $0x8] sm:$0xff]
  %v19 = vld [vmem:[%s0 + $0x10] sm:$0xff]
  %v20 = vld [vmem:[%s0 + $0x18] sm:$0xff]
  %v21 = vld [vmem:[%s0 + $0x20] sm:$0xff]
  %v22 = vld [vmem:[%s0 + $0x28] sm:$0xff]
  %v23 = vld [vmem:[%s0 + $0x30] sm:$0xff]
  %v24 = vld [vmem:[%s0 + $0x38] sm:$0xff]
  %v25 = vld [vmem:[%s0 + $0x40] sm:$0xff]
  %v26 = vld [vmem:[%s0 + $0x48] sm:$0xff]
  %v27 = vld [vmem:[%s0 + $0x50] sm:$0xff]
  %v28 = vld [vmem:[%s0 + $0x58] sm:$0xff]
  %v29 = vld [vmem:[%s1] sm:$0xff]
  %v30 = vld [vmem:[%s1 + $0x8] sm:$0xff]
  %v31 = vld [vmem:[%s1 + $0x10] sm:$0xff]
  %v32 = vld [vmem:[%s1 + $0x18] sm:$0xff]
  %v33 = vld [vmem:[%s1 + $0x20] sm:$0xff]
  %v34 = vld [vmem:[%s1 + $0x28] sm:$0xff]
  %v35 = vld [vmem:[%s1 + $0x30] sm:$0xff]
  %v36 = vld [vmem:[%s1 + $0x38] sm:$0xff]
  %v37 = vld [vmem:[%s1 + $0x40] sm:$0xff]
  %v38 = vld [vmem:[%s1 + $0x48] sm:$0xff]
  %v39 = vld [vmem:[%s1 + $0x50] sm:$0xff]
  %v40 = vld [vmem:[%s1 + $0x58] sm:$0xff]
  %v41 = vld [vmem:[%s1 + $0x60] sm:$0xff]
  %v42 = vld [vmem:[%s1 + $0x68] sm:$0xff]
  %v43 = vld [vmem:[%s1 + $0x70] sm:$0xff]
  %v44 = vld [vmem:[%s1 + $0x78] sm:$0xff]
  %v45 = vld [vmem:[%s1 + $0x80] sm:$0xff]
  %v46 = vld [vmem:[%s1 + $0x88] sm:$0xff]
  %v47 = vld [vmem:[%s1 + $0x90] sm:$0xff]
  %v48 = vld [vmem:[%s1 + $0x98] sm:$0xff]
  %v49 = vld [vmem:[%s1 + $0xa0] sm:$0xff]
  %v50 = vld [vmem:[%s1 + $0xa8] sm:$0xff]
  %v51 = vld [vmem:[%s1 + $0xb0] sm:$0xff]
  %v52 = vld [vmem:[%s1 + $0xb8] sm:$0xff]
  %v53 = vld [vmem:[%s1 + $0xc0] sm:$0xff]
  %v54 = vld [vmem:[%s1 + $0xc8] sm:$0xff]
  %v55 = vld [vmem:[%s1 + $0xd0] sm:$0xff]
  %v56 = vld [vmem:[%s1 + $0xd8] sm:$0xff]
  %v57 = vld [vmem:[%s1 + $0xe0] sm:$0xff]
  %v58 = vld [vmem:[%s1 + $0xe8] sm:$0xff]
  %v59 = vld [vmem:[%s1 + $0xf0] sm:$0xff]
  %v60 = vld [vmem:[%s1 + $0xf8] sm:$0xff]
  %v61 = vld [vmem:[%s1 + $0x100] sm:$0xff]
  %v62 = vld [vmem:[%s1 + $0x108] sm:$0xff]
  %v63 = vld [vmem:[%s1 + $0x110] sm:$0xff]
  %v64 = vld [vmem:[%s1 + $0x118] sm:$0xff]
  %v65 = vld [vmem:[%s1 + $0x120] sm:$0xff]
  %v66 = vld [vmem:[%s1 + $0x128] sm:$0xff]
  %v67 = vld [vmem:[%s1 + $0x130] sm:$0xff]
  %v68 = vld [vmem:[%s1 + $0x138] sm:$0xff]
  %v69 = vld [vmem:[%s1 + $0x140] sm:$0xff]
  %v70 = vld [vmem:[%s1 + $0x148] sm:$0xff]
  %v71 = vld [vmem:[%s1 + $0x150] sm:$0xff]
  %v72 = vld [vmem:[%s1 + $0x158] sm:$0xff]
  %v73 = vld [vmem:[%s1 + $0x160] sm:$0xff]
  %v74 = vld [vmem:[%s1 + $0x168] sm:$0xff]
  %v75 = vld [vmem:[%s1 + $0x170] sm:$0xff]
  %v76 = vld [vmem:[%s1 + $0x178] sm:$0xff]
  %v77 = vld [vmem:[%s1 + $0x180] sm:$0xff]
  %v78 = vld [vmem:[%s1 + $0x188] sm:$0xff]
  %v79 = vld [vmem:[%s1 + $0x190] sm:$0xff]
  %v80 = vld [vmem:[%s1 + $0x198] sm:$0xff]
  %v81 = vld [vmem:[%s1 + $0x1a0] sm:$0xff]
  %v82 = vld [vmem:[%s1 + $0x1a8] sm:$0xff]
  %v83 = vld [vmem:[%s1 + $0x1b0] sm:$0xff]
  %v84 = vld [vmem:[%s1 + $0x1b8] sm:$0xff]
  %v85 = vld [vmem:[%s1 + $0x1c0] sm:$0xff]
  %v86 = vld [vmem:[%s1 + $0x1c8] sm:$0xff]
  %v87 = vld [vmem:[%s1 + $0x1d0] sm:$0xff]
  %v88 = vld [vmem:[%s1 + $0x1d8] sm:$0xff]
  %v89 = vld [vmem:[%s1 + $0x1e0] sm:$0xff]
  %v90 = vld [vmem:[%s1 + $0x1e8] sm:$0xff]
  %v91 = vld [vmem:[%s1 + $0x1f0] sm:$0xff]
  %v92 = vld [vmem:[%s1 + $0x1f8] sm:$0xff]
  %v105 = vunpack.c.l.b16 %v17
  %v106 = vunpack.c.h.b16 %v17
  %v107 = vunpack.c.l.b16 %v18
  %v108 = vunpack.c.h.b16 %v18
  %v109 = vunpack.c.l.b16 %v19
  %v110 = vunpack.c.h.b16 %v19
  %v111 = vunpack.c.l.b16 %v20
  %v112 = vunpack.c.h.b16 %v20
  %v113 = vunpack.c.l.b16 %v21
  %v114 = vunpack.c.h.b16 %v21
  %v115 = vunpack.c.l.b16 %v22
  %v116 = vunpack.c.h.b16 %v22
  %v117 = vunpack.c.l.b16 %v23
  %v118 = vunpack.c.h.b16 %v23
  %v119 = vunpack.c.l.b16 %v24
  %v120 = vunpack.c.h.b16 %v24
  %v121 = vunpack.c.l.b16 %v25
  %v122 = vunpack.c.h.b16 %v25
  %v123 = vunpack.c.l.b16 %v26
  %v124 = vunpack.c.h.b16 %v26
  %v125 = vunpack.c.l.b16 %v27
  %v126 = vunpack.c.h.b16 %v27
  %v127 = vunpack.c.l.b16 %v28
  %v128 = vunpack.c.h.b16 %v28
  %v129 = vpack.c.b16 %v109, %v105
  %v130 = vpack.c.b16 %v110, %v106
  %v131 = vpack.c.b16 %v111, %v107
  %v132 = vpack.c.b16 %v112, %v108
  %v133 = vpack.c.b16 %v117, %v113
  %v134 = vpack.c.b16 %v118, %v114
  %v135 = vpack.c.b16 %v119, %v115
  %v136 = vpack.c.b16 %v120, %v116
  %v137 = vpack.c.b16 %v125, %v121
  %v138 = vpack.c.b16 %v126, %v122
  %v139 = vpack.c.b16 %v127, %v123
  %v140 = vpack.c.b16 %v128, %v124
  %v217 = vunpack.c.l.b16 %v29
  %v218 = vunpack.c.h.b16 %v29
  %v219 = vunpack.c.l.b16 %v30
  %v220 = vunpack.c.h.b16 %v30
  %v221 = vunpack.c.l.b16 %v31
  %v222 = vunpack.c.h.b16 %v31
  %v223 = vunpack.c.l.b16 %v32
  %v224 = vunpack.c.h.b16 %v32
  %v225 = vunpack.c.l.b16 %v33
  %v226 = vunpack.c.h.b16 %v33
  %v227 = vunpack.c.l.b16 %v34
  %v228 = vunpack.c.h.b16 %v34
  %v229 = vunpack.c.l.b16 %v35
  %v230 = vunpack.c.h.b16 %v35
  %v231 = vunpack.c.l.b16 %v36
  %v232 = vunpack.c.h.b16 %v36
  %v233 = vunpack.c.l.b16 %v37
  %v234 = vunpack.c.h.b16 %v37
  %v235 = vunpack.c.l.b16 %v38
  %v236 = vunpack.c.h.b16 %v38
  %v237 = vunpack.c.l.b16 %v39
  %v238 = vunpack.c.h.b16 %v39
  %v239 = vunpack.c.l.b16 %v40
  %v240 = vunpack.c.h.b16 %v40
  %v241 = vunpack.c.l.b16 %v41
  %v242 = vunpack.c.h.b16 %v41
  %v243 = vunpack.c.l.b16 %v42
  %v244 = vunpack.c.h.b16 %v42
  %v245 = vunpack.c.l.b16 %v43
  %v246 = vunpack.c.h.b16 %v43
  %v247 = vunpack.c.l.b16 %v44
  %v248 = vunpack.c.h.b16 %v44
  %v249 = vunpack.c.l.b16 %v45
  %v250 = vunpack.c.h.b16 %v45
  %v251 = vunpack.c.l.b16 %v46
  %v252 = vunpack.c.h.b16 %v46
  %v253 = vunpack.c.l.b16 %v47
  %v254 = vunpack.c.h.b16 %v47
  %v255 = vunpack.c.l.b16 %v48
  %v256 = vunpack.c.h.b16 %v48
  %v257 = vunpack.c.l.b16 %v49
  %v258 = vunpack.c.h.b16 %v49
  %v259 = vunpack.c.l.b16 %v50
  %v260 = vunpack.c.h.b16 %v50
  %v261 = vunpack.c.l.b16 %v51
  %v262 = vunpack.c.h.b16 %v51
  %v263 = vunpack.c.l.b16 %v52
  %v264 = vunpack.c.h.b16 %v52
  %v265 = vunpack.c.l.b16 %v53
  %v266 = vunpack.c.h.b16 %v53
  %v267 = vunpack.c.l.b16 %v54
  %v268 = vunpack.c.h.b16 %v54
  %v269 = vunpack.c.l.b16 %v55
  %v270 = vunpack.c.h.b16 %v55
  %v271 = vunpack.c.l.b16 %v56
  %v272 = vunpack.c.h.b16 %v56
  %v273 = vunpack.c.l.b16 %v57
  %v274 = vunpack.c.h.b16 %v57
  %v275 = vunpack.c.l.b16 %v58
  %v276 = vunpack.c.h.b16 %v58
  %v277 = vunpack.c.l.b16 %v59
  %v278 = vunpack.c.h.b16 %v59
  %v279 = vunpack.c.l.b16 %v60
  %v280 = vunpack.c.h.b16 %v60
  %v281 = vunpack.c.l.b16 %v61
  %v282 = vunpack.c.h.b16 %v61
  %v283 = vunpack.c.l.b16 %v62
  %v284 = vunpack.c.h.b16 %v62
  %v285 = vunpack.c.l.b16 %v63
  %v286 = vunpack.c.h.b16 %v63
  %v287 = vunpack.c.l.b16 %v64
  %v288 = vunpack.c.h.b16 %v64
  %v289 = vunpack.c.l.b16 %v65
  %v290 = vunpack.c.h.b16 %v65
  %v291 = vunpack.c.l.b16 %v66
  %v292 = vunpack.c.h.b16 %v66
  %v293 = vunpack.c.l.b16 %v67
  %v294 = vunpack.c.h.b16 %v67
  %v295 = vunpack.c.l.b16 %v68
  %v296 = vunpack.c.h.b16 %v68
  %v297 = vunpack.c.l.b16 %v69
  %v298 = vunpack.c.h.b16 %v69
  %v299 = vunpack.c.l.b16 %v70
  %v300 = vunpack.c.h.b16 %v70
  %v301 = vunpack.c.l.b16 %v71
  %v302 = vunpack.c.h.b16 %v71
  %v303 = vunpack.c.l.b16 %v72
  %v304 = vunpack.c.h.b16 %v72
  %v305 = vunpack.c.l.b16 %v73
  %v306 = vunpack.c.h.b16 %v73
  %v307 = vunpack.c.l.b16 %v74
  %v308 = vunpack.c.h.b16 %v74
  %v309 = vunpack.c.l.b16 %v75
  %v310 = vunpack.c.h.b16 %v75
  %v311 = vunpack.c.l.b16 %v76
  %v312 = vunpack.c.h.b16 %v76
  %v313 = vunpack.c.l.b16 %v77
  %v314 = vunpack.c.h.b16 %v77
  %v315 = vunpack.c.l.b16 %v78
  %v316 = vunpack.c.h.b16 %v78
  %v317 = vunpack.c.l.b16 %v79
  %v318 = vunpack.c.h.b16 %v79
  %v319 = vunpack.c.l.b16 %v80
  %v320 = vunpack.c.h.b16 %v80
  %v321 = vunpack.c.l.b16 %v81
  %v322 = vunpack.c.h.b16 %v81
  %v323 = vunpack.c.l.b16 %v82
  %v324 = vunpack.c.h.b16 %v82
  %v325 = vunpack.c.l.b16 %v83
  %v326 = vunpack.c.h.b16 %v83
  %v327 = vunpack.c.l.b16 %v84
  %v328 = vunpack.c.h.b16 %v84
  %v329 = vunpack.c.l.b16 %v85
  %v330 = vunpack.c.h.b16 %v85
  %v331 = vunpack.c.l.b16 %v86
  %v332 = vunpack.c.h.b16 %v86
  %v333 = vunpack.c.l.b16 %v87
  %v334 = vunpack.c.h.b16 %v87
  %v335 = vunpack.c.l.b16 %v88
  %v336 = vunpack.c.h.b16 %v88
  %v337 = vunpack.c.l.b16 %v89
  %v338 = vunpack.c.h.b16 %v89
  %v339 = vunpack.c.l.b16 %v90
  %v340 = vunpack.c.h.b16 %v90
  %v341 = vunpack.c.l.b16 %v91
  %v342 = vunpack.c.h.b16 %v91
  %v343 = vunpack.c.l.b16 %v92
  %v344 = vunpack.c.h.b16 %v92
  %v345 = vpack.c.b16 %v219, %v217
  %v346 = vpack.c.b16 %v220, %v218
  %v347 = vpack.c.b16 %v223, %v221
  %v348 = vpack.c.b16 %v224, %v222
  %v349 = vpack.c.b16 %v227, %v225
  %v350 = vpack.c.b16 %v228, %v226
  %v351 = vpack.c.b16 %v231, %v229
  %v352 = vpack.c.b16 %v232, %v230
  %v353 = vpack.c.b16 %v235, %v233
  %v354 = vpack.c.b16 %v236, %v234
  %v355 = vpack.c.b16 %v239, %v237
  %v356 = vpack.c.b16 %v240, %v238
  %v357 = vpack.c.b16 %v243, %v241
  %v358 = vpack.c.b16 %v244, %v242
  %v359 = vpack.c.b16 %v247, %v245
  %v360 = vpack.c.b16 %v248, %v246
  %v361 = vpack.c.b16 %v251, %v249
  %v362 = vpack.c.b16 %v252, %v250
  %v363 = vpack.c.b16 %v255, %v253
  %v364 = vpack.c.b16 %v256, %v254
  %v365 = vpack.c.b16 %v259, %v257
  %v366 = vpack.c.b16 %v260, %v258
  %v367 = vpack.c.b16 %v263, %v261
  %v368 = vpack.c.b16 %v264, %v262
  %v369 = vpack.c.b16 %v267, %v265
  %v370 = vpack.c.b16 %v268, %v266
  %v371 = vpack.c.b16 %v271, %v269
  %v372 = vpack.c.b16 %v272, %v270
  %v373 = vpack.c.b16 %v275, %v273
  %v374 = vpack.c.b16 %v276, %v274
  %v375 = vpack.c.b16 %v279, %v277
  %v376 = vpack.c.b16 %v280, %v278
  %v377 = vpack.c.b16 %v283, %v281
  %v378 = vpack.c.b16 %v284, %v282
  %v379 = vpack.c.b16 %v287, %v285
  %v380 = vpack.c.b16 %v288, %v286
  %v381 = vpack.c.b16 %v291, %v289
  %v382 = vpack.c.b16 %v292, %v290
  %v383 = vpack.c.b16 %v295, %v293
  %v384 = vpack.c.b16 %v296, %v294
  %v385 = vpack.c.b16 %v299, %v297
  %v386 = vpack.c.b16 %v300, %v298
  %v387 = vpack.c.b16 %v303, %v301
  %v388 = vpack.c.b16 %v304, %v302
  %v389 = vpack.c.b16 %v307, %v305
  %v390 = vpack.c.b16 %v308, %v306
  %v391 = vpack.c.b16 %v311, %v309
  %v392 = vpack.c.b16 %v312, %v310
  %v393 = vpack.c.b16 %v315, %v313
  %v394 = vpack.c.b16 %v316, %v314
  %v395 = vpack.c.b16 %v319, %v317
  %v396 = vpack.c.b16 %v320, %v318
  %v397 = vpack.c.b16 %v323, %v321
  %v398 = vpack.c.b16 %v324, %v322
  %v399 = vpack.c.b16 %v327, %v325
  %v400 = vpack.c.b16 %v328, %v326
  %v401 = vpack.c.b16 %v331, %v329
  %v402 = vpack.c.b16 %v332, %v330
  %v403 = vpack.c.b16 %v335, %v333
  %v404 = vpack.c.b16 %v336, %v334
  %v405 = vpack.c.b16 %v339, %v337
  %v406 = vpack.c.b16 %v340, %v338
  %v407 = vpack.c.b16 %v343, %v341
  %v408 = vpack.c.b16 %v344, %v342
  %473 = vmatprep.subr.bf16.mxu0 %v346
  %474 = vmatpush1.bf16.msra.mxu0 %v345
  %475 = vmatprep.subr.bf16.mxu0 %v348
  %476 = vmatpush1.bf16.msra.mxu0 %v347
  %477 = vmatprep.subr.bf16.mxu0 %v350
  %478 = vmatpush1.bf16.msra.mxu0 %v349
  %479 = vmatprep.subr.bf16.mxu0 %v352
  %480 = vmatpush1.bf16.msra.mxu0 %v351
  %481 = vmatprep.subr.bf16.mxu0 %v354
  %482 = vmatpush1.bf16.msra.mxu0 %v353
  %483 = vmatprep.subr.bf16.mxu0 %v356
  %484 = vmatpush1.bf16.msra.mxu0 %v355
  %485 = vmatprep.subr.bf16.mxu0 %v358
  %486 = vmatpush1.bf16.msra.mxu0 %v357
  %487 = vmatprep.subr.bf16.mxu0 %v360
  %488 = vmatpush1.bf16.msra.mxu0 %v359
  %489 = vmatprep.subr.bf16.mxu0 %v362
  %490 = vmatpush1.bf16.msra.mxu0 %v361
  %491 = vmatprep.subr.bf16.mxu0 %v364
  %492 = vmatpush1.bf16.msra.mxu0 %v363
  %493 = vmatprep.subr.bf16.mxu0 %v366
  %494 = vmatpush1.bf16.msra.mxu0 %v365
  %495 = vmatprep.subr.bf16.mxu0 %v368
  %496 = vmatpush1.bf16.msra.mxu0 %v367
  %497 = vmatprep.subr.bf16.mxu0 %v370
  %498 = vmatpush1.bf16.msra.mxu0 %v369
  %499 = vmatprep.subr.bf16.mxu0 %v372
  %500 = vmatpush1.bf16.msra.mxu0 %v371
  %501 = vmatprep.subr.bf16.mxu0 %v374
  %502 = vmatpush1.bf16.msra.mxu0 %v373
  %503 = vmatprep.subr.bf16.mxu0 %v376
  %504 = vmatpush1.bf16.msra.mxu0 %v375
  %505 = vmatprep.mubr.bf16.mxu0 %v130
  %506 = vmatmul.mubr.bf16.gmra.mrb[0].mxu0 %v129
  %v507 = vpop.f32.mrb[0].mxu0
  %v508 = vadd.f32 0.0, %v507
  %v509 = vpop.f32.mrb[0].mxu0
  %v510 = vadd.f32 0.0, %v509
  %v511 = vpop.f32.mrb[0].mxu0
  %v512 = vadd.f32 0.0, %v511
  %v513 = vpop.f32.mrb[0].mxu0
  %v514 = vadd.f32 0.0, %v513
  %515 = vmatprep.mubr.bf16.mxu0 %v134
  %516 = vmatmul.mubr.bf16.gmra.mrb[0].mxu0 %v133
  %v517 = vpop.f32.mrb[0].mxu0
  %v518 = vadd.f32 0.0, %v517
  %v519 = vpop.f32.mrb[0].mxu0
  %v520 = vadd.f32 0.0, %v519
  %v521 = vpop.f32.mrb[0].mxu0
  %v522 = vadd.f32 0.0, %v521
  %v523 = vpop.f32.mrb[0].mxu0
  %v524 = vadd.f32 0.0, %v523
  %525 = vmatprep.mubr.bf16.mxu0 %v138
  %526 = vmatmul.mubr.bf16.gmra.mrb[0].mxu0 %v137
  %v527 = vpop.f32.mrb[0].mxu0
  %v528 = vadd.f32 0.0, %v527
  %v529 = vpop.f32.mrb[0].mxu0
  %v530 = vadd.f32 0.0, %v529
  %v531 = vpop.f32.mrb[0].mxu0
  %v532 = vadd.f32 0.0, %v531
  %v533 = vpop.f32.mrb[0].mxu0
  %v534 = vadd.f32 0.0, %v533
  %535 = vdwg.mxu0
  %536 = vmatprep.subr.bf16.mxu0 %v378
  %537 = vmatpush1.bf16.msra.mxu0 %v377
  %538 = vmatprep.subr.bf16.mxu0 %v380
  %539 = vmatpush1.bf16.msra.mxu0 %v379
  %540 = vmatprep.subr.bf16.mxu0 %v382
  %541 = vmatpush1.bf16.msra.mxu0 %v381
  %542 = vmatprep.subr.bf16.mxu0 %v384
  %543 = vmatpush1.bf16.msra.mxu0 %v383
  %544 = vmatprep.subr.bf16.mxu0 %v386
  %545 = vmatpush1.bf16.msra.mxu0 %v385
  %546 = vmatprep.subr.bf16.mxu0 %v388
  %547 = vmatpush1.bf16.msra.mxu0 %v387
  %548 = vmatprep.subr.bf16.mxu0 %v390
  %549 = vmatpush1.bf16.msra.mxu0 %v389
  %550 = vmatprep.subr.bf16.mxu0 %v392
  %551 = vmatpush1.bf16.msra.mxu0 %v391
  %552 = vmatprep.subr.bf16.mxu0 %v394
  %553 = vmatpush1.bf16.msra.mxu0 %v393
  %554 = vmatprep.subr.bf16.mxu0 %v396
  %555 = vmatpush1.bf16.msra.mxu0 %v395
  %556 = vmatprep.subr.bf16.mxu0 %v398
  %557 = vmatpush1.bf16.msra.mxu0 %v397
  %558 = vmatprep.subr.bf16.mxu0 %v400
  %559 = vmatpush1.bf16.msra.mxu0 %v399
  %560 = vmatprep.subr.bf16.mxu0 %v402
  %561 = vmatpush1.bf16.msra.mxu0 %v401
  %562 = vmatprep.subr.bf16.mxu0 %v404
  %563 = vmatpush1.bf16.msra.mxu0 %v403
  %564 = vmatprep.subr.bf16.mxu0 %v406
  %565 = vmatpush1.bf16.msra.mxu0 %v405
  %566 = vmatprep.subr.bf16.mxu0 %v408
  %567 = vmatpush1.bf16.msra.mxu0 %v407
  %568 = vmatprep.mubr.bf16.mxu0 %v132
  %569 = vmatmul.mubr.bf16.gmra.mrb[0].mxu0 %v131
  %v570 = vpop.f32.mrb[0].mxu0
  %v571 = vadd.f32 %v508, %v570
  %v572 = vpop.f32.mrb[0].mxu0
  %v573 = vadd.f32 %v510, %v572
  %v574 = vpop.f32.mrb[0].mxu0
  %v575 = vadd.f32 %v512, %v574
  %v576 = vpop.f32.mrb[0].mxu0
  %v577 = vadd.f32 %v514, %v576
  %578 = vmatprep.mubr.bf16.mxu0 %v136
  %579 = vmatmul.mubr.bf16.gmra.mrb[0].mxu0 %v135
  %v580 = vpop.f32.mrb[0].mxu0
  %v581 = vadd.f32 %v518, %v580
  %v582 = vpop.f32.mrb[0].mxu0
  %v583 = vadd.f32 %v520, %v582
  %v584 = vpop.f32.mrb[0].mxu0
  %v585 = vadd.f32 %v522, %v584
  %v586 = vpop.f32.mrb[0].mxu0
  %v587 = vadd.f32 %v524, %v586
  %588 = vmatprep.mubr.bf16.mxu0 %v140
  %589 = vmatmul.mubr.bf16.gmra.mrb[0].mxu0 %v139
  %v590 = vpop.f32.mrb[0].mxu0
  %v591 = vadd.f32 %v528, %v590
  %v592 = vpop.f32.mrb[0].mxu0
  %v593 = vadd.f32 %v530, %v592
  %v594 = vpop.f32.mrb[0].mxu0
  %v595 = vadd.f32 %v532, %v594
  %v596 = vpop.f32.mrb[0].mxu0
  %v597 = vadd.f32 %v534, %v596
  %598 = vdwg.mxu0
  %v599 = vld [vmem:[%s2] sm:$0x3]
  %v601 = vlaneseq
  %v602 = vshrl.u32 %v601, 7
  %v603 = vsub.s32 0, %v602
  %v604 = vrot.slane %v599, %v603
  %v605 = vlaneseq
  %v606 = vshrl.u32 %v605, 7
  %v607 = vsub.s32 1, %v606
  %v608 = vrot.slane %v599, %v607
  %v611 = vmul.f32 %v571, %v604
  %v612 = vmul.f32 %v573, %v608
  %v613 = vmul.f32 %v575, %v604
  %v614 = vmul.f32 %v577, %v608
  %v615 = vmul.f32 %v581, %v604
  %v616 = vmul.f32 %v583, %v608
  %v617 = vmul.f32 %v585, %v604
  %v618 = vmul.f32 %v587, %v608
  %v619 = vmul.f32 %v591, %v604
  %v620 = vmul.f32 %v593, %v608
  %v621 = vmul.f32 %v595, %v604
  %v622 = vmul.f32 %v597, %v608
  %v623 = vld [vmem:[%s3] sm:$0x3]
  %v625 = vlaneseq
  %v626 = vshrl.u32 %v625, 7
  %v627 = vsub.s32 0, %v626
  %v628 = vrot.slane %v623, %v627
  %v629 = vlaneseq
  %v630 = vshrl.u32 %v629, 7
  %v631 = vsub.s32 1, %v630
  %v632 = vrot.slane %v623, %v631
  %v635 = vadd.f32 %v611, %v628
  %v636 = vadd.f32 %v612, %v632
  %v637 = vadd.f32 %v613, %v628
  %v638 = vadd.f32 %v614, %v632
  %v639 = vadd.f32 %v615, %v628
  %v640 = vadd.f32 %v616, %v632
  %v641 = vadd.f32 %v617, %v628
  %v642 = vadd.f32 %v618, %v632
  %v643 = vadd.f32 %v619, %v628
  %v644 = vadd.f32 %v620, %v632
  %v645 = vadd.f32 %v621, %v628
  %v646 = vadd.f32 %v622, %v632
  %v647 = vmax.f32 %v635, 0.0
  %v648 = vmax.f32 %v636, 0.0
  %v649 = vmax.f32 %v637, 0.0
  %v650 = vmax.f32 %v638, 0.0
  %v651 = vmax.f32 %v639, 0.0
  %v652 = vmax.f32 %v640, 0.0
  %v653 = vmax.f32 %v641, 0.0
  %v654 = vmax.f32 %v642, 0.0
  %v655 = vmax.f32 %v643, 0.0
  %v656 = vmax.f32 %v644, 0.0
  %v657 = vmax.f32 %v645, 0.0
  %v658 = vmax.f32 %v646, 0.0
  %v659 = vpack.c.bf16 %v649, %v647
  %v660 = vpack.c.bf16 %v650, %v648
  %v661 = vpack.c.bf16 %v653, %v651
  %v662 = vpack.c.bf16 %v654, %v652
  %v663 = vpack.c.bf16 %v657, %v655
  %v664 = vpack.c.bf16 %v658, %v656
  %v671 = vunpack.c.l.b16 %v659
  %v672 = vunpack.c.l.b16 %v660
  %v673 = vunpack.c.h.b16 %v659
  %v674 = vunpack.c.h.b16 %v660
  %v675 = vunpack.c.l.b16 %v661
  %v676 = vunpack.c.l.b16 %v662
  %v677 = vunpack.c.h.b16 %v661
  %v678 = vunpack.c.h.b16 %v662
  %v679 = vunpack.c.l.b16 %v663
  %v680 = vunpack.c.l.b16 %v664
  %v681 = vunpack.c.h.b16 %v663
  %v682 = vunpack.c.h.b16 %v664
  %v683 = vpack.c.b16 %v672, %v671
  %v684 = vpack.c.b16 %v674, %v673
  %v685 = vpack.c.b16 %v676, %v675
  %v686 = vpack.c.b16 %v678, %v677
  %v687 = vpack.c.b16 %v680, %v679
  %v688 = vpack.c.b16 %v682, %v681
  %695 = vst [vmem:[%s4] sm:$0xff] %v683
  %696 = vst [vmem:[%s4 + $0x8] sm:$0xff] %v684
  %697 = vst [vmem:[%s4 + $0x10] sm:$0xff] %v685
  %698 = vst [vmem:[%s4 + $0x18] sm:$0xff] %v686
  %699 = vst [vmem:[%s4 + $0x20] sm:$0xff] %v687
  %700 = vst [vmem:[%s4 + $0x28] sm:$0xff] %v688
  // Predicated region
  $region18: #{vision_decoder_forward.6} parent=0 // pred_check
    _
  $region19: #{vision_decoder_forward.6} parent=0 // pred_check_branch
    %702 = sbr.rel (0) target = $region21
  $region20: #{vision_decoder_forward.6} parent=0 // pred_region
    _
  $region21: #{vision_decoder_forward.6} parent=0 // pred_fallthru
    _
  // Predicated region
  $region22: #{vision_decoder_forward.6} parent=0 // pred_check
    _
  $region23: #{vision_decoder_forward.6} parent=0 // pred_check_branch
    %704 = sbr.rel (0) target = $region25
  $region24: #{vision_decoder_forward.6} parent=0 // pred_region
    _
  $region25: #{vision_decoder_forward.6} parent=0 // pred_fallthru
    _

// kernel: vision_decoder_forward.7
$region0: #{vision_decoder_forward.7}
  #allocation0 [shape = 'u32[]', space=smem, size = 0x4, offset = 0x4, fixed_abs, tag = 'smem constant byte address 0x4 - core index']
  #allocation1 [shape = 'u32[144,128]{1,0:T(1,128)}', space=vmem, size = 0x12000, scoped, tag = 'internal scratch']
  %s0 = inlined_call_operand.vmem [shape: bf16[192,256], index: 0, kind: input, shape index: {}]
  %s1 = inlined_call_operand.vmem [shape: bf16[256,128], index: 1, kind: input, shape index: {}]
  %s2 = inlined_call_operand.vmem [shape: f32[1,128], index: 2, kind: input, shape index: {}]
  %s3 = inlined_call_operand.vmem [shape: f32[1,128], index: 3, kind: input, shape index: {}]
  %s4 = inlined_call_operand.vmem [shape: bf16[192,128], index: 4, kind: output, shape index: {}]
  %s5 = sld [smem:[#allocation0]]
  $region26: #{vision_decoder_forward.7} parent=0
    _
  %s7 = ssub.s32 1, %s5
  %s8 = scalar_select 0, %s7, %s5
  // Predicated region
  $region2: #{vision_decoder_forward.7} parent=0 // pred_check
    _
  $region3: #{vision_decoder_forward.7} parent=0 // pred_check_branch
    %10 = sbr.rel (0) target = $region5
  $region4: #{vision_decoder_forward.7} parent=0 // pred_region
    _
  $region5: #{vision_decoder_forward.7} parent=0 // pred_fallthru
    _
  // Predicated region
  $region6: #{vision_decoder_forward.7} parent=0 // pred_check
    _
  $region7: #{vision_decoder_forward.7} parent=0 // pred_check_branch
    %12 = sbr.rel (0) target = $region9
  $region8: #{vision_decoder_forward.7} parent=0 // pred_region
    _
  $region9: #{vision_decoder_forward.7} parent=0 // pred_fallthru
    _
  // Predicated region
  $region10: #{vision_decoder_forward.7} parent=0 // pred_check
    _
  $region11: #{vision_decoder_forward.7} parent=0 // pred_check_branch
    %14 = sbr.rel (0) target = $region13
  $region12: #{vision_decoder_forward.7} parent=0 // pred_region
    _
  $region13: #{vision_decoder_forward.7} parent=0 // pred_fallthru
    _
  // Predicated region
  $region14: #{vision_decoder_forward.7} parent=0 // pred_check
    _
  $region15: #{vision_decoder_forward.7} parent=0 // pred_check_branch
    %16 = sbr.rel (0) target = $region17
  $region16: #{vision_decoder_forward.7} parent=0 // pred_region
    _
  $region17: #{vision_decoder_forward.7} parent=0 // pred_fallthru
    _
  %v18 = vld [vmem:[%s0] sm:$0xff]
  %v19 = vld [vmem:[%s0 + $0x8] sm:$0xff]
  %v20 = vld [vmem:[%s0 + $0x10] sm:$0xff]
  %v21 = vld [vmem:[%s0 + $0x18] sm:$0xff]
  %v22 = vld [vmem:[%s0 + $0x20] sm:$0xff]
  %v23 = vld [vmem:[%s0 + $0x28] sm:$0xff]
  %v24 = vld [vmem:[%s0 + $0x30] sm:$0xff]
  %v25 = vld [vmem:[%s0 + $0x38] sm:$0xff]
  %v26 = vld [vmem:[%s0 + $0x40] sm:$0xff]
  %v27 = vld [vmem:[%s0 + $0x48] sm:$0xff]
  %v28 = vld [vmem:[%s0 + $0x50] sm:$0xff]
  %v29 = vld [vmem:[%s0 + $0x58] sm:$0xff]
  %v30 = vld [vmem:[%s0 + $0x60] sm:$0xff]
  %v31 = vld [vmem:[%s0 + $0x68] sm:$0xff]
  %v32 = vld [vmem:[%s0 + $0x70] sm:$0xff]
  %v33 = vld [vmem:[%s0 + $0x78] sm:$0xff]
  %v34 = vld [vmem:[%s0 + $0x80] sm:$0xff]
  %v35 = vld [vmem:[%s0 + $0x88] sm:$0xff]
  %v36 = vld [vmem:[%s0 + $0x90] sm:$0xff]
  %v37 = vld [vmem:[%s0 + $0x98] sm:$0xff]
  %v38 = vld [vmem:[%s0 + $0xa0] sm:$0xff]
  %v39 = vld [vmem:[%s0 + $0xa8] sm:$0xff]
  %v40 = vld [vmem:[%s0 + $0xb0] sm:$0xff]
  %v41 = vld [vmem:[%s0 + $0xb8] sm:$0xff]
  %v42 = vld [vmem:[%s1] sm:$0xf]
  %v43 = vld [vmem:[%s1 + $0x4] sm:$0xf]
  %v44 = vld [vmem:[%s1 + $0x8] sm:$0xf]
  %v45 = vld [vmem:[%s1 + $0xc] sm:$0xf]
  %v46 = vld [vmem:[%s1 + $0x10] sm:$0xf]
  %v47 = vld [vmem:[%s1 + $0x14] sm:$0xf]
  %v48 = vld [vmem:[%s1 + $0x18] sm:$0xf]
  %v49 = vld [vmem:[%s1 + $0x1c] sm:$0xf]
  %v50 = vld [vmem:[%s1 + $0x20] sm:$0xf]
  %v51 = vld [vmem:[%s1 + $0x24] sm:$0xf]
  %v52 = vld [vmem:[%s1 + $0x28] sm:$0xf]
  %v53 = vld [vmem:[%s1 + $0x2c] sm:$0xf]
  %v54 = vld [vmem:[%s1 + $0x30] sm:$0xf]
  %v55 = vld [vmem:[%s1 + $0x34] sm:$0xf]
  %v56 = vld [vmem:[%s1 + $0x38] sm:$0xf]
  %v57 = vld [vmem:[%s1 + $0x3c] sm:$0xf]
  %v58 = vld [vmem:[%s1 + $0x40] sm:$0xf]
  %v59 = vld [vmem:[%s1 + $0x44] sm:$0xf]
  %v60 = vld [vmem:[%s1 + $0x48] sm:$0xf]
  %v61 = vld [vmem:[%s1 + $0x4c] sm:$0xf]
  %v62 = vld [vmem:[%s1 + $0x50] sm:$0xf]
  %v63 = vld [vmem:[%s1 + $0x54] sm:$0xf]
  %v64 = vld [vmem:[%s1 + $0x58] sm:$0xf]
  %v65 = vld [vmem:[%s1 + $0x5c] sm:$0xf]
  %v66 = vld [vmem:[%s1 + $0x60] sm:$0xf]
  %v67 = vld [vmem:[%s1 + $0x64] sm:$0xf]
  %v68 = vld [vmem:[%s1 + $0x68] sm:$0xf]
  %v69 = vld [vmem:[%s1 + $0x6c] sm:$0xf]
  %v70 = vld [vmem:[%s1 + $0x70] sm:$0xf]
  %v71 = vld [vmem:[%s1 + $0x74] sm:$0xf]
  %v72 = vld [vmem:[%s1 + $0x78] sm:$0xf]
  %v73 = vld [vmem:[%s1 + $0x7c] sm:$0xf]
  %v98 = vunpack.c.l.b16 %v18
  %v99 = vunpack.c.h.b16 %v18
  %v100 = vunpack.c.l.b16 %v19
  %v101 = vunpack.c.h.b16 %v19
  %v102 = vunpack.c.l.b16 %v20
  %v103 = vunpack.c.h.b16 %v20
  %v104 = vunpack.c.l.b16 %v21
  %v105 = vunpack.c.h.b16 %v21
  %v106 = vunpack.c.l.b16 %v22
  %v107 = vunpack.c.h.b16 %v22
  %v108 = vunpack.c.l.b16 %v23
  %v109 = vunpack.c.h.b16 %v23
  %v110 = vunpack.c.l.b16 %v24
  %v111 = vunpack.c.h.b16 %v24
  %v112 = vunpack.c.l.b16 %v25
  %v113 = vunpack.c.h.b16 %v25
  %v114 = vunpack.c.l.b16 %v26
  %v115 = vunpack.c.h.b16 %v26
  %v116 = vunpack.c.l.b16 %v27
  %v117 = vunpack.c.h.b16 %v27
  %v118 = vunpack.c.l.b16 %v28
  %v119 = vunpack.c.h.b16 %v28
  %v120 = vunpack.c.l.b16 %v29
  %v121 = vunpack.c.h.b16 %v29
  %v122 = vunpack.c.l.b16 %v30
  %v123 = vunpack.c.h.b16 %v30
  %v124 = vunpack.c.l.b16 %v31
  %v125 = vunpack.c.h.b16 %v31
  %v126 = vunpack.c.l.b16 %v32
  %v127 = vunpack.c.h.b16 %v32
  %v128 = vunpack.c.l.b16 %v33
  %v129 = vunpack.c.h.b16 %v33
  %v130 = vunpack.c.l.b16 %v34
  %v131 = vunpack.c.h.b16 %v34
  %v132 = vunpack.c.l.b16 %v35
  %v133 = vunpack.c.h.b16 %v35
  %v134 = vunpack.c.l.b16 %v36
  %v135 = vunpack.c.h.b16 %v36
  %v136 = vunpack.c.l.b16 %v37
  %v137 = vunpack.c.h.b16 %v37
  %v138 = vunpack.c.l.b16 %v38
  %v139 = vunpack.c.h.b16 %v38
  %v140 = vunpack.c.l.b16 %v39
  %v141 = vunpack.c.h.b16 %v39
  %v142 = vunpack.c.l.b16 %v40
  %v143 = vunpack.c.h.b16 %v40
  %v144 = vunpack.c.l.b16 %v41
  %v145 = vunpack.c.h.b16 %v41
  %v146 = vpack.c.b16 %v100, %v98
  %v147 = vpack.c.b16 %v101, %v99
  %v148 = vpack.c.b16 %v104, %v102
  %v149 = vpack.c.b16 %v105, %v103
  %v150 = vpack.c.b16 %v108, %v106
  %v151 = vpack.c.b16 %v109, %v107
  %v152 = vpack.c.b16 %v112, %v110
  %v153 = vpack.c.b16 %v113, %v111
  %v154 = vpack.c.b16 %v116, %v114
  %v155 = vpack.c.b16 %v117, %v115
  %v156 = vpack.c.b16 %v120, %v118
  %v157 = vpack.c.b16 %v121, %v119
  %v158 = vpack.c.b16 %v124, %v122
  %v159 = vpack.c.b16 %v125, %v123
  %v160 = vpack.c.b16 %v128, %v126
  %v161 = vpack.c.b16 %v129, %v127
  %v162 = vpack.c.b16 %v132, %v130
  %v163 = vpack.c.b16 %v133, %v131
  %v164 = vpack.c.b16 %v136, %v134
  %v165 = vpack.c.b16 %v137, %v135
  %v166 = vpack.c.b16 %v140, %v138
  %v167 = vpack.c.b16 %v141, %v139
  %v168 = vpack.c.b16 %v144, %v142
  %v169 = vpack.c.b16 %v145, %v143
  %v226 = vunpack.c.l.b16 %v42
  %v227 = vunpack.c.l.b16 %v43
  %v228 = vunpack.c.l.b16 %v44
  %v229 = vunpack.c.l.b16 %v45
  %v230 = vunpack.c.l.b16 %v46
  %v231 = vunpack.c.l.b16 %v47
  %v232 = vunpack.c.l.b16 %v48
  %v233 = vunpack.c.l.b16 %v49
  %v234 = vunpack.c.l.b16 %v50
  %v235 = vunpack.c.l.b16 %v51
  %v236 = vunpack.c.l.b16 %v52
  %v237 = vunpack.c.l.b16 %v53
  %v238 = vunpack.c.l.b16 %v54
  %v239 = vunpack.c.l.b16 %v55
  %v240 = vunpack.c.l.b16 %v56
  %v241 = vunpack.c.l.b16 %v57
  %v242 = vunpack.c.l.b16 %v58
  %v243 = vunpack.c.l.b16 %v59
  %v244 = vunpack.c.l.b16 %v60
  %v245 = vunpack.c.l.b16 %v61
  %v246 = vunpack.c.l.b16 %v62
  %v247 = vunpack.c.l.b16 %v63
  %v248 = vunpack.c.l.b16 %v64
  %v249 = vunpack.c.l.b16 %v65
  %v250 = vunpack.c.l.b16 %v66
  %v251 = vunpack.c.l.b16 %v67
  %v252 = vunpack.c.l.b16 %v68
  %v253 = vunpack.c.l.b16 %v69
  %v254 = vunpack.c.l.b16 %v70
  %v255 = vunpack.c.l.b16 %v71
  %v256 = vunpack.c.l.b16 %v72
  %v257 = vunpack.c.l.b16 %v73
  %v258 = vpack.c.b16 %v227, %v226
  %v259 = vpack.c.b16 %v229, %v228
  %v260 = vpack.c.b16 %v231, %v230
  %v261 = vpack.c.b16 %v233, %v232
  %v262 = vpack.c.b16 %v235, %v234
  %v263 = vpack.c.b16 %v237, %v236
  %v264 = vpack.c.b16 %v239, %v238
  %v265 = vpack.c.b16 %v241, %v240
  %v266 = vpack.c.b16 %v243, %v242
  %v267 = vpack.c.b16 %v245, %v244
  %v268 = vpack.c.b16 %v247, %v246
  %v269 = vpack.c.b16 %v249, %v248
  %v270 = vpack.c.b16 %v251, %v250
  %v271 = vpack.c.b16 %v253, %v252
  %v272 = vpack.c.b16 %v255, %v254
  %v273 = vpack.c.b16 %v257, %v256
  %290 = vmatprep.subr.bf16.mxu0 0
  %291 = vmatpush1.bf16.msra.mxu0 %v258
  %292 = vmatprep.subr.bf16.mxu0 0
  %293 = vmatpush1.bf16.msra.mxu0 %v259
  %294 = vmatprep.subr.bf16.mxu0 0
  %295 = vmatpush1.bf16.msra.mxu0 %v260
  %296 = vmatprep.subr.bf16.mxu0 0
  %297 = vmatpush1.bf16.msra.mxu0 %v261
  %298 = vmatprep.subr.bf16.mxu0 0
  %299 = vmatpush1.bf16.msra.mxu0 %v262
  %300 = vmatprep.subr.bf16.mxu0 0
  %301 = vmatpush1.bf16.msra.mxu0 %v263
  %302 = vmatprep.subr.bf16.mxu0 0
  %303 = vmatpush1.bf16.msra.mxu0 %v264
  %304 = vmatprep.subr.bf16.mxu0 0
  %305 = vmatpush1.bf16.msra.mxu0 %v265
  %306 = vmatprep.subr.bf16.mxu0 0
  %307 = vmatpush1.bf16.msra.mxu0 %v266
  %308 = vmatprep.subr.bf16.mxu0 0
  %309 = vmatpush1.bf16.msra.mxu0 %v267
  %310 = vmatprep.subr.bf16.mxu0 0
  %311 = vmatpush1.bf16.msra.mxu0 %v268
  %312 = vmatprep.subr.bf16.mxu0 0
  %313 = vmatpush1.bf16.msra.mxu0 %v269
  %314 = vmatprep.subr.bf16.mxu0 0
  %315 = vmatpush1.bf16.msra.mxu0 %v270
  %316 = vmatprep.subr.bf16.mxu0 0
  %317 = vmatpush1.bf16.msra.mxu0 %v271
  %318 = vmatprep.subr.bf16.mxu0 0
  %319 = vmatpush1.bf16.msra.mxu0 %v272
  %320 = vmatprep.subr.bf16.mxu0 0
  %321 = vmatpush1.bf16.msra.mxu0 %v273
  %322 = vmatprep.mubr.bf16.mxu0 %v147
  %323 = vmatmul.mubr.bf16.gmra.mrb[0].mxu0 %v146
  %v324 = vpop.f32.mrb[0].mxu0
  %v325 = vadd.f32 0.0, %v324
  %v326 = vpop.f32.mrb[0].mxu0
  %v327 = vpop.f32.mrb[0].mxu0
  %v328 = vadd.f32 0.0, %v327
  %v329 = vpop.f32.mrb[0].mxu0
  %330 = vmatprep.mubr.bf16.mxu0 %v149
  %331 = vmatmul.mubr.bf16.gmra.mrb[0].mxu0 %v148
  %v332 = vpop.f32.mrb[0].mxu0
  %v333 = vadd.f32 0.0, %v332
  %v334 = vpop.f32.mrb[0].mxu0
  %v335 = vpop.f32.mrb[0].mxu0
  %v336 = vadd.f32 0.0, %v335
  %v337 = vpop.f32.mrb[0].mxu0
  %338 = vmatprep.mubr.bf16.mxu0 %v151
  %339 = vmatmul.mubr.bf16.gmra.mrb[0].mxu0 %v150
  %v340 = vpop.f32.mrb[0].mxu0
  %v341 = vadd.f32 0.0, %v340
  %v342 = vpop.f32.mrb[0].mxu0
  %v343 = vpop.f32.mrb[0].mxu0
  %v344 = vadd.f32 0.0, %v343
  %v345 = vpop.f32.mrb[0].mxu0
  %346 = vmatprep.mubr.bf16.mxu0 %v153
  %347 = vmatmul.mubr.bf16.gmra.mrb[0].mxu0 %v152
  %v348 = vpop.f32.mrb[0].mxu0
  %v349 = vadd.f32 0.0, %v348
  %v350 = vpop.f32.mrb[0].mxu0
  %v351 = vpop.f32.mrb[0].mxu0
  %v352 = vadd.f32 0.0, %v351
  %v353 = vpop.f32.mrb[0].mxu0
  %354 = vmatprep.mubr.bf16.mxu0 %v155
  %355 = vmatmul.mubr.bf16.gmra.mrb[0].mxu0 %v154
  %v356 = vpop.f32.mrb[0].mxu0
  %v357 = vadd.f32 0.0, %v356
  %v358 = vpop.f32.mrb[0].mxu0
  %v359 = vpop.f32.mrb[0].mxu0
  %v360 = vadd.f32 0.0, %v359
  %v361 = vpop.f32.mrb[0].mxu0
  %362 = vmatprep.mubr.bf16.mxu0 %v157
  %363 = vmatmul.mubr.bf16.gmra.mrb[0].mxu0 %v156
  %v364 = vpop.f32.mrb[0].mxu0
  %v365 = vadd.f32 0.0, %v364
  %v366 = vpop.f32.mrb[0].mxu0
  %v367 = vpop.f32.mrb[0].mxu0
  %v368 = vadd.f32 0.0, %v367
  %v369 = vpop.f32.mrb[0].mxu0
  %370 = vmatprep.mubr.bf16.mxu0 %v159
  %371 = vmatmul.mubr.bf16.gmra.mrb[0].mxu0 %v158
  %v372 = vpop.f32.mrb[0].mxu0
  %v373 = vadd.f32 0.0, %v372
  %v374 = vpop.f32.mrb[0].mxu0
  %v375 = vpop.f32.mrb[0].mxu0
  %v376 = vadd.f32 0.0, %v375
  %v377 = vpop.f32.mrb[0].mxu0
  %378 = vmatprep.mubr.bf16.mxu0 %v161
  %379 = vmatmul.mubr.bf16.gmra.mrb[0].mxu0 %v160
  %v380 = vpop.f32.mrb[0].mxu0
  %v381 = vadd.f32 0.0, %v380
  %v382 = vpop.f32.mrb[0].mxu0
  %v383 = vpop.f32.mrb[0].mxu0
  %v384 = vadd.f32 0.0, %v383
  %v385 = vpop.f32.mrb[0].mxu0
  %386 = vmatprep.mubr.bf16.mxu0 %v163
  %387 = vmatmul.mubr.bf16.gmra.mrb[0].mxu0 %v162
  %v388 = vpop.f32.mrb[0].mxu0
  %v389 = vadd.f32 0.0, %v388
  %v390 = vpop.f32.mrb[0].mxu0
  %v391 = vpop.f32.mrb[0].mxu0
  %v392 = vadd.f32 0.0, %v391
  %v393 = vpop.f32.mrb[0].mxu0
  %394 = vmatprep.mubr.bf16.mxu0 %v165
  %395 = vmatmul.mubr.bf16.gmra.mrb[0].mxu0 %v164
  %v396 = vpop.f32.mrb[0].mxu0
  %v397 = vadd.f32 0.0, %v396
  %v398 = vpop.f32.mrb[0].mxu0
  %v399 = vpop.f32.mrb[0].mxu0
  %v400 = vadd.f32 0.0, %v399
  %v401 = vpop.f32.mrb[0].mxu0
  %402 = vmatprep.mubr.bf16.mxu0 %v167
  %403 = vmatmul.mubr.bf16.gmra.mrb[0].mxu0 %v166
  %v404 = vpop.f32.mrb[0].mxu0
  %v405 = vadd.f32 0.0, %v404
  %v406 = vpop.f32.mrb[0].mxu0
  %v407 = vpop.f32.mrb[0].mxu0
  %v408 = vadd.f32 0.0, %v407
  %v409 = vpop.f32.mrb[0].mxu0
  %410 = vmatprep.mubr.bf16.mxu0 %v169
  %411 = vmatmul.mubr.bf16.gmra.mrb[0].mxu0 %v168
  %v412 = vpop.f32.mrb[0].mxu0
  %v413 = vadd.f32 0.0, %v412
  %v414 = vpop.f32.mrb[0].mxu0
  %v415 = vpop.f32.mrb[0].mxu0
  %v416 = vadd.f32 0.0, %v415
  %v417 = vpop.f32.mrb[0].mxu0
  %418 = vdwg.mxu0
  %v419 = vld [vmem:[%s2] sm:$0x1]
  %v421 = vlaneseq
  %v422 = vshrl.u32 %v421, 7
  %v423 = vsub.s32 0, %v422
  %v424 = vrot.slane %v419, %v423
  %v426 = vmul.f32 %v325, %v424
  %v427 = vmul.f32 %v328, %v424
  %v428 = vmul.f32 %v333, %v424
  %v429 = vmul.f32 %v336, %v424
  %v430 = vmul.f32 %v341, %v424
  %v431 = vmul.f32 %v344, %v424
  %v432 = vmul.f32 %v349, %v424
  %v433 = vmul.f32 %v352, %v424
  %v434 = vmul.f32 %v357, %v424
  %v435 = vmul.f32 %v360, %v424
  %v436 = vmul.f32 %v365, %v424
  %v437 = vmul.f32 %v368, %v424
  %v438 = vmul.f32 %v373, %v424
  %v439 = vmul.f32 %v376, %v424
  %v440 = vmul.f32 %v381, %v424
  %v441 = vmul.f32 %v384, %v424
  %v442 = vmul.f32 %v389, %v424
  %v443 = vmul.f32 %v392, %v424
  %v444 = vmul.f32 %v397, %v424
  %v445 = vmul.f32 %v400, %v424
  %v446 = vmul.f32 %v405, %v424
  %v447 = vmul.f32 %v408, %v424
  %v448 = vmul.f32 %v413, %v424
  %v449 = vmul.f32 %v416, %v424
  %v450 = vld [vmem:[%s3] sm:$0x1]
  %v452 = vlaneseq
  %v453 = vshrl.u32 %v452, 7
  %v454 = vsub.s32 0, %v453
  %v455 = vrot.slane %v450, %v454
  %v457 = vadd.f32 %v426, %v455
  %v458 = vadd.f32 %v427, %v455
  %v459 = vadd.f32 %v428, %v455
  %v460 = vadd.f32 %v429, %v455
  %v461 = vadd.f32 %v430, %v455
  %v462 = vadd.f32 %v431, %v455
  %v463 = vadd.f32 %v432, %v455
  %v464 = vadd.f32 %v433, %v455
  %v465 = vadd.f32 %v434, %v455
  %v466 = vadd.f32 %v435, %v455
  %v467 = vadd.f32 %v436, %v455
  %v468 = vadd.f32 %v437, %v455
  %v469 = vadd.f32 %v438, %v455
  %v470 = vadd.f32 %v439, %v455
  %v471 = vadd.f32 %v440, %v455
  %v472 = vadd.f32 %v441, %v455
  %v473 = vadd.f32 %v442, %v455
  %v474 = vadd.f32 %v443, %v455
  %v475 = vadd.f32 %v444, %v455
  %v476 = vadd.f32 %v445, %v455
  %v477 = vadd.f32 %v446, %v455
  %v478 = vadd.f32 %v447, %v455
  %v479 = vadd.f32 %v448, %v455
  %v480 = vadd.f32 %v449, %v455
  %v481 = vmax.f32 %v457, 0.0
  %v482 = vmax.f32 %v458, 0.0
  %v483 = vmax.f32 %v459, 0.0
  %v484 = vmax.f32 %v460, 0.0
  %v485 = vmax.f32 %v461, 0.0
  %v486 = vmax.f32 %v462, 0.0
  %v487 = vmax.f32 %v463, 0.0
  %v488 = vmax.f32 %v464, 0.0
  %v489 = vmax.f32 %v465, 0.0
  %v490 = vmax.f32 %v466, 0.0
  %v491 = vmax.f32 %v467, 0.0
  %v492 = vmax.f32 %v468, 0.0
  %v493 = vmax.f32 %v469, 0.0
  %v494 = vmax.f32 %v470, 0.0
  %v495 = vmax.f32 %v471, 0.0
  %v496 = vmax.f32 %v472, 0.0
  %v497 = vmax.f32 %v473, 0.0
  %v498 = vmax.f32 %v474, 0.0
  %v499 = vmax.f32 %v475, 0.0
  %v500 = vmax.f32 %v476, 0.0
  %v501 = vmax.f32 %v477, 0.0
  %v502 = vmax.f32 %v478, 0.0
  %v503 = vmax.f32 %v479, 0.0
  %v504 = vmax.f32 %v480, 0.0
  %v505 = vpack.c.bf16 %v482, %v481
  %v506 = vpack.c.bf16 %v484, %v483
  %v507 = vpack.c.bf16 %v486, %v485
  %v508 = vpack.c.bf16 %v488, %v487
  %v509 = vpack.c.bf16 %v490, %v489
  %v510 = vpack.c.bf16 %v492, %v491
  %v511 = vpack.c.bf16 %v494, %v493
  %v512 = vpack.c.bf16 %v496, %v495
  %v513 = vpack.c.bf16 %v498, %v497
  %v514 = vpack.c.bf16 %v500, %v499
  %v515 = vpack.c.bf16 %v502, %v501
  %v516 = vpack.c.bf16 %v504, %v503
  %v529 = vunpack.c.l.b16 %v505
  %v530 = vunpack.c.h.b16 %v505
  %v531 = vunpack.c.l.b16 %v506
  %v532 = vunpack.c.h.b16 %v506
  %v533 = vunpack.c.l.b16 %v507
  %v534 = vunpack.c.h.b16 %v507
  %v535 = vunpack.c.l.b16 %v508
  %v536 = vunpack.c.h.b16 %v508
  %v537 = vunpack.c.l.b16 %v509
  %v538 = vunpack.c.h.b16 %v509
  %v539 = vunpack.c.l.b16 %v510
  %v540 = vunpack.c.h.b16 %v510
  %v541 = vunpack.c.l.b16 %v511
  %v542 = vunpack.c.h.b16 %v511
  %v543 = vunpack.c.l.b16 %v512
  %v544 = vunpack.c.h.b16 %v512
  %v545 = vunpack.c.l.b16 %v513
  %v546 = vunpack.c.h.b16 %v513
  %v547 = vunpack.c.l.b16 %v514
  %v548 = vunpack.c.h.b16 %v514
  %v549 = vunpack.c.l.b16 %v515
  %v550 = vunpack.c.h.b16 %v515
  %v551 = vunpack.c.l.b16 %v516
  %v552 = vunpack.c.h.b16 %v516
  %v553 = vpack.c.b16 %v529, %v529
  %v554 = vpack.c.b16 %v530, %v530
  %v555 = vpack.c.b16 %v531, %v531
  %v556 = vpack.c.b16 %v532, %v532
  %v557 = vpack.c.b16 %v533, %v533
  %v558 = vpack.c.b16 %v534, %v534
  %v559 = vpack.c.b16 %v535, %v535
  %v560 = vpack.c.b16 %v536, %v536
  %v561 = vpack.c.b16 %v537, %v537
  %v562 = vpack.c.b16 %v538, %v538
  %v563 = vpack.c.b16 %v539, %v539
  %v564 = vpack.c.b16 %v540, %v540
  %v565 = vpack.c.b16 %v541, %v541
  %v566 = vpack.c.b16 %v542, %v542
  %v567 = vpack.c.b16 %v543, %v543
  %v568 = vpack.c.b16 %v544, %v544
  %v569 = vpack.c.b16 %v545, %v545
  %v570 = vpack.c.b16 %v546, %v546
  %v571 = vpack.c.b16 %v547, %v547
  %v572 = vpack.c.b16 %v548, %v548
  %v573 = vpack.c.b16 %v549, %v549
  %v574 = vpack.c.b16 %v550, %v550
  %v575 = vpack.c.b16 %v551, %v551
  %v576 = vpack.c.b16 %v552, %v552
  %601 = vst [vmem:[%s4] sm:$0xf] %v553
  %602 = vst [vmem:[%s4 + $0x4] sm:$0xf] %v554
  %603 = vst [vmem:[%s4 + $0x8] sm:$0xf] %v555
  %604 = vst [vmem:[%s4 + $0xc] sm:$0xf] %v556
  %605 = vst [vmem:[%s4 + $0x10] sm:$0xf] %v557
  %606 = vst [vmem:[%s4 + $0x14] sm:$0xf] %v558
  %607 = vst [vmem:[%s4 + $0x18] sm:$0xf] %v559
  %608 = vst [vmem:[%s4 + $0x1c] sm:$0xf] %v560
  %609 = vst [vmem:[%s4 + $0x20] sm:$0xf] %v561
  %610 = vst [vmem:[%s4 + $0x24] sm:$0xf] %v562
  %611 = vst [vmem:[%s4 + $0x28] sm:$0xf] %v563
  %612 = vst [vmem:[%s4 + $0x2c] sm:$0xf] %v564
  %613 = vst [vmem:[%s4 + $0x30] sm:$0xf] %v565
  %614 = vst [vmem:[%s4 + $0x34] sm:$0xf] %v566
  %615 = vst [vmem:[%s4 + $0x38] sm:$0xf] %v567
  %616 = vst [vmem:[%s4 + $0x3c] sm:$0xf] %v568
  %617 = vst [vmem:[%s4 + $0x40] sm:$0xf] %v569
  %618 = vst [vmem:[%s4 + $0x44] sm:$0xf] %v570
  %619 = vst [vmem:[%s4 + $0x48] sm:$0xf] %v571
  %620 = vst [vmem:[%s4 + $0x4c] sm:$0xf] %v572
  %621 = vst [vmem:[%s4 + $0x50] sm:$0xf] %v573
  %622 = vst [vmem:[%s4 + $0x54] sm:$0xf] %v574
  %623 = vst [vmem:[%s4 + $0x58] sm:$0xf] %v575
  %624 = vst [vmem:[%s4 + $0x5c] sm:$0xf] %v576
  // Predicated region
  $region18: #{vision_decoder_forward.7} parent=0 // pred_check
    _
  $region19: #{vision_decoder_forward.7} parent=0 // pred_check_branch
    %626 = sbr.rel (0) target = $region21
  $region20: #{vision_decoder_forward.7} parent=0 // pred_region
    _
  $region21: #{vision_decoder_forward.7} parent=0 // pred_fallthru
    _
  // Predicated region
  $region22: #{vision_decoder_forward.7} parent=0 // pred_check
    _
  $region23: #{vision_decoder_forward.7} parent=0 // pred_check_branch
    %628 = sbr.rel (0) target = $region25
  $region24: #{vision_decoder_forward.7} parent=0 // pred_region
    _
  $region25: #{vision_decoder_forward.7} parent=0 // pred_fallthru
    _

// kernel: vision_decoder_forward.8
$region0: #{vision_decoder_forward.8}
  #allocation0 [shape = 'u32[]', space=smem, size = 0x4, offset = 0x4, fixed_abs, tag = 'smem constant byte address 0x4 - core index']
  #allocation1 [shape = 'u32[144,128]{1,0:T(1,128)}', space=vmem, size = 0x12000, scoped, tag = 'internal scratch']
  %s0 = inlined_call_operand.vmem [shape: bf16[768,128], index: 0, kind: input, shape index: {}]
  %s1 = inlined_call_operand.vmem [shape: bf16[128,64], index: 1, kind: input, shape index: {}]
  %s2 = inlined_call_operand.vmem [shape: f32[1,64], index: 2, kind: input, shape index: {}]
  %s3 = inlined_call_operand.vmem [shape: f32[1,64], index: 3, kind: input, shape index: {}]
  %s4 = inlined_call_operand.vmem [shape: bf16[768,64], index: 4, kind: output, shape index: {}]
  %s5 = sld [smem:[#allocation0]]
  $region49: #{vision_decoder_forward.8} parent=0
    _
  %s7 = ssub.s32 1, %s5
  %s8 = scalar_select 0, %s7, %s5
  loop: start=0, step=1, limit=5
  $region2: #{vision_decoder_forward.8} parent=0 // loop_pre_header
    _
  $region3: #{vision_decoder_forward.8} parent=0 // loop_header
    %s10 = sphi 0, %s14
    %p11 = scmp.ge.s32.totalorder %s10, 5
    %s20 = sphi 0, %s22
    %s23 = sphi 0, %s20
    %s24 = sphi 0, %s23
    %s40 = sphi 0, %s24
    %s44 = sphi 0, %s44
    %s46 = sphi 0, %s44
    %s47 = sphi 0, %s46
    %s61 = sphi 0, %s47
    %s65 = sphi 0, %s65
    %s67 = sphi 0, %s65
    %s68 = sphi 0, %s67
    %s82 = sphi 0, %s68
    %s86 = sphi 0, %s86
    %s88 = sphi 0, %s86
    %s89 = sphi 0, %s88
    %s103 = sphi 0, %s89
    %s109 = sphi 0, %s111
    %s112 = sphi 0, %s109
    %s113 = sphi 0, %s112
    %s129 = sphi 0, %s113
  $region4: #{vision_decoder_forward.8} parent=0 // loop_header_branch
    %13 = sbr.rel (%p11) target = $region8
  $region5: #{vision_decoder_forward.8} parent=0 // loop_body
    %s15 = ssub.s32 %s10, 1
    %s16 = ssub.s32 %s10, 2
    %s17 = sadd.s32 %s10, 1
    %s18 = ssub.s32 %s10, %s17
    %p19 = scmp.eq.s32.totalorder %s18, 0
    %s21 = sadd.s32 %s20, 1
    %s22 = scalar_select %p19, %s20, %s21
    %p25 = pneg %p19
    %p26 = scmp.eq.s32.totalorder %s10, 2
    %p27 = por %p25, %p26
    %p28 = scmp.ne.s32.totalorder %s20, %s23
    %p29 = scmp.eq.s32.totalorder %s10, 0
    %p30 = por %p28, %p29
    %p31 = scmp.ne.s32.totalorder %s20, %s23
    %p32 = scmp.eq.s32.totalorder %s15, 2
    %p33 = por %p31, %p32
    %p34 = scmp.ne.s32.totalorder %s23, %s24
    %p35 = scmp.eq.s32.totalorder %s15, 0
    %p36 = por %p34, %p35
    %p37 = scmp.ne.s32.totalorder %s23, %s24
    %p38 = scmp.eq.s32.totalorder %s16, 2
    %p39 = por %p37, %p38
    %p41 = scmp.ne.s32.totalorder %s24, %s40
    %p42 = scmp.eq.s32.totalorder %s16, 0
    %p43 = por %p41, %p42
    %s45 = sadd.s32 %s44, 1
    %p48 = scmp.eq.s32.totalorder %s10, 2
    %p49 = scmp.ne.s32.totalorder %s44, %s46
    %p50 = scmp.eq.s32.totalorder %s10, 0
    %p51 = por %p49, %p50
    %p52 = scmp.ne.s32.totalorder %s44, %s46
    %p53 = scmp.eq.s32.totalorder %s15, 2
    %p54 = por %p52, %p53
    %p55 = scmp.ne.s32.totalorder %s46, %s47
    %p56 = scmp.eq.s32.totalorder %s15, 0
    %p57 = por %p55, %p56
    %p58 = scmp.ne.s32.totalorder %s46, %s47
    %p59 = scmp.eq.s32.totalorder %s16, 2
    %p60 = por %p58, %p59
    %p62 = scmp.ne.s32.totalorder %s47, %s61
    %p63 = scmp.eq.s32.totalorder %s16, 0
    %p64 = por %p62, %p63
    %s66 = sadd.s32 %s65, 1
    %p69 = scmp.eq.s32.totalorder %s10, 2
    %p70 = scmp.ne.s32.totalorder %s65, %s67
    %p71 = scmp.eq.s32.totalorder %s10, 0
    %p72 = por %p70, %p71
    %p73 = scmp.ne.s32.totalorder %s65, %s67
    %p74 = scmp.eq.s32.totalorder %s15, 2
    %p75 = por %p73, %p74
    %p76 = scmp.ne.s32.totalorder %s67, %s68
    %p77 = scmp.eq.s32.totalorder %s15, 0
    %p78 = por %p76, %p77
    %p79 = scmp.ne.s32.totalorder %s67, %s68
    %p80 = scmp.eq.s32.totalorder %s16, 2
    %p81 = por %p79, %p80
    %p83 = scmp.ne.s32.totalorder %s68, %s82
    %p84 = scmp.eq.s32.totalorder %s16, 0
    %p85 = por %p83, %p84
    %s87 = sadd.s32 %s86, 1
    %p90 = scmp.eq.s32.totalorder %s10, 2
    %p91 = scmp.ne.s32.totalorder %s86, %s88
    %p92 = scmp.eq.s32.totalorder %s10, 0
    %p93 = por %p91, %p92
    %p94 = scmp.ne.s32.totalorder %s86, %s88
    %p95 = scmp.eq.s32.totalorder %s15, 2
    %p96 = por %p94, %p95
    %p97 = scmp.ne.s32.totalorder %s88, %s89
    %p98 = scmp.eq.s32.totalorder %s15, 0
    %p99 = por %p97, %p98
    %p100 = scmp.ne.s32.totalorder %s88, %s89
    %p101 = scmp.eq.s32.totalorder %s16, 2
    %p102 = por %p100, %p101
    %p104 = scmp.ne.s32.totalorder %s89, %s103
    %p105 = scmp.eq.s32.totalorder %s16, 0
    %p106 = por %p104, %p105
    %s107 = ssub.s32 %s10, %s17
    %p108 = scmp.eq.s32.totalorder %s107, 0
    %s110 = sadd.s32 %s109, 1
    %s111 = scalar_select %p108, %s109, %s110
    %p114 = pneg %p108
    %p115 = scmp.eq.s32.totalorder %s10, 2
    %p116 = por %p114, %p115
    %p117 = scmp.ne.s32.totalorder %s109, %s112
    %p118 = scmp.eq.s32.totalorder %s10, 0
    %p119 = por %p117, %p118
    %p120 = scmp.ne.s32.totalorder %s109, %s112
    %p121 = scmp.eq.s32.totalorder %s15, 2
    %p122 = por %p120, %p121
    %p123 = scmp.ne.s32.totalorder %s112, %s113
    %p124 = scmp.eq.s32.totalorder %s15, 0
    %p125 = por %p123, %p124
    %p126 = scmp.ne.s32.totalorder %s112, %s113
    %p127 = scmp.eq.s32.totalorder %s16, 2
    %p128 = por %p126, %p127
    %p130 = scmp.ne.s32.totalorder %s113, %s129
    %p131 = scmp.eq.s32.totalorder %s16, 0
    %p132 = por %p130, %p131
    %p133 = scmp.le.s32.totalorder 1, %s10
    %p134 = scmp.lt.s32.totalorder %s10, 4
    %p135 = pnand %p133, %p134
    %p136 = pneg %p135
    // Predicated region
    $region9: #{vision_decoder_forward.8} parent=5 // pred_check
      _
    $region10: #{vision_decoder_forward.8} parent=5 // pred_check_branch
      %138 = sbr.rel (%p135) target = $region12
    $region11: #{vision_decoder_forward.8} parent=5 // pred_region
      %s139 = ssub.s32 %s10, 1
      // Predicated region
      $region13: #{vision_decoder_forward.8} parent=11 // pred_check
        %p140 = pneg %p57
      $region14: #{vision_decoder_forward.8} parent=11 // pred_check_branch
        %142 = sbr.rel (%p140) target = $region16
      $region15: #{vision_decoder_forward.8} parent=11 // pred_region
        _
      $region16: #{vision_decoder_forward.8} parent=11 // pred_fallthru
        _
      // Predicated region
      $region17: #{vision_decoder_forward.8} parent=11 // pred_check
        %p143 = pneg %p78
      $region18: #{vision_decoder_forward.8} parent=11 // pred_check_branch
        %145 = sbr.rel (%p143) target = $region20
      $region19: #{vision_decoder_forward.8} parent=11 // pred_region
        _
      $region20: #{vision_decoder_forward.8} parent=11 // pred_fallthru
        _
      // Predicated region
      $region21: #{vision_decoder_forward.8} parent=11 // pred_check
        %p146 = pneg %p99
      $region22: #{vision_decoder_forward.8} parent=11 // pred_check_branch
        %148 = sbr.rel (%p146) target = $region24
      $region23: #{vision_decoder_forward.8} parent=11 // pred_region
        _
      $region24: #{vision_decoder_forward.8} parent=11 // pred_fallthru
        _
    $region12: #{vision_decoder_forward.8} parent=5 // pred_fallthru
      _
    %p149 = scmp.lt.s32.totalorder %s10, 3
    // Predicated region
    $region25: #{vision_decoder_forward.8} parent=5 // pred_check
      %p150 = pneg %p149
    $region26: #{vision_decoder_forward.8} parent=5 // pred_check_branch
      %152 = sbr.rel (%p150) target = $region28
    $region27: #{vision_decoder_forward.8} parent=5 // pred_region
      // Predicated region
      $region29: #{vision_decoder_forward.8} parent=27 // pred_check
        %p153 = pneg %p30
      $region30: #{vision_decoder_forward.8} parent=27 // pred_check_branch
        %155 = sbr.rel (%p153) target = $region32
      $region31: #{vision_decoder_forward.8} parent=27 // pred_region
        %s156 = smul.u32 32, %s10
        %p157 = scmp.lt.s32.totalorder %s156, 95
        %s158 = scalar_select %p157, %s156, 95
        %s159 = smul.addr %s158, 4
        %s160 = scalar_lea.vmem %s0, %s159
        %s161 = smul.u32 32, %s10
      $region32: #{vision_decoder_forward.8} parent=27 // pred_fallthru
        _
    $region28: #{vision_decoder_forward.8} parent=5 // pred_fallthru
      _
    %p162 = scmp.le.s32.totalorder 1, %s10
    %p163 = scmp.lt.s32.totalorder %s10, 4
    %p164 = pnand %p162, %p163
    %p165 = pneg %p164
    // Predicated region
    $region33: #{vision_decoder_forward.8} parent=5 // pred_check
      _
    $region34: #{vision_decoder_forward.8} parent=5 // pred_check_branch
      %167 = sbr.rel (%p164) target = $region36
    $region35: #{vision_decoder_forward.8} parent=5 // pred_region
      %s168 = ssub.s32 %s10, 1
      %s169 = smul.u32 32, %s15
      %p170 = scmp.lt.s32.totalorder %s169, 95
      %s171 = scalar_select %p170, %s169, 95
      %s172 = smul.addr %s171, 4
      %s173 = scalar_lea.vmem %s0, %s172
      %p174 = pneg %p36
      %p175 = pneg %p33
      %p176 = pneg %p57
      %p177 = pneg %p54
      %p178 = pneg %p78
      %p179 = pneg %p75
      %p180 = pneg %p99
      %p181 = pneg %p96
      %p182 = pneg %p125
      %p183 = pneg %p122
      %s184 = smul.u32 32, %s15
      %p185 = scmp.lt.s32.totalorder %s184, 95
      %s186 = scalar_select %p185, %s184, 95
      %s187 = smul.addr %s186, 4
      %s188 = scalar_lea.vmem %s4, %s187
      %s189 = smul.u32 32, %s15
      %p190 = scmp.lt.s32.totalorder %s189, 95
      %s191 = scalar_select %p190, %s189, 95
      %s192 = smul.addr %s191, 4
      %s193 = scalar_lea.vmem %s0, %s192
      %s194 = smul.u32 32, %s15
      %s195 = smul.u32 32, %s15
      %p196 = scmp.lt.s32.totalorder %s195, 95
      %s197 = scalar_select %p196, %s195, 95
      %s198 = smul.addr %s197, 4
      %s199 = scalar_lea.vmem %s4, %s198
      %s200 = smul.u32 32, %s15
      %v202 = vld [vmem:[%s193] sm:$0xf]
      %v203 = vld [vmem:[%s193 + $0x4] sm:$0xf]
      %v204 = vld [vmem:[%s193 + $0x8] sm:$0xf]
      %v205 = vld [vmem:[%s193 + $0xc] sm:$0xf]
      %v206 = vld [vmem:[%s193 + $0x10] sm:$0xf]
      %v207 = vld [vmem:[%s193 + $0x14] sm:$0xf]
      %v208 = vld [vmem:[%s193 + $0x18] sm:$0xf]
      %v209 = vld [vmem:[%s193 + $0x1c] sm:$0xf]
      %v210 = vld [vmem:[%s193 + $0x20] sm:$0xf]
      %v211 = vld [vmem:[%s193 + $0x24] sm:$0xf]
      %v212 = vld [vmem:[%s193 + $0x28] sm:$0xf]
      %v213 = vld [vmem:[%s193 + $0x2c] sm:$0xf]
      %v214 = vld [vmem:[%s193 + $0x30] sm:$0xf]
      %v215 = vld [vmem:[%s193 + $0x34] sm:$0xf]
      %v216 = vld [vmem:[%s193 + $0x38] sm:$0xf]
      %v217 = vld [vmem:[%s193 + $0x3c] sm:$0xf]
      %v218 = vld [vmem:[%s193 + $0x40] sm:$0xf]
      %v219 = vld [vmem:[%s193 + $0x44] sm:$0xf]
      %v220 = vld [vmem:[%s193 + $0x48] sm:$0xf]
      %v221 = vld [vmem:[%s193 + $0x4c] sm:$0xf]
      %v222 = vld [vmem:[%s193 + $0x50] sm:$0xf]
      %v223 = vld [vmem:[%s193 + $0x54] sm:$0xf]
      %v224 = vld [vmem:[%s193 + $0x58] sm:$0xf]
      %v225 = vld [vmem:[%s193 + $0x5c] sm:$0xf]
      %v226 = vld [vmem:[%s193 + $0x60] sm:$0xf]
      %v227 = vld [vmem:[%s193 + $0x64] sm:$0xf]
      %v228 = vld [vmem:[%s193 + $0x68] sm:$0xf]
      %v229 = vld [vmem:[%s193 + $0x6c] sm:$0xf]
      %v230 = vld [vmem:[%s193 + $0x70] sm:$0xf]
      %v231 = vld [vmem:[%s193 + $0x74] sm:$0xf]
      %v232 = vld [vmem:[%s193 + $0x78] sm:$0xf]
      %v233 = vld [vmem:[%s193 + $0x7c] sm:$0xf]
      %v234 = vld [vmem:[%s1] sm:$0xf]
      %v235 = vld [vmem:[%s1 + $0x4] sm:$0xf]
      %v236 = vld [vmem:[%s1 + $0x8] sm:$0xf]
      %v237 = vld [vmem:[%s1 + $0xc] sm:$0xf]
      %v238 = vld [vmem:[%s1 + $0x10] sm:$0xf]
      %v239 = vld [vmem:[%s1 + $0x14] sm:$0xf]
      %v240 = vld [vmem:[%s1 + $0x18] sm:$0xf]
      %v241 = vld [vmem:[%s1 + $0x1c] sm:$0xf]
      %v242 = vld [vmem:[%s1 + $0x20] sm:$0xf]
      %v243 = vld [vmem:[%s1 + $0x24] sm:$0xf]
      %v244 = vld [vmem:[%s1 + $0x28] sm:$0xf]
      %v245 = vld [vmem:[%s1 + $0x2c] sm:$0xf]
      %v246 = vld [vmem:[%s1 + $0x30] sm:$0xf]
      %v247 = vld [vmem:[%s1 + $0x34] sm:$0xf]
      %v248 = vld [vmem:[%s1 + $0x38] sm:$0xf]
      %v249 = vld [vmem:[%s1 + $0x3c] sm:$0xf]
      %v282 = vunpack.c.l.b16 %v202
      %v283 = vunpack.c.l.b16 %v203
      %v284 = vunpack.c.l.b16 %v204
      %v285 = vunpack.c.l.b16 %v205
      %v286 = vunpack.c.l.b16 %v206
      %v287 = vunpack.c.l.b16 %v207
      %v288 = vunpack.c.l.b16 %v208
      %v289 = vunpack.c.l.b16 %v209
      %v290 = vunpack.c.l.b16 %v210
      %v291 = vunpack.c.l.b16 %v211
      %v292 = vunpack.c.l.b16 %v212
      %v293 = vunpack.c.l.b16 %v213
      %v294 = vunpack.c.l.b16 %v214
      %v295 = vunpack.c.l.b16 %v215
      %v296 = vunpack.c.l.b16 %v216
      %v297 = vunpack.c.l.b16 %v217
      %v298 = vunpack.c.l.b16 %v218
      %v299 = vunpack.c.l.b16 %v219
      %v300 = vunpack.c.l.b16 %v220
      %v301 = vunpack.c.l.b16 %v221
      %v302 = vunpack.c.l.b16 %v222
      %v303 = vunpack.c.l.b16 %v223
      %v304 = vunpack.c.l.b16 %v224
      %v305 = vunpack.c.l.b16 %v225
      %v306 = vunpack.c.l.b16 %v226
      %v307 = vunpack.c.l.b16 %v227
      %v308 = vunpack.c.l.b16 %v228
      %v309 = vunpack.c.l.b16 %v229
      %v310 = vunpack.c.l.b16 %v230
      %v311 = vunpack.c.l.b16 %v231
      %v312 = vunpack.c.l.b16 %v232
      %v313 = vunpack.c.l.b16 %v233
      %v314 = vpack.c.b16 %v283, %v282
      %v315 = vpack.c.b16 %v285, %v284
      %v316 = vpack.c.b16 %v287, %v286
      %v317 = vpack.c.b16 %v289, %v288
      %v318 = vpack.c.b16 %v291, %v290
      %v319 = vpack.c.b16 %v293, %v292
      %v320 = vpack.c.b16 %v295, %v294
      %v321 = vpack.c.b16 %v297, %v296
      %v322 = vpack.c.b16 %v299, %v298
      %v323 = vpack.c.b16 %v301, %v300
      %v324 = vpack.c.b16 %v303, %v302
      %v325 = vpack.c.b16 %v305, %v304
      %v326 = vpack.c.b16 %v307, %v306
      %v327 = vpack.c.b16 %v309, %v308
      %v328 = vpack.c.b16 %v311, %v310
      %v329 = vpack.c.b16 %v313, %v312
      %v362 = vunpack.c.l.b16 %v234
      %v363 = vunpack.c.l.b16 %v235
      %v364 = vunpack.c.l.b16 %v236
      %v365 = vunpack.c.l.b16 %v237
      %v366 = vunpack.c.l.b16 %v238
      %v367 = vunpack.c.l.b16 %v239
      %v368 = vunpack.c.l.b16 %v240
      %v369 = vunpack.c.l.b16 %v241
      %v370 = vunpack.c.l.b16 %v242
      %v371 = vunpack.c.l.b16 %v243
      %v372 = vunpack.c.l.b16 %v244
      %v373 = vunpack.c.l.b16 %v245
      %v374 = vunpack.c.l.b16 %v246
      %v375 = vunpack.c.l.b16 %v247
      %v376 = vunpack.c.l.b16 %v248
      %v377 = vunpack.c.l.b16 %v249
      %v378 = vpack.c.b16 %v363, %v362
      %v379 = vpack.c.b16 %v365, %v364
      %v380 = vpack.c.b16 %v367, %v366
      %v381 = vpack.c.b16 %v369, %v368
      %v382 = vpack.c.b16 %v371, %v370
      %v383 = vpack.c.b16 %v373, %v372
      %v384 = vpack.c.b16 %v375, %v374
      %v385 = vpack.c.b16 %v377, %v376
      %394 = vmatprep.subr.bf16.mxu0 0
      %395 = vmatpush1.bf16.msra.mxu0 %v378
      %396 = vmatprep.subr.bf16.mxu0 0
      %397 = vmatpush1.bf16.msra.mxu0 %v379
      %398 = vmatprep.subr.bf16.mxu0 0
      %399 = vmatpush1.bf16.msra.mxu0 %v380
      %400 = vmatprep.subr.bf16.mxu0 0
      %401 = vmatpush1.bf16.msra.mxu0 %v381
      %402 = vmatprep.subr.bf16.mxu0 0
      %403 = vmatpush1.bf16.msra.mxu0 %v382
      %404 = vmatprep.subr.bf16.mxu0 0
      %405 = vmatpush1.bf16.msra.mxu0 %v383
      %406 = vmatprep.subr.bf16.mxu0 0
      %407 = vmatpush1.bf16.msra.mxu0 %v384
      %408 = vmatprep.subr.bf16.mxu0 0
      %409 = vmatpush1.bf16.msra.mxu0 %v385
      %410 = vmatprep.subr.bf16.mxu0 0
      %411 = vmatpush1.bf16.msra.mxu0 0
      %412 = vmatprep.subr.bf16.mxu0 0
      %413 = vmatpush1.bf16.msra.mxu0 0
      %414 = vmatprep.subr.bf16.mxu0 0
      %415 = vmatpush1.bf16.msra.mxu0 0
      %416 = vmatprep.subr.bf16.mxu0 0
      %417 = vmatpush1.bf16.msra.mxu0 0
      %418 = vmatprep.subr.bf16.mxu0 0
      %419 = vmatpush1.bf16.msra.mxu0 0
      %420 = vmatprep.subr.bf16.mxu0 0
      %421 = vmatpush1.bf16.msra.mxu0 0
      %422 = vmatprep.subr.bf16.mxu0 0
      %423 = vmatpush1.bf16.msra.mxu0 0
      %424 = vmatprep.subr.bf16.mxu0 0
      %425 = vmatpush1.bf16.msra.mxu0 0
      %426 = vmatprep.mubr.bf16.mxu0 0
      %427 = vmatmul.mubr.bf16.gmra.mrb[0].mxu0 %v314
      %v428 = vpop.f32.mrb[0].mxu0
      %v429 = vadd.f32 0.0, %v428
      %v430 = vpop.f32.mrb[0].mxu0
      %v431 = vpop.f32.mrb[0].mxu0
      %v432 = vadd.f32 0.0, %v431
      %v433 = vpop.f32.mrb[0].mxu0
      %434 = vmatprep.mubr.bf16.mxu0 0
      %435 = vmatmul.mubr.bf16.gmra.mrb[0].mxu0 %v315
      %v436 = vpop.f32.mrb[0].mxu0
      %v437 = vadd.f32 0.0, %v436
      %v438 = vpop.f32.mrb[0].mxu0
      %v439 = vpop.f32.mrb[0].mxu0
      %v440 = vadd.f32 0.0, %v439
      %v441 = vpop.f32.mrb[0].mxu0
      %442 = vmatprep.mubr.bf16.mxu0 0
      %443 = vmatmul.mubr.bf16.gmra.mrb[0].mxu0 %v316
      %v444 = vpop.f32.mrb[0].mxu0
      %v445 = vadd.f32 0.0, %v444
      %v446 = vpop.f32.mrb[0].mxu0
      %v447 = vpop.f32.mrb[0].mxu0
      %v448 = vadd.f32 0.0, %v447
      %v449 = vpop.f32.mrb[0].mxu0
      %450 = vmatprep.mubr.bf16.mxu0 0
      %451 = vmatmul.mubr.bf16.gmra.mrb[0].mxu0 %v317
      %v452 = vpop.f32.mrb[0].mxu0
      %v453 = vadd.f32 0.0, %v452
      %v454 = vpop.f32.mrb[0].mxu0
      %v455 = vpop.f32.mrb[0].mxu0
      %v456 = vadd.f32 0.0, %v455
      %v457 = vpop.f32.mrb[0].mxu0
      %458 = vmatprep.mubr.bf16.mxu0 0
      %459 = vmatmul.mubr.bf16.gmra.mrb[0].mxu0 %v318
      %v460 = vpop.f32.mrb[0].mxu0
      %v461 = vadd.f32 0.0, %v460
      %v462 = vpop.f32.mrb[0].mxu0
      %v463 = vpop.f32.mrb[0].mxu0
      %v464 = vadd.f32 0.0, %v463
      %v465 = vpop.f32.mrb[0].mxu0
      %466 = vmatprep.mubr.bf16.mxu0 0
      %467 = vmatmul.mubr.bf16.gmra.mrb[0].mxu0 %v319
      %v468 = vpop.f32.mrb[0].mxu0
      %v469 = vadd.f32 0.0, %v468
      %v470 = vpop.f32.mrb[0].mxu0
      %v471 = vpop.f32.mrb[0].mxu0
      %v472 = vadd.f32 0.0, %v471
      %v473 = vpop.f32.mrb[0].mxu0
      %474 = vmatprep.mubr.bf16.mxu0 0
      %475 = vmatmul.mubr.bf16.gmra.mrb[0].mxu0 %v320
      %v476 = vpop.f32.mrb[0].mxu0
      %v477 = vadd.f32 0.0, %v476
      %v478 = vpop.f32.mrb[0].mxu0
      %v479 = vpop.f32.mrb[0].mxu0
      %v480 = vadd.f32 0.0, %v479
      %v481 = vpop.f32.mrb[0].mxu0
      %482 = vmatprep.mubr.bf16.mxu0 0
      %483 = vmatmul.mubr.bf16.gmra.mrb[0].mxu0 %v321
      %v484 = vpop.f32.mrb[0].mxu0
      %v485 = vadd.f32 0.0, %v484
      %v486 = vpop.f32.mrb[0].mxu0
      %v487 = vpop.f32.mrb[0].mxu0
      %v488 = vadd.f32 0.0, %v487
      %v489 = vpop.f32.mrb[0].mxu0
      %490 = vmatprep.mubr.bf16.mxu0 0
      %491 = vmatmul.mubr.bf16.gmra.mrb[0].mxu0 %v322
      %v492 = vpop.f32.mrb[0].mxu0
      %v493 = vadd.f32 0.0, %v492
      %v494 = vpop.f32.mrb[0].mxu0
      %v495 = vpop.f32.mrb[0].mxu0
      %v496 = vadd.f32 0.0, %v495
      %v497 = vpop.f32.mrb[0].mxu0
      %498 = vmatprep.mubr.bf16.mxu0 0
      %499 = vmatmul.mubr.bf16.gmra.mrb[0].mxu0 %v323
      %v500 = vpop.f32.mrb[0].mxu0
      %v501 = vadd.f32 0.0, %v500
      %v502 = vpop.f32.mrb[0].mxu0
      %v503 = vpop.f32.mrb[0].mxu0
      %v504 = vadd.f32 0.0, %v503
      %v505 = vpop.f32.mrb[0].mxu0
      %506 = vmatprep.mubr.bf16.mxu0 0
      %507 = vmatmul.mubr.bf16.gmra.mrb[0].mxu0 %v324
      %v508 = vpop.f32.mrb[0].mxu0
      %v509 = vadd.f32 0.0, %v508
      %v510 = vpop.f32.mrb[0].mxu0
      %v511 = vpop.f32.mrb[0].mxu0
      %v512 = vadd.f32 0.0, %v511
      %v513 = vpop.f32.mrb[0].mxu0
      %514 = vmatprep.mubr.bf16.mxu0 0
      %515 = vmatmul.mubr.bf16.gmra.mrb[0].mxu0 %v325
      %v516 = vpop.f32.mrb[0].mxu0
      %v517 = vadd.f32 0.0, %v516
      %v518 = vpop.f32.mrb[0].mxu0
      %v519 = vpop.f32.mrb[0].mxu0
      %v520 = vadd.f32 0.0, %v519
      %v521 = vpop.f32.mrb[0].mxu0
      %522 = vmatprep.mubr.bf16.mxu0 0
      %523 = vmatmul.mubr.bf16.gmra.mrb[0].mxu0 %v326
      %v524 = vpop.f32.mrb[0].mxu0
      %v525 = vadd.f32 0.0, %v524
      %v526 = vpop.f32.mrb[0].mxu0
      %v527 = vpop.f32.mrb[0].mxu0
      %v528 = vadd.f32 0.0, %v527
      %v529 = vpop.f32.mrb[0].mxu0
      %530 = vmatprep.mubr.bf16.mxu0 0
      %531 = vmatmul.mubr.bf16.gmra.mrb[0].mxu0 %v327
      %v532 = vpop.f32.mrb[0].mxu0
      %v533 = vadd.f32 0.0, %v532
      %v534 = vpop.f32.mrb[0].mxu0
      %v535 = vpop.f32.mrb[0].mxu0
      %v536 = vadd.f32 0.0, %v535
      %v537 = vpop.f32.mrb[0].mxu0
      %538 = vmatprep.mubr.bf16.mxu0 0
      %539 = vmatmul.mubr.bf16.gmra.mrb[0].mxu0 %v328
      %v540 = vpop.f32.mrb[0].mxu0
      %v541 = vadd.f32 0.0, %v540
      %v542 = vpop.f32.mrb[0].mxu0
      %v543 = vpop.f32.mrb[0].mxu0
      %v544 = vadd.f32 0.0, %v543
      %v545 = vpop.f32.mrb[0].mxu0
      %546 = vmatprep.mubr.bf16.mxu0 0
      %547 = vmatmul.mubr.bf16.gmra.mrb[0].mxu0 %v329
      %v548 = vpop.f32.mrb[0].mxu0
      %v549 = vadd.f32 0.0, %v548
      %v550 = vpop.f32.mrb[0].mxu0
      %v551 = vpop.f32.mrb[0].mxu0
      %v552 = vadd.f32 0.0, %v551
      %v553 = vpop.f32.mrb[0].mxu0
      %554 = vdwg.mxu0
      %v555 = vld [vmem:[%s2] sm:$0x1]
      %v557 = vlaneseq
      %v558 = vshrl.u32 %v557, 7
      %v559 = vsub.s32 0, %v558
      %v560 = vrot.slane %v555, %v559
      %v562 = vmul.f32 %v429, %v560
      %v563 = vmul.f32 %v432, %v560
      %v564 = vmul.f32 %v437, %v560
      %v565 = vmul.f32 %v440, %v560
      %v566 = vmul.f32 %v445, %v560
      %v567 = vmul.f32 %v448, %v560
      %v568 = vmul.f32 %v453, %v560
      %v569 = vmul.f32 %v456, %v560
      %v570 = vmul.f32 %v461, %v560
      %v571 = vmul.f32 %v464, %v560
      %v572 = vmul.f32 %v469, %v560
      %v573 = vmul.f32 %v472, %v560
      %v574 = vmul.f32 %v477, %v560
      %v575 = vmul.f32 %v480, %v560
      %v576 = vmul.f32 %v485, %v560
      %v577 = vmul.f32 %v488, %v560
      %v578 = vmul.f32 %v493, %v560
      %v579 = vmul.f32 %v496, %v560
      %v580 = vmul.f32 %v501, %v560
      %v581 = vmul.f32 %v504, %v560
      %v582 = vmul.f32 %v509, %v560
      %v583 = vmul.f32 %v512, %v560
      %v584 = vmul.f32 %v517, %v560
      %v585 = vmul.f32 %v520, %v560
      %v586 = vmul.f32 %v525, %v560
      %v587 = vmul.f32 %v528, %v560
      %v588 = vmul.f32 %v533, %v560
      %v589 = vmul.f32 %v536, %v560
      %v590 = vmul.f32 %v541, %v560
      %v591 = vmul.f32 %v544, %v560
      %v592 = vmul.f32 %v549, %v560
      %v593 = vmul.f32 %v552, %v560
      %v594 = vld [vmem:[%s3] sm:$0x1]
      %v596 = vlaneseq
      %v597 = vshrl.u32 %v596, 7
      %v598 = vsub.s32 0, %v597
      %v599 = vrot.slane %v594, %v598
      %v601 = vadd.f32 %v562, %v599
      %v602 = vadd.f32 %v563, %v599
      %v603 = vadd.f32 %v564, %v599
      %v604 = vadd.f32 %v565, %v599
      %v605 = vadd.f32 %v566, %v599
      %v606 = vadd.f32 %v567, %v599
      %v607 = vadd.f32 %v568, %v599
      %v608 = vadd.f32 %v569, %v599
      %v609 = vadd.f32 %v570, %v599
      %v610 = vadd.f32 %v571, %v599
      %v611 = vadd.f32 %v572, %v599
      %v612 = vadd.f32 %v573, %v599
      %v613 = vadd.f32 %v574, %v599
      %v614 = vadd.f32 %v575, %v599
      %v615 = vadd.f32 %v576, %v599
      %v616 = vadd.f32 %v577, %v599
      %v617 = vadd.f32 %v578, %v599
      %v618 = vadd.f32 %v579, %v599
      %v619 = vadd.f32 %v580, %v599
      %v620 = vadd.f32 %v581, %v599
      %v621 = vadd.f32 %v582, %v599
      %v622 = vadd.f32 %v583, %v599
      %v623 = vadd.f32 %v584, %v599
      %v624 = vadd.f32 %v585, %v599
      %v625 = vadd.f32 %v586, %v599
      %v626 = vadd.f32 %v587, %v599
      %v627 = vadd.f32 %v588, %v599
      %v628 = vadd.f32 %v589, %v599
      %v629 = vadd.f32 %v590, %v599
      %v630 = vadd.f32 %v591, %v599
      %v631 = vadd.f32 %v592, %v599
      %v632 = vadd.f32 %v593, %v599
      %v633 = vmax.f32 %v601, 0.0
      %v634 = vmax.f32 %v602, 0.0
      %v635 = vmax.f32 %v603, 0.0
      %v636 = vmax.f32 %v604, 0.0
      %v637 = vmax.f32 %v605, 0.0
      %v638 = vmax.f32 %v606, 0.0
      %v639 = vmax.f32 %v607, 0.0
      %v640 = vmax.f32 %v608, 0.0
      %v641 = vmax.f32 %v609, 0.0
      %v642 = vmax.f32 %v610, 0.0
      %v643 = vmax.f32 %v611, 0.0
      %v644 = vmax.f32 %v612, 0.0
      %v645 = vmax.f32 %v613, 0.0
      %v646 = vmax.f32 %v614, 0.0
      %v647 = vmax.f32 %v615, 0.0
      %v648 = vmax.f32 %v616, 0.0
      %v649 = vmax.f32 %v617, 0.0
      %v650 = vmax.f32 %v618, 0.0
      %v651 = vmax.f32 %v619, 0.0
      %v652 = vmax.f32 %v620, 0.0
      %v653 = vmax.f32 %v621, 0.0
      %v654 = vmax.f32 %v622, 0.0
      %v655 = vmax.f32 %v623, 0.0
      %v656 = vmax.f32 %v624, 0.0
      %v657 = vmax.f32 %v625, 0.0
      %v658 = vmax.f32 %v626, 0.0
      %v659 = vmax.f32 %v627, 0.0
      %v660 = vmax.f32 %v628, 0.0
      %v661 = vmax.f32 %v629, 0.0
      %v662 = vmax.f32 %v630, 0.0
      %v663 = vmax.f32 %v631, 0.0
      %v664 = vmax.f32 %v632, 0.0
      %v665 = vpack.c.bf16 %v634, %v633
      %v666 = vpack.c.bf16 %v636, %v635
      %v667 = vpack.c.bf16 %v638, %v637
      %v668 = vpack.c.bf16 %v640, %v639
      %v669 = vpack.c.bf16 %v642, %v641
      %v670 = vpack.c.bf16 %v644, %v643
      %v671 = vpack.c.bf16 %v646, %v645
      %v672 = vpack.c.bf16 %v648, %v647
      %v673 = vpack.c.bf16 %v650, %v649
      %v674 = vpack.c.bf16 %v652, %v651
      %v675 = vpack.c.bf16 %v654, %v653
      %v676 = vpack.c.bf16 %v656, %v655
      %v677 = vpack.c.bf16 %v658, %v657
      %v678 = vpack.c.bf16 %v660, %v659
      %v679 = vpack.c.bf16 %v662, %v661
      %v680 = vpack.c.bf16 %v664, %v663
      %v697 = vunpack.c.l.b16 %v665
      %v698 = vunpack.c.h.b16 %v665
      %v699 = vunpack.c.l.b16 %v666
      %v700 = vunpack.c.h.b16 %v666
      %v701 = vunpack.c.l.b16 %v667
      %v702 = vunpack.c.h.b16 %v667
      %v703 = vunpack.c.l.b16 %v668
      %v704 = vunpack.c.h.b16 %v668
      %v705 = vunpack.c.l.b16 %v669
      %v706 = vunpack.c.h.b16 %v669
      %v707 = vunpack.c.l.b16 %v670
      %v708 = vunpack.c.h.b16 %v670
      %v709 = vunpack.c.l.b16 %v671
      %v710 = vunpack.c.h.b16 %v671
      %v711 = vunpack.c.l.b16 %v672
      %v712 = vunpack.c.h.b16 %v672
      %v713 = vunpack.c.l.b16 %v673
      %v714 = vunpack.c.h.b16 %v673
      %v715 = vunpack.c.l.b16 %v674
      %v716 = vunpack.c.h.b16 %v674
      %v717 = vunpack.c.l.b16 %v675
      %v718 = vunpack.c.h.b16 %v675
      %v719 = vunpack.c.l.b16 %v676
      %v720 = vunpack.c.h.b16 %v676
      %v721 = vunpack.c.l.b16 %v677
      %v722 = vunpack.c.h.b16 %v677
      %v723 = vunpack.c.l.b16 %v678
      %v724 = vunpack.c.h.b16 %v678
      %v725 = vunpack.c.l.b16 %v679
      %v726 = vunpack.c.h.b16 %v679
      %v727 = vunpack.c.l.b16 %v680
      %v728 = vunpack.c.h.b16 %v680
      %v729 = vpack.c.b16 %v697, %v697
      %v730 = vpack.c.b16 %v698, %v698
      %v731 = vpack.c.b16 %v699, %v699
      %v732 = vpack.c.b16 %v700, %v700
      %v733 = vpack.c.b16 %v701, %v701
      %v734 = vpack.c.b16 %v702, %v702
      %v735 = vpack.c.b16 %v703, %v703
      %v736 = vpack.c.b16 %v704, %v704
      %v737 = vpack.c.b16 %v705, %v705
      %v738 = vpack.c.b16 %v706, %v706
      %v739 = vpack.c.b16 %v707, %v707
      %v740 = vpack.c.b16 %v708, %v708
      %v741 = vpack.c.b16 %v709, %v709
      %v742 = vpack.c.b16 %v710, %v710
      %v743 = vpack.c.b16 %v711, %v711
      %v744 = vpack.c.b16 %v712, %v712
      %v745 = vpack.c.b16 %v713, %v713
      %v746 = vpack.c.b16 %v714, %v714
      %v747 = vpack.c.b16 %v715, %v715
      %v748 = vpack.c.b16 %v716, %v716
      %v749 = vpack.c.b16 %v717, %v717
      %v750 = vpack.c.b16 %v718, %v718
      %v751 = vpack.c.b16 %v719, %v719
      %v752 = vpack.c.b16 %v720, %v720
      %v753 = vpack.c.b16 %v721, %v721
      %v754 = vpack.c.b16 %v722, %v722
      %v755 = vpack.c.b16 %v723, %v723
      %v756 = vpack.c.b16 %v724, %v724
      %v757 = vpack.c.b16 %v725, %v725
      %v758 = vpack.c.b16 %v726, %v726
      %v759 = vpack.c.b16 %v727, %v727
      %v760 = vpack.c.b16 %v728, %v728
      %vm793 = vcmask 519168
      %794 = vst.msk [vmem:[%s199] sm:$0xf] %vm793, %v729
      %795 = vst.msk [vmem:[%s199 + $0x4] sm:$0xf] %vm793, %v730
      %796 = vst.msk [vmem:[%s199 + $0x8] sm:$0xf] %vm793, %v731
      %797 = vst.msk [vmem:[%s199 + $0xc] sm:$0xf] %vm793, %v732
      %798 = vst.msk [vmem:[%s199 + $0x10] sm:$0xf] %vm793, %v733
      %799 = vst.msk [vmem:[%s199 + $0x14] sm:$0xf] %vm793, %v734
      %800 = vst.msk [vmem:[%s199 + $0x18] sm:$0xf] %vm793, %v735
      %801 = vst.msk [vmem:[%s199 + $0x1c] sm:$0xf] %vm793, %v736
      %802 = vst.msk [vmem:[%s199 + $0x20] sm:$0xf] %vm793, %v737
      %803 = vst.msk [vmem:[%s199 + $0x24] sm:$0xf] %vm793, %v738
      %804 = vst.msk [vmem:[%s199 + $0x28] sm:$0xf] %vm793, %v739
      %805 = vst.msk [vmem:[%s199 + $0x2c] sm:$0xf] %vm793, %v740
      %806 = vst.msk [vmem:[%s199 + $0x30] sm:$0xf] %vm793, %v741
      %807 = vst.msk [vmem:[%s199 + $0x34] sm:$0xf] %vm793, %v742
      %808 = vst.msk [vmem:[%s199 + $0x38] sm:$0xf] %vm793, %v743
      %809 = vst.msk [vmem:[%s199 + $0x3c] sm:$0xf] %vm793, %v744
      %810 = vst.msk [vmem:[%s199 + $0x40] sm:$0xf] %vm793, %v745
      %811 = vst.msk [vmem:[%s199 + $0x44] sm:$0xf] %vm793, %v746
      %812 = vst.msk [vmem:[%s199 + $0x48] sm:$0xf] %vm793, %v747
      %813 = vst.msk [vmem:[%s199 + $0x4c] sm:$0xf] %vm793, %v748
      %814 = vst.msk [vmem:[%s199 + $0x50] sm:$0xf] %vm793, %v749
      %815 = vst.msk [vmem:[%s199 + $0x54] sm:$0xf] %vm793, %v750
      %816 = vst.msk [vmem:[%s199 + $0x58] sm:$0xf] %vm793, %v751
      %817 = vst.msk [vmem:[%s199 + $0x5c] sm:$0xf] %vm793, %v752
      %818 = vst.msk [vmem:[%s199 + $0x60] sm:$0xf] %vm793, %v753
      %819 = vst.msk [vmem:[%s199 + $0x64] sm:$0xf] %vm793, %v754
      %820 = vst.msk [vmem:[%s199 + $0x68] sm:$0xf] %vm793, %v755
      %821 = vst.msk [vmem:[%s199 + $0x6c] sm:$0xf] %vm793, %v756
      %822 = vst.msk [vmem:[%s199 + $0x70] sm:$0xf] %vm793, %v757
      %823 = vst.msk [vmem:[%s199 + $0x74] sm:$0xf] %vm793, %v758
      %824 = vst.msk [vmem:[%s199 + $0x78] sm:$0xf] %vm793, %v759
      %825 = vst.msk [vmem:[%s199 + $0x7c] sm:$0xf] %vm793, %v760
      %s826 = smul.u32 32, %s15
      %p827 = scmp.lt.s32.totalorder %s826, 95
      %s828 = scalar_select %p827, %s826, 95
      %s829 = smul.addr %s828, 4
      %s830 = scalar_lea.vmem %s4, %s829
      // Predicated region
      $region37: #{vision_decoder_forward.8} parent=35 // pred_check
        %p831 = pneg %p122
      $region38: #{vision_decoder_forward.8} parent=35 // pred_check_branch
        %833 = sbr.rel (%p831) target = $region40
      $region39: #{vision_decoder_forward.8} parent=35 // pred_region
        %s834 = smul.u32 32, %s15
      $region40: #{vision_decoder_forward.8} parent=35 // pred_fallthru
        _
    $region36: #{vision_decoder_forward.8} parent=5 // pred_fallthru
      _
    %p835 = scmp.le.s32.totalorder 2, %s10
    // Predicated region
    $region41: #{vision_decoder_forward.8} parent=5 // pred_check
      %p836 = pneg %p835
    $region42: #{vision_decoder_forward.8} parent=5 // pred_check_branch
      %838 = sbr.rel (%p836) target = $region44
    $region43: #{vision_decoder_forward.8} parent=5 // pred_region
      %s839 = ssub.s32 %s10, 2
      // Predicated region
      $region45: #{vision_decoder_forward.8} parent=43 // pred_check
        %p840 = pneg %p128
      $region46: #{vision_decoder_forward.8} parent=43 // pred_check_branch
        %842 = sbr.rel (%p840) target = $region48
      $region47: #{vision_decoder_forward.8} parent=43 // pred_region
        %s843 = smul.u32 32, %s16
        %p844 = scmp.lt.s32.totalorder %s843, 95
        %s845 = scalar_select %p844, %s843, 95
        %s846 = smul.addr %s845, 4
        %s847 = scalar_lea.vmem %s4, %s846
      $region48: #{vision_decoder_forward.8} parent=43 // pred_fallthru
        _
    $region44: #{vision_decoder_forward.8} parent=5 // pred_fallthru
      _
  $region6: #{vision_decoder_forward.8} parent=0 // loop_footer
    %s14 = sadd.s32 1, %s10
  $region7: #{vision_decoder_forward.8} parent=0 // loop_footer_branch
    %9 = sbr.rel target = $region3
  $region8: #{vision_decoder_forward.8} parent=0 // loop_exit
    _

// kernel: vision_decoder_forward.9
$region0: #{vision_decoder_forward.9}
  #allocation0 [shape = 'u32[]', space=smem, size = 0x4, offset = 0x4, fixed_abs, tag = 'smem constant byte address 0x4 - core index']
  #allocation1 [shape = 'u32[144,128]{1,0:T(1,128)}', space=vmem, size = 0x12000, scoped, tag = 'internal scratch']
  %s0 = inlined_call_operand.vmem [shape: bf16[3072,64], index: 0, kind: input, shape index: {}]
  %s1 = inlined_call_operand.vmem [shape: bf16[64,12], index: 1, kind: input, shape index: {}]
  %s2 = inlined_call_operand.vmem [shape: f32[1,12], index: 2, kind: input, shape index: {}]
  %s3 = inlined_call_operand.vmem [shape: f32[1,12], index: 3, kind: input, shape index: {}]
  %s4 = inlined_call_operand.vmem [shape: f32[3072,12], index: 4, kind: output, shape index: {}]
  %s5 = sld [smem:[#allocation0]]
  $region49: #{vision_decoder_forward.9} parent=0
    _
  %s7 = ssub.s32 1, %s5
  %s8 = scalar_select 0, %s7, %s5
  loop: start=0, step=1, limit=14
  $region2: #{vision_decoder_forward.9} parent=0 // loop_pre_header
    _
  $region3: #{vision_decoder_forward.9} parent=0 // loop_header
    %s10 = sphi 0, %s14
    %p11 = scmp.ge.s32.totalorder %s10, 14
    %s20 = sphi 0, %s22
    %s23 = sphi 0, %s20
    %s24 = sphi 0, %s23
    %s40 = sphi 0, %s24
    %s44 = sphi 0, %s44
    %s46 = sphi 0, %s44
    %s47 = sphi 0, %s46
    %s61 = sphi 0, %s47
    %s65 = sphi 0, %s65
    %s67 = sphi 0, %s65
    %s68 = sphi 0, %s67
    %s82 = sphi 0, %s68
    %s86 = sphi 0, %s86
    %s88 = sphi 0, %s86
    %s89 = sphi 0, %s88
    %s103 = sphi 0, %s89
    %s109 = sphi 0, %s111
    %s112 = sphi 0, %s109
    %s113 = sphi 0, %s112
    %s129 = sphi 0, %s113
  $region4: #{vision_decoder_forward.9} parent=0 // loop_header_branch
    %13 = sbr.rel (%p11) target = $region8
  $region5: #{vision_decoder_forward.9} parent=0 // loop_body
    %s15 = ssub.s32 %s10, 1
    %s16 = ssub.s32 %s10, 2
    %s17 = sadd.s32 %s10, 1
    %s18 = ssub.s32 %s10, %s17
    %p19 = scmp.eq.s32.totalorder %s18, 0
    %s21 = sadd.s32 %s20, 1
    %s22 = scalar_select %p19, %s20, %s21
    %p25 = pneg %p19
    %p26 = scmp.eq.s32.totalorder %s10, 11
    %p27 = por %p25, %p26
    %p28 = scmp.ne.s32.totalorder %s20, %s23
    %p29 = scmp.eq.s32.totalorder %s10, 0
    %p30 = por %p28, %p29
    %p31 = scmp.ne.s32.totalorder %s20, %s23
    %p32 = scmp.eq.s32.totalorder %s15, 11
    %p33 = por %p31, %p32
    %p34 = scmp.ne.s32.totalorder %s23, %s24
    %p35 = scmp.eq.s32.totalorder %s15, 0
    %p36 = por %p34, %p35
    %p37 = scmp.ne.s32.totalorder %s23, %s24
    %p38 = scmp.eq.s32.totalorder %s16, 11
    %p39 = por %p37, %p38
    %p41 = scmp.ne.s32.totalorder %s24, %s40
    %p42 = scmp.eq.s32.totalorder %s16, 0
    %p43 = por %p41, %p42
    %s45 = sadd.s32 %s44, 1
    %p48 = scmp.eq.s32.totalorder %s10, 11
    %p49 = scmp.ne.s32.totalorder %s44, %s46
    %p50 = scmp.eq.s32.totalorder %s10, 0
    %p51 = por %p49, %p50
    %p52 = scmp.ne.s32.totalorder %s44, %s46
    %p53 = scmp.eq.s32.totalorder %s15, 11
    %p54 = por %p52, %p53
    %p55 = scmp.ne.s32.totalorder %s46, %s47
    %p56 = scmp.eq.s32.totalorder %s15, 0
    %p57 = por %p55, %p56
    %p58 = scmp.ne.s32.totalorder %s46, %s47
    %p59 = scmp.eq.s32.totalorder %s16, 11
    %p60 = por %p58, %p59
    %p62 = scmp.ne.s32.totalorder %s47, %s61
    %p63 = scmp.eq.s32.totalorder %s16, 0
    %p64 = por %p62, %p63
    %s66 = sadd.s32 %s65, 1
    %p69 = scmp.eq.s32.totalorder %s10, 11
    %p70 = scmp.ne.s32.totalorder %s65, %s67
    %p71 = scmp.eq.s32.totalorder %s10, 0
    %p72 = por %p70, %p71
    %p73 = scmp.ne.s32.totalorder %s65, %s67
    %p74 = scmp.eq.s32.totalorder %s15, 11
    %p75 = por %p73, %p74
    %p76 = scmp.ne.s32.totalorder %s67, %s68
    %p77 = scmp.eq.s32.totalorder %s15, 0
    %p78 = por %p76, %p77
    %p79 = scmp.ne.s32.totalorder %s67, %s68
    %p80 = scmp.eq.s32.totalorder %s16, 11
    %p81 = por %p79, %p80
    %p83 = scmp.ne.s32.totalorder %s68, %s82
    %p84 = scmp.eq.s32.totalorder %s16, 0
    %p85 = por %p83, %p84
    %s87 = sadd.s32 %s86, 1
    %p90 = scmp.eq.s32.totalorder %s10, 11
    %p91 = scmp.ne.s32.totalorder %s86, %s88
    %p92 = scmp.eq.s32.totalorder %s10, 0
    %p93 = por %p91, %p92
    %p94 = scmp.ne.s32.totalorder %s86, %s88
    %p95 = scmp.eq.s32.totalorder %s15, 11
    %p96 = por %p94, %p95
    %p97 = scmp.ne.s32.totalorder %s88, %s89
    %p98 = scmp.eq.s32.totalorder %s15, 0
    %p99 = por %p97, %p98
    %p100 = scmp.ne.s32.totalorder %s88, %s89
    %p101 = scmp.eq.s32.totalorder %s16, 11
    %p102 = por %p100, %p101
    %p104 = scmp.ne.s32.totalorder %s89, %s103
    %p105 = scmp.eq.s32.totalorder %s16, 0
    %p106 = por %p104, %p105
    %s107 = ssub.s32 %s10, %s17
    %p108 = scmp.eq.s32.totalorder %s107, 0
    %s110 = sadd.s32 %s109, 1
    %s111 = scalar_select %p108, %s109, %s110
    %p114 = pneg %p108
    %p115 = scmp.eq.s32.totalorder %s10, 11
    %p116 = por %p114, %p115
    %p117 = scmp.ne.s32.totalorder %s109, %s112
    %p118 = scmp.eq.s32.totalorder %s10, 0
    %p119 = por %p117, %p118
    %p120 = scmp.ne.s32.totalorder %s109, %s112
    %p121 = scmp.eq.s32.totalorder %s15, 11
    %p122 = por %p120, %p121
    %p123 = scmp.ne.s32.totalorder %s112, %s113
    %p124 = scmp.eq.s32.totalorder %s15, 0
    %p125 = por %p123, %p124
    %p126 = scmp.ne.s32.totalorder %s112, %s113
    %p127 = scmp.eq.s32.totalorder %s16, 11
    %p128 = por %p126, %p127
    %p130 = scmp.ne.s32.totalorder %s113, %s129
    %p131 = scmp.eq.s32.totalorder %s16, 0
    %p132 = por %p130, %p131
    %p133 = scmp.le.s32.totalorder 1, %s10
    %p134 = scmp.lt.s32.totalorder %s10, 13
    %p135 = pnand %p133, %p134
    %p136 = pneg %p135
    // Predicated region
    $region9: #{vision_decoder_forward.9} parent=5 // pred_check
      _
    $region10: #{vision_decoder_forward.9} parent=5 // pred_check_branch
      %138 = sbr.rel (%p135) target = $region12
    $region11: #{vision_decoder_forward.9} parent=5 // pred_region
      %s139 = ssub.s32 %s10, 1
      // Predicated region
      $region13: #{vision_decoder_forward.9} parent=11 // pred_check
        %p140 = pneg %p57
      $region14: #{vision_decoder_forward.9} parent=11 // pred_check_branch
        %142 = sbr.rel (%p140) target = $region16
      $region15: #{vision_decoder_forward.9} parent=11 // pred_region
        _
      $region16: #{vision_decoder_forward.9} parent=11 // pred_fallthru
        _
      // Predicated region
      $region17: #{vision_decoder_forward.9} parent=11 // pred_check
        %p143 = pneg %p78
      $region18: #{vision_decoder_forward.9} parent=11 // pred_check_branch
        %145 = sbr.rel (%p143) target = $region20
      $region19: #{vision_decoder_forward.9} parent=11 // pred_region
        _
      $region20: #{vision_decoder_forward.9} parent=11 // pred_fallthru
        _
      // Predicated region
      $region21: #{vision_decoder_forward.9} parent=11 // pred_check
        %p146 = pneg %p99
      $region22: #{vision_decoder_forward.9} parent=11 // pred_check_branch
        %148 = sbr.rel (%p146) target = $region24
      $region23: #{vision_decoder_forward.9} parent=11 // pred_region
        _
      $region24: #{vision_decoder_forward.9} parent=11 // pred_fallthru
        _
    $region12: #{vision_decoder_forward.9} parent=5 // pred_fallthru
      _
    %p149 = scmp.lt.s32.totalorder %s10, 12
    // Predicated region
    $region25: #{vision_decoder_forward.9} parent=5 // pred_check
      %p150 = pneg %p149
    $region26: #{vision_decoder_forward.9} parent=5 // pred_check_branch
      %152 = sbr.rel (%p150) target = $region28
    $region27: #{vision_decoder_forward.9} parent=5 // pred_region
      // Predicated region
      $region29: #{vision_decoder_forward.9} parent=27 // pred_check
        %p153 = pneg %p30
      $region30: #{vision_decoder_forward.9} parent=27 // pred_check_branch
        %155 = sbr.rel (%p153) target = $region32
      $region31: #{vision_decoder_forward.9} parent=27 // pred_region
        %s156 = smul.u32 32, %s10
        %p157 = scmp.lt.s32.totalorder %s156, 383
        %s158 = scalar_select %p157, %s156, 383
        %s159 = smul.addr %s158, 4
        %s160 = scalar_lea.vmem %s0, %s159
        %s161 = smul.u32 32, %s10
      $region32: #{vision_decoder_forward.9} parent=27 // pred_fallthru
        _
    $region28: #{vision_decoder_forward.9} parent=5 // pred_fallthru
      _
    %p162 = scmp.le.s32.totalorder 1, %s10
    %p163 = scmp.lt.s32.totalorder %s10, 13
    %p164 = pnand %p162, %p163
    %p165 = pneg %p164
    // Predicated region
    $region33: #{vision_decoder_forward.9} parent=5 // pred_check
      _
    $region34: #{vision_decoder_forward.9} parent=5 // pred_check_branch
      %167 = sbr.rel (%p164) target = $region36
    $region35: #{vision_decoder_forward.9} parent=5 // pred_region
      %s168 = ssub.s32 %s10, 1
      %s169 = smul.u32 32, %s15
      %p170 = scmp.lt.s32.totalorder %s169, 383
      %s171 = scalar_select %p170, %s169, 383
      %s172 = smul.addr %s171, 4
      %s173 = scalar_lea.vmem %s0, %s172
      %p174 = pneg %p36
      %p175 = pneg %p33
      %p176 = pneg %p57
      %p177 = pneg %p54
      %p178 = pneg %p78
      %p179 = pneg %p75
      %p180 = pneg %p99
      %p181 = pneg %p96
      %p182 = pneg %p125
      %p183 = pneg %p122
      %s184 = smul.u32 32, %s15
      %p185 = scmp.lt.s32.totalorder %s184, 383
      %s186 = scalar_select %p185, %s184, 383
      %s187 = smul.addr %s186, 8
      %s188 = scalar_lea.vmem %s4, %s187
      %s189 = smul.u32 32, %s15
      %p190 = scmp.lt.s32.totalorder %s189, 383
      %s191 = scalar_select %p190, %s189, 383
      %s192 = smul.addr %s191, 4
      %s193 = scalar_lea.vmem %s0, %s192
      %s194 = smul.u32 32, %s15
      %s195 = smul.u32 32, %s15
      %p196 = scmp.lt.s32.totalorder %s195, 383
      %s197 = scalar_select %p196, %s195, 383
      %s198 = smul.addr %s197, 8
      %s199 = scalar_lea.vmem %s4, %s198
      %s200 = smul.u32 32, %s15
      %v202 = vld [vmem:[%s193] sm:$0xf]
      %v203 = vld [vmem:[%s193 + $0x4] sm:$0xf]
      %v204 = vld [vmem:[%s193 + $0x8] sm:$0xf]
      %v205 = vld [vmem:[%s193 + $0xc] sm:$0xf]
      %v206 = vld [vmem:[%s193 + $0x10] sm:$0xf]
      %v207 = vld [vmem:[%s193 + $0x14] sm:$0xf]
      %v208 = vld [vmem:[%s193 + $0x18] sm:$0xf]
      %v209 = vld [vmem:[%s193 + $0x1c] sm:$0xf]
      %v210 = vld [vmem:[%s193 + $0x20] sm:$0xf]
      %v211 = vld [vmem:[%s193 + $0x24] sm:$0xf]
      %v212 = vld [vmem:[%s193 + $0x28] sm:$0xf]
      %v213 = vld [vmem:[%s193 + $0x2c] sm:$0xf]
      %v214 = vld [vmem:[%s193 + $0x30] sm:$0xf]
      %v215 = vld [vmem:[%s193 + $0x34] sm:$0xf]
      %v216 = vld [vmem:[%s193 + $0x38] sm:$0xf]
      %v217 = vld [vmem:[%s193 + $0x3c] sm:$0xf]
      %v218 = vld [vmem:[%s193 + $0x40] sm:$0xf]
      %v219 = vld [vmem:[%s193 + $0x44] sm:$0xf]
      %v220 = vld [vmem:[%s193 + $0x48] sm:$0xf]
      %v221 = vld [vmem:[%s193 + $0x4c] sm:$0xf]
      %v222 = vld [vmem:[%s193 + $0x50] sm:$0xf]
      %v223 = vld [vmem:[%s193 + $0x54] sm:$0xf]
      %v224 = vld [vmem:[%s193 + $0x58] sm:$0xf]
      %v225 = vld [vmem:[%s193 + $0x5c] sm:$0xf]
      %v226 = vld [vmem:[%s193 + $0x60] sm:$0xf]
      %v227 = vld [vmem:[%s193 + $0x64] sm:$0xf]
      %v228 = vld [vmem:[%s193 + $0x68] sm:$0xf]
      %v229 = vld [vmem:[%s193 + $0x6c] sm:$0xf]
      %v230 = vld [vmem:[%s193 + $0x70] sm:$0xf]
      %v231 = vld [vmem:[%s193 + $0x74] sm:$0xf]
      %v232 = vld [vmem:[%s193 + $0x78] sm:$0xf]
      %v233 = vld [vmem:[%s193 + $0x7c] sm:$0xf]
      %v234 = vld [vmem:[%s1] sm:$0xf]
      %v235 = vld [vmem:[%s1 + $0x4] sm:$0xf]
      %v236 = vld [vmem:[%s1 + $0x8] sm:$0xf]
      %v237 = vld [vmem:[%s1 + $0xc] sm:$0xf]
      %v238 = vld [vmem:[%s1 + $0x10] sm:$0xf]
      %v239 = vld [vmem:[%s1 + $0x14] sm:$0xf]
      %v240 = vld [vmem:[%s1 + $0x18] sm:$0xf]
      %v241 = vld [vmem:[%s1 + $0x1c] sm:$0xf]
      %v274 = vunpack.c.l.b16 %v202
      %v275 = vunpack.c.l.b16 %v203
      %v276 = vunpack.c.l.b16 %v204
      %v277 = vunpack.c.l.b16 %v205
      %v278 = vunpack.c.l.b16 %v206
      %v279 = vunpack.c.l.b16 %v207
      %v280 = vunpack.c.l.b16 %v208
      %v281 = vunpack.c.l.b16 %v209
      %v282 = vunpack.c.l.b16 %v210
      %v283 = vunpack.c.l.b16 %v211
      %v284 = vunpack.c.l.b16 %v212
      %v285 = vunpack.c.l.b16 %v213
      %v286 = vunpack.c.l.b16 %v214
      %v287 = vunpack.c.l.b16 %v215
      %v288 = vunpack.c.l.b16 %v216
      %v289 = vunpack.c.l.b16 %v217
      %v290 = vunpack.c.l.b16 %v218
      %v291 = vunpack.c.l.b16 %v219
      %v292 = vunpack.c.l.b16 %v220
      %v293 = vunpack.c.l.b16 %v221
      %v294 = vunpack.c.l.b16 %v222
      %v295 = vunpack.c.l.b16 %v223
      %v296 = vunpack.c.l.b16 %v224
      %v297 = vunpack.c.l.b16 %v225
      %v298 = vunpack.c.l.b16 %v226
      %v299 = vunpack.c.l.b16 %v227
      %v300 = vunpack.c.l.b16 %v228
      %v301 = vunpack.c.l.b16 %v229
      %v302 = vunpack.c.l.b16 %v230
      %v303 = vunpack.c.l.b16 %v231
      %v304 = vunpack.c.l.b16 %v232
      %v305 = vunpack.c.l.b16 %v233
      %v306 = vpack.c.b16 %v275, %v274
      %v307 = vpack.c.b16 %v277, %v276
      %v308 = vpack.c.b16 %v279, %v278
      %v309 = vpack.c.b16 %v281, %v280
      %v310 = vpack.c.b16 %v283, %v282
      %v311 = vpack.c.b16 %v285, %v284
      %v312 = vpack.c.b16 %v287, %v286
      %v313 = vpack.c.b16 %v289, %v288
      %v314 = vpack.c.b16 %v291, %v290
      %v315 = vpack.c.b16 %v293, %v292
      %v316 = vpack.c.b16 %v295, %v294
      %v317 = vpack.c.b16 %v297, %v296
      %v318 = vpack.c.b16 %v299, %v298
      %v319 = vpack.c.b16 %v301, %v300
      %v320 = vpack.c.b16 %v303, %v302
      %v321 = vpack.c.b16 %v305, %v304
      %v330 = vunpack.c.l.b16 %v234
      %v331 = vunpack.c.l.b16 %v235
      %v332 = vunpack.c.l.b16 %v236
      %v333 = vunpack.c.l.b16 %v237
      %v334 = vunpack.c.l.b16 %v238
      %v335 = vunpack.c.l.b16 %v239
      %v336 = vunpack.c.l.b16 %v240
      %v337 = vunpack.c.l.b16 %v241
      %v338 = vpack.c.b16 %v331, %v330
      %v339 = vpack.c.b16 %v333, %v332
      %v340 = vpack.c.b16 %v335, %v334
      %v341 = vpack.c.b16 %v337, %v336
      %vm346 = vcmask 523264
      %v348 = vsel %vm346, %v306, 0
      %v351 = vsel %vm346, %v307, 0
      %v354 = vsel %vm346, %v308, 0
      %v357 = vsel %vm346, %v309, 0
      %v360 = vsel %vm346, %v310, 0
      %v363 = vsel %vm346, %v311, 0
      %v366 = vsel %vm346, %v312, 0
      %v369 = vsel %vm346, %v313, 0
      %v372 = vsel %vm346, %v314, 0
      %v375 = vsel %vm346, %v315, 0
      %v378 = vsel %vm346, %v316, 0
      %v381 = vsel %vm346, %v317, 0
      %v384 = vsel %vm346, %v318, 0
      %v387 = vsel %vm346, %v319, 0
      %v390 = vsel %vm346, %v320, 0
      %v393 = vsel %vm346, %v321, 0
      %395 = vmatprep.subr.bf16.mxu0 0
      %396 = vmatpush1.bf16.msra.mxu0 %v338
      %397 = vmatprep.subr.bf16.mxu0 0
      %398 = vmatpush1.bf16.msra.mxu0 %v339
      %399 = vmatprep.subr.bf16.mxu0 0
      %400 = vmatpush1.bf16.msra.mxu0 %v340
      %401 = vmatprep.subr.bf16.mxu0 0
      %402 = vmatpush1.bf16.msra.mxu0 %v341
      %403 = vmatprep.subr.bf16.mxu0 0
      %404 = vmatpush1.bf16.msra.mxu0 0
      %405 = vmatprep.subr.bf16.mxu0 0
      %406 = vmatpush1.bf16.msra.mxu0 0
      %407 = vmatprep.subr.bf16.mxu0 0
      %408 = vmatpush1.bf16.msra.mxu0 0
      %409 = vmatprep.subr.bf16.mxu0 0
      %410 = vmatpush1.bf16.msra.mxu0 0
      %411 = vmatprep.subr.bf16.mxu0 0
      %412 = vmatpush1.bf16.msra.mxu0 0
      %413 = vmatprep.subr.bf16.mxu0 0
      %414 = vmatpush1.bf16.msra.mxu0 0
      %415 = vmatprep.subr.bf16.mxu0 0
      %416 = vmatpush1.bf16.msra.mxu0 0
      %417 = vmatprep.subr.bf16.mxu0 0
      %418 = vmatpush1.bf16.msra.mxu0 0
      %419 = vmatprep.subr.bf16.mxu0 0
      %420 = vmatpush1.bf16.msra.mxu0 0
      %421 = vmatprep.subr.bf16.mxu0 0
      %422 = vmatpush1.bf16.msra.mxu0 0
      %423 = vmatprep.subr.bf16.mxu0 0
      %424 = vmatpush1.bf16.msra.mxu0 0
      %425 = vmatprep.subr.bf16.mxu0 0
      %426 = vmatpush1.bf16.msra.mxu0 0
      %427 = vmatprep.mubr.bf16.mxu0 0
      %428 = vmatmul.mubr.bf16.gmra.mrb[0].mxu0 %v348
      %v429 = vpop.f32.mrb[0].mxu0
      %v430 = vadd.f32 0.0, %v429
      %v431 = vpop.f32.mrb[0].mxu0
      %v432 = vpop.f32.mrb[0].mxu0
      %v433 = vadd.f32 0.0, %v432
      %v434 = vpop.f32.mrb[0].mxu0
      %435 = vmatprep.mubr.bf16.mxu0 0
      %436 = vmatmul.mubr.bf16.gmra.mrb[0].mxu0 %v351
      %v437 = vpop.f32.mrb[0].mxu0
      %v438 = vadd.f32 0.0, %v437
      %v439 = vpop.f32.mrb[0].mxu0
      %v440 = vpop.f32.mrb[0].mxu0
      %v441 = vadd.f32 0.0, %v440
      %v442 = vpop.f32.mrb[0].mxu0
      %443 = vmatprep.mubr.bf16.mxu0 0
      %444 = vmatmul.mubr.bf16.gmra.mrb[0].mxu0 %v354
      %v445 = vpop.f32.mrb[0].mxu0
      %v446 = vadd.f32 0.0, %v445
      %v447 = vpop.f32.mrb[0].mxu0
      %v448 = vpop.f32.mrb[0].mxu0
      %v449 = vadd.f32 0.0, %v448
      %v450 = vpop.f32.mrb[0].mxu0
      %451 = vmatprep.mubr.bf16.mxu0 0
      %452 = vmatmul.mubr.bf16.gmra.mrb[0].mxu0 %v357
      %v453 = vpop.f32.mrb[0].mxu0
      %v454 = vadd.f32 0.0, %v453
      %v455 = vpop.f32.mrb[0].mxu0
      %v456 = vpop.f32.mrb[0].mxu0
      %v457 = vadd.f32 0.0, %v456
      %v458 = vpop.f32.mrb[0].mxu0
      %459 = vmatprep.mubr.bf16.mxu0 0
      %460 = vmatmul.mubr.bf16.gmra.mrb[0].mxu0 %v360
      %v461 = vpop.f32.mrb[0].mxu0
      %v462 = vadd.f32 0.0, %v461
      %v463 = vpop.f32.mrb[0].mxu0
      %v464 = vpop.f32.mrb[0].mxu0
      %v465 = vadd.f32 0.0, %v464
      %v466 = vpop.f32.mrb[0].mxu0
      %467 = vmatprep.mubr.bf16.mxu0 0
      %468 = vmatmul.mubr.bf16.gmra.mrb[0].mxu0 %v363
      %v469 = vpop.f32.mrb[0].mxu0
      %v470 = vadd.f32 0.0, %v469
      %v471 = vpop.f32.mrb[0].mxu0
      %v472 = vpop.f32.mrb[0].mxu0
      %v473 = vadd.f32 0.0, %v472
      %v474 = vpop.f32.mrb[0].mxu0
      %475 = vmatprep.mubr.bf16.mxu0 0
      %476 = vmatmul.mubr.bf16.gmra.mrb[0].mxu0 %v366
      %v477 = vpop.f32.mrb[0].mxu0
      %v478 = vadd.f32 0.0, %v477
      %v479 = vpop.f32.mrb[0].mxu0
      %v480 = vpop.f32.mrb[0].mxu0
      %v481 = vadd.f32 0.0, %v480
      %v482 = vpop.f32.mrb[0].mxu0
      %483 = vmatprep.mubr.bf16.mxu0 0
      %484 = vmatmul.mubr.bf16.gmra.mrb[0].mxu0 %v369
      %v485 = vpop.f32.mrb[0].mxu0
      %v486 = vadd.f32 0.0, %v485
      %v487 = vpop.f32.mrb[0].mxu0
      %v488 = vpop.f32.mrb[0].mxu0
      %v489 = vadd.f32 0.0, %v488
      %v490 = vpop.f32.mrb[0].mxu0
      %491 = vmatprep.mubr.bf16.mxu0 0
      %492 = vmatmul.mubr.bf16.gmra.mrb[0].mxu0 %v372
      %v493 = vpop.f32.mrb[0].mxu0
      %v494 = vadd.f32 0.0, %v493
      %v495 = vpop.f32.mrb[0].mxu0
      %v496 = vpop.f32.mrb[0].mxu0
      %v497 = vadd.f32 0.0, %v496
      %v498 = vpop.f32.mrb[0].mxu0
      %499 = vmatprep.mubr.bf16.mxu0 0
      %500 = vmatmul.mubr.bf16.gmra.mrb[0].mxu0 %v375
      %v501 = vpop.f32.mrb[0].mxu0
      %v502 = vadd.f32 0.0, %v501
      %v503 = vpop.f32.mrb[0].mxu0
      %v504 = vpop.f32.mrb[0].mxu0
      %v505 = vadd.f32 0.0, %v504
      %v506 = vpop.f32.mrb[0].mxu0
      %507 = vmatprep.mubr.bf16.mxu0 0
      %508 = vmatmul.mubr.bf16.gmra.mrb[0].mxu0 %v378
      %v509 = vpop.f32.mrb[0].mxu0
      %v510 = vadd.f32 0.0, %v509
      %v511 = vpop.f32.mrb[0].mxu0
      %v512 = vpop.f32.mrb[0].mxu0
      %v513 = vadd.f32 0.0, %v512
      %v514 = vpop.f32.mrb[0].mxu0
      %515 = vmatprep.mubr.bf16.mxu0 0
      %516 = vmatmul.mubr.bf16.gmra.mrb[0].mxu0 %v381
      %v517 = vpop.f32.mrb[0].mxu0
      %v518 = vadd.f32 0.0, %v517
      %v519 = vpop.f32.mrb[0].mxu0
      %v520 = vpop.f32.mrb[0].mxu0
      %v521 = vadd.f32 0.0, %v520
      %v522 = vpop.f32.mrb[0].mxu0
      %523 = vmatprep.mubr.bf16.mxu0 0
      %524 = vmatmul.mubr.bf16.gmra.mrb[0].mxu0 %v384
      %v525 = vpop.f32.mrb[0].mxu0
      %v526 = vadd.f32 0.0, %v525
      %v527 = vpop.f32.mrb[0].mxu0
      %v528 = vpop.f32.mrb[0].mxu0
      %v529 = vadd.f32 0.0, %v528
      %v530 = vpop.f32.mrb[0].mxu0
      %531 = vmatprep.mubr.bf16.mxu0 0
      %532 = vmatmul.mubr.bf16.gmra.mrb[0].mxu0 %v387
      %v533 = vpop.f32.mrb[0].mxu0
      %v534 = vadd.f32 0.0, %v533
      %v535 = vpop.f32.mrb[0].mxu0
      %v536 = vpop.f32.mrb[0].mxu0
      %v537 = vadd.f32 0.0, %v536
      %v538 = vpop.f32.mrb[0].mxu0
      %539 = vmatprep.mubr.bf16.mxu0 0
      %540 = vmatmul.mubr.bf16.gmra.mrb[0].mxu0 %v390
      %v541 = vpop.f32.mrb[0].mxu0
      %v542 = vadd.f32 0.0, %v541
      %v543 = vpop.f32.mrb[0].mxu0
      %v544 = vpop.f32.mrb[0].mxu0
      %v545 = vadd.f32 0.0, %v544
      %v546 = vpop.f32.mrb[0].mxu0
      %547 = vmatprep.mubr.bf16.mxu0 0
      %548 = vmatmul.mubr.bf16.gmra.mrb[0].mxu0 %v393
      %v549 = vpop.f32.mrb[0].mxu0
      %v550 = vadd.f32 0.0, %v549
      %v551 = vpop.f32.mrb[0].mxu0
      %v552 = vpop.f32.mrb[0].mxu0
      %v553 = vadd.f32 0.0, %v552
      %v554 = vpop.f32.mrb[0].mxu0
      %555 = vdwg.mxu0
      %v556 = vld [vmem:[%s2] sm:$0x1]
      %v558 = vlaneseq
      %v559 = vshrl.u32 %v558, 7
      %v560 = vsub.s32 0, %v559
      %v561 = vrot.slane %v556, %v560
      %v563 = vmul.f32 %v430, %v561
      %v564 = vmul.f32 %v433, %v561
      %v565 = vmul.f32 %v438, %v561
      %v566 = vmul.f32 %v441, %v561
      %v567 = vmul.f32 %v446, %v561
      %v568 = vmul.f32 %v449, %v561
      %v569 = vmul.f32 %v454, %v561
      %v570 = vmul.f32 %v457, %v561
      %v571 = vmul.f32 %v462, %v561
      %v572 = vmul.f32 %v465, %v561
      %v573 = vmul.f32 %v470, %v561
      %v574 = vmul.f32 %v473, %v561
      %v575 = vmul.f32 %v478, %v561
      %v576 = vmul.f32 %v481, %v561
      %v577 = vmul.f32 %v486, %v561
      %v578 = vmul.f32 %v489, %v561
      %v579 = vmul.f32 %v494, %v561
      %v580 = vmul.f32 %v497, %v561
      %v581 = vmul.f32 %v502, %v561
      %v582 = vmul.f32 %v505, %v561
      %v583 = vmul.f32 %v510, %v561
      %v584 = vmul.f32 %v513, %v561
      %v585 = vmul.f32 %v518, %v561
      %v586 = vmul.f32 %v521, %v561
      %v587 = vmul.f32 %v526, %v561
      %v588 = vmul.f32 %v529, %v561
      %v589 = vmul.f32 %v534, %v561
      %v590 = vmul.f32 %v537, %v561
      %v591 = vmul.f32 %v542, %v561
      %v592 = vmul.f32 %v545, %v561
      %v593 = vmul.f32 %v550, %v561
      %v594 = vmul.f32 %v553, %v561
      %v595 = vld [vmem:[%s3] sm:$0x1]
      %v597 = vlaneseq
      %v598 = vshrl.u32 %v597, 7
      %v599 = vsub.s32 0, %v598
      %v600 = vrot.slane %v595, %v599
      %v602 = vadd.f32 %v563, %v600
      %v603 = vadd.f32 %v564, %v600
      %v604 = vadd.f32 %v565, %v600
      %v605 = vadd.f32 %v566, %v600
      %v606 = vadd.f32 %v567, %v600
      %v607 = vadd.f32 %v568, %v600
      %v608 = vadd.f32 %v569, %v600
      %v609 = vadd.f32 %v570, %v600
      %v610 = vadd.f32 %v571, %v600
      %v611 = vadd.f32 %v572, %v600
      %v612 = vadd.f32 %v573, %v600
      %v613 = vadd.f32 %v574, %v600
      %v614 = vadd.f32 %v575, %v600
      %v615 = vadd.f32 %v576, %v600
      %v616 = vadd.f32 %v577, %v600
      %v617 = vadd.f32 %v578, %v600
      %v618 = vadd.f32 %v579, %v600
      %v619 = vadd.f32 %v580, %v600
      %v620 = vadd.f32 %v581, %v600
      %v621 = vadd.f32 %v582, %v600
      %v622 = vadd.f32 %v583, %v600
      %v623 = vadd.f32 %v584, %v600
      %v624 = vadd.f32 %v585, %v600
      %v625 = vadd.f32 %v586, %v600
      %v626 = vadd.f32 %v587, %v600
      %v627 = vadd.f32 %v588, %v600
      %v628 = vadd.f32 %v589, %v600
      %v629 = vadd.f32 %v590, %v600
      %v630 = vadd.f32 %v591, %v600
      %v631 = vadd.f32 %v592, %v600
      %v632 = vadd.f32 %v593, %v600
      %v633 = vadd.f32 %v594, %v600
      %v634 = vsub.f32 0.0, %v602
      %v635 = vsub.f32 0.0, %v603
      %v636 = vsub.f32 0.0, %v604
      %v637 = vsub.f32 0.0, %v605
      %v638 = vsub.f32 0.0, %v606
      %v639 = vsub.f32 0.0, %v607
      %v640 = vsub.f32 0.0, %v608
      %v641 = vsub.f32 0.0, %v609
      %v642 = vsub.f32 0.0, %v610
      %v643 = vsub.f32 0.0, %v611
      %v644 = vsub.f32 0.0, %v612
      %v645 = vsub.f32 0.0, %v613
      %v646 = vsub.f32 0.0, %v614
      %v647 = vsub.f32 0.0, %v615
      %v648 = vsub.f32 0.0, %v616
      %v649 = vsub.f32 0.0, %v617
      %v650 = vsub.f32 0.0, %v618
      %v651 = vsub.f32 0.0, %v619
      %v652 = vsub.f32 0.0, %v620
      %v653 = vsub.f32 0.0, %v621
      %v654 = vsub.f32 0.0, %v622
      %v655 = vsub.f32 0.0, %v623
      %v656 = vsub.f32 0.0, %v624
      %v657 = vsub.f32 0.0, %v625
      %v658 = vsub.f32 0.0, %v626
      %v659 = vsub.f32 0.0, %v627
      %v660 = vsub.f32 0.0, %v628
      %v661 = vsub.f32 0.0, %v629
      %v662 = vsub.f32 0.0, %v630
      %v663 = vsub.f32 0.0, %v631
      %v664 = vsub.f32 0.0, %v632
      %v665 = vsub.f32 0.0, %v633
      %v666 = vmul.f32 %v634, 1.442695
      %v667 = vpow.pop %v666
      %v668 = vmul.f32 %v635, 1.442695
      %v669 = vpow.pop %v668
      %v670 = vmul.f32 %v636, 1.442695
      %v671 = vpow.pop %v670
      %v672 = vmul.f32 %v637, 1.442695
      %v673 = vpow.pop %v672
      %v674 = vmul.f32 %v638, 1.442695
      %v675 = vpow.pop %v674
      %v676 = vmul.f32 %v639, 1.442695
      %v677 = vpow.pop %v676
      %v678 = vmul.f32 %v640, 1.442695
      %v679 = vpow.pop %v678
      %v680 = vmul.f32 %v641, 1.442695
      %v681 = vpow.pop %v680
      %v682 = vmul.f32 %v642, 1.442695
      %v683 = vpow.pop %v682
      %v684 = vmul.f32 %v643, 1.442695
      %v685 = vpow.pop %v684
      %v686 = vmul.f32 %v644, 1.442695
      %v687 = vpow.pop %v686
      %v688 = vmul.f32 %v645, 1.442695
      %v689 = vpow.pop %v688
      %v690 = vmul.f32 %v646, 1.442695
      %v691 = vpow.pop %v690
      %v692 = vmul.f32 %v647, 1.442695
      %v693 = vpow.pop %v692
      %v694 = vmul.f32 %v648, 1.442695
      %v695 = vpow.pop %v694
      %v696 = vmul.f32 %v649, 1.442695
      %v697 = vpow.pop %v696
      %v698 = vmul.f32 %v650, 1.442695
      %v699 = vpow.pop %v698
      %v700 = vmul.f32 %v651, 1.442695
      %v701 = vpow.pop %v700
      %v702 = vmul.f32 %v652, 1.442695
      %v703 = vpow.pop %v702
      %v704 = vmul.f32 %v653, 1.442695
      %v705 = vpow.pop %v704
      %v706 = vmul.f32 %v654, 1.442695
      %v707 = vpow.pop %v706
      %v708 = vmul.f32 %v655, 1.442695
      %v709 = vpow.pop %v708
      %v710 = vmul.f32 %v656, 1.442695
      %v711 = vpow.pop %v710
      %v712 = vmul.f32 %v657, 1.442695
      %v713 = vpow.pop %v712
      %v714 = vmul.f32 %v658, 1.442695
      %v715 = vpow.pop %v714
      %v716 = vmul.f32 %v659, 1.442695
      %v717 = vpow.pop %v716
      %v718 = vmul.f32 %v660, 1.442695
      %v719 = vpow.pop %v718
      %v720 = vmul.f32 %v661, 1.442695
      %v721 = vpow.pop %v720
      %v722 = vmul.f32 %v662, 1.442695
      %v723 = vpow.pop %v722
      %v724 = vmul.f32 %v663, 1.442695
      %v725 = vpow.pop %v724
      %v726 = vmul.f32 %v664, 1.442695
      %v727 = vpow.pop %v726
      %v728 = vmul.f32 %v665, 1.442695
      %v729 = vpow.pop %v728
      %v730 = vadd.f32 %v667, 1.0
      %v731 = vadd.f32 %v669, 1.0
      %v732 = vadd.f32 %v671, 1.0
      %v733 = vadd.f32 %v673, 1.0
      %v734 = vadd.f32 %v675, 1.0
      %v735 = vadd.f32 %v677, 1.0
      %v736 = vadd.f32 %v679, 1.0
      %v737 = vadd.f32 %v681, 1.0
      %v738 = vadd.f32 %v683, 1.0
      %v739 = vadd.f32 %v685, 1.0
      %v740 = vadd.f32 %v687, 1.0
      %v741 = vadd.f32 %v689, 1.0
      %v742 = vadd.f32 %v691, 1.0
      %v743 = vadd.f32 %v693, 1.0
      %v744 = vadd.f32 %v695, 1.0
      %v745 = vadd.f32 %v697, 1.0
      %v746 = vadd.f32 %v699, 1.0
      %v747 = vadd.f32 %v701, 1.0
      %v748 = vadd.f32 %v703, 1.0
      %v749 = vadd.f32 %v705, 1.0
      %v750 = vadd.f32 %v707, 1.0
      %v751 = vadd.f32 %v709, 1.0
      %v752 = vadd.f32 %v711, 1.0
      %v753 = vadd.f32 %v713, 1.0
      %v754 = vadd.f32 %v715, 1.0
      %v755 = vadd.f32 %v717, 1.0
      %v756 = vadd.f32 %v719, 1.0
      %v757 = vadd.f32 %v721, 1.0
      %v758 = vadd.f32 %v723, 1.0
      %v759 = vadd.f32 %v725, 1.0
      %v760 = vadd.f32 %v727, 1.0
      %v761 = vadd.f32 %v729, 1.0
      %v762 = vrcp.pop %v730
      %v763 = vmul.f32 1.0, %v762
      %v764 = vrcp.pop %v731
      %v765 = vmul.f32 1.0, %v764
      %v766 = vrcp.pop %v732
      %v767 = vmul.f32 1.0, %v766
      %v768 = vrcp.pop %v733
      %v769 = vmul.f32 1.0, %v768
      %v770 = vrcp.pop %v734
      %v771 = vmul.f32 1.0, %v770
      %v772 = vrcp.pop %v735
      %v773 = vmul.f32 1.0, %v772
      %v774 = vrcp.pop %v736
      %v775 = vmul.f32 1.0, %v774
      %v776 = vrcp.pop %v737
      %v777 = vmul.f32 1.0, %v776
      %v778 = vrcp.pop %v738
      %v779 = vmul.f32 1.0, %v778
      %v780 = vrcp.pop %v739
      %v781 = vmul.f32 1.0, %v780
      %v782 = vrcp.pop %v740
      %v783 = vmul.f32 1.0, %v782
      %v784 = vrcp.pop %v741
      %v785 = vmul.f32 1.0, %v784
      %v786 = vrcp.pop %v742
      %v787 = vmul.f32 1.0, %v786
      %v788 = vrcp.pop %v743
      %v789 = vmul.f32 1.0, %v788
      %v790 = vrcp.pop %v744
      %v791 = vmul.f32 1.0, %v790
      %v792 = vrcp.pop %v745
      %v793 = vmul.f32 1.0, %v792
      %v794 = vrcp.pop %v746
      %v795 = vmul.f32 1.0, %v794
      %v796 = vrcp.pop %v747
      %v797 = vmul.f32 1.0, %v796
      %v798 = vrcp.pop %v748
      %v799 = vmul.f32 1.0, %v798
      %v800 = vrcp.pop %v749
      %v801 = vmul.f32 1.0, %v800
      %v802 = vrcp.pop %v750
      %v803 = vmul.f32 1.0, %v802
      %v804 = vrcp.pop %v751
      %v805 = vmul.f32 1.0, %v804
      %v806 = vrcp.pop %v752
      %v807 = vmul.f32 1.0, %v806
      %v808 = vrcp.pop %v753
      %v809 = vmul.f32 1.0, %v808
      %v810 = vrcp.pop %v754
      %v811 = vmul.f32 1.0, %v810
      %v812 = vrcp.pop %v755
      %v813 = vmul.f32 1.0, %v812
      %v814 = vrcp.pop %v756
      %v815 = vmul.f32 1.0, %v814
      %v816 = vrcp.pop %v757
      %v817 = vmul.f32 1.0, %v816
      %v818 = vrcp.pop %v758
      %v819 = vmul.f32 1.0, %v818
      %v820 = vrcp.pop %v759
      %v821 = vmul.f32 1.0, %v820
      %v822 = vrcp.pop %v760
      %v823 = vmul.f32 1.0, %v822
      %v824 = vrcp.pop %v761
      %v825 = vmul.f32 1.0, %v824
      %vm826 = vcmask 97280
      %827 = vst.msk [vmem:[%s199] sm:$0xff] %vm826, %v763
      %828 = vst.msk [vmem:[%s199 + $0x8] sm:$0xff] %vm826, %v765
      %829 = vst.msk [vmem:[%s199 + $0x10] sm:$0xff] %vm826, %v767
      %830 = vst.msk [vmem:[%s199 + $0x18] sm:$0xff] %vm826, %v769
      %831 = vst.msk [vmem:[%s199 + $0x20] sm:$0xff] %vm826, %v771
      %832 = vst.msk [vmem:[%s199 + $0x28] sm:$0xff] %vm826, %v773
      %833 = vst.msk [vmem:[%s199 + $0x30] sm:$0xff] %vm826, %v775
      %834 = vst.msk [vmem:[%s199 + $0x38] sm:$0xff] %vm826, %v777
      %835 = vst.msk [vmem:[%s199 + $0x40] sm:$0xff] %vm826, %v779
      %836 = vst.msk [vmem:[%s199 + $0x48] sm:$0xff] %vm826, %v781
      %837 = vst.msk [vmem:[%s199 + $0x50] sm:$0xff] %vm826, %v783
      %838 = vst.msk [vmem:[%s199 + $0x58] sm:$0xff] %vm826, %v785
      %839 = vst.msk [vmem:[%s199 + $0x60] sm:$0xff] %vm826, %v787
      %840 = vst.msk [vmem:[%s199 + $0x68] sm:$0xff] %vm826, %v789
      %841 = vst.msk [vmem:[%s199 + $0x70] sm:$0xff] %vm826, %v791
      %842 = vst.msk [vmem:[%s199 + $0x78] sm:$0xff] %vm826, %v793
      %843 = vst.msk [vmem:[%s199 + $0x80] sm:$0xff] %vm826, %v795
      %844 = vst.msk [vmem:[%s199 + $0x88] sm:$0xff] %vm826, %v797
      %845 = vst.msk [vmem:[%s199 + $0x90] sm:$0xff] %vm826, %v799
      %846 = vst.msk [vmem:[%s199 + $0x98] sm:$0xff] %vm826, %v801
      %847 = vst.msk [vmem:[%s199 + $0xa0] sm:$0xff] %vm826, %v803
      %848 = vst.msk [vmem:[%s199 + $0xa8] sm:$0xff] %vm826, %v805
      %849 = vst.msk [vmem:[%s199 + $0xb0] sm:$0xff] %vm826, %v807
      %850 = vst.msk [vmem:[%s199 + $0xb8] sm:$0xff] %vm826, %v809
      %851 = vst.msk [vmem:[%s199 + $0xc0] sm:$0xff] %vm826, %v811
      %852 = vst.msk [vmem:[%s199 + $0xc8] sm:$0xff] %vm826, %v813
      %853 = vst.msk [vmem:[%s199 + $0xd0] sm:$0xff] %vm826, %v815
      %854 = vst.msk [vmem:[%s199 + $0xd8] sm:$0xff] %vm826, %v817
      %855 = vst.msk [vmem:[%s199 + $0xe0] sm:$0xff] %vm826, %v819
      %856 = vst.msk [vmem:[%s199 + $0xe8] sm:$0xff] %vm826, %v821
      %857 = vst.msk [vmem:[%s199 + $0xf0] sm:$0xff] %vm826, %v823
      %858 = vst.msk [vmem:[%s199 + $0xf8] sm:$0xff] %vm826, %v825
      %s859 = smul.u32 32, %s15
      %p860 = scmp.lt.s32.totalorder %s859, 383
      %s861 = scalar_select %p860, %s859, 383
      %s862 = smul.addr %s861, 8
      %s863 = scalar_lea.vmem %s4, %s862
      // Predicated region
      $region37: #{vision_decoder_forward.9} parent=35 // pred_check
        %p864 = pneg %p122
      $region38: #{vision_decoder_forward.9} parent=35 // pred_check_branch
        %866 = sbr.rel (%p864) target = $region40
      $region39: #{vision_decoder_forward.9} parent=35 // pred_region
        %s867 = smul.u32 32, %s15
      $region40: #{vision_decoder_forward.9} parent=35 // pred_fallthru
        _
    $region36: #{vision_decoder_forward.9} parent=5 // pred_fallthru
      _
    %p868 = scmp.le.s32.totalorder 2, %s10
    // Predicated region
    $region41: #{vision_decoder_forward.9} parent=5 // pred_check
      %p869 = pneg %p868
    $region42: #{vision_decoder_forward.9} parent=5 // pred_check_branch
      %871 = sbr.rel (%p869) target = $region44
    $region43: #{vision_decoder_forward.9} parent=5 // pred_region
      %s872 = ssub.s32 %s10, 2
      // Predicated region
      $region45: #{vision_decoder_forward.9} parent=43 // pred_check
        %p873 = pneg %p128
      $region46: #{vision_decoder_forward.9} parent=43 // pred_check_branch
        %875 = sbr.rel (%p873) target = $region48
      $region47: #{vision_decoder_forward.9} parent=43 // pred_region
        %s876 = smul.u32 32, %s16
        %p877 = scmp.lt.s32.totalorder %s876, 383
        %s878 = scalar_select %p877, %s876, 383
        %s879 = smul.addr %s878, 8
        %s880 = scalar_lea.vmem %s4, %s879
      $region48: #{vision_decoder_forward.9} parent=43 // pred_fallthru
        _
    $region44: #{vision_decoder_forward.9} parent=5 // pred_fallthru
      _
  $region6: #{vision_decoder_forward.9} parent=0 // loop_footer
    %s14 = sadd.s32 1, %s10
  $region7: #{vision_decoder_forward.9} parent=0 // loop_footer_branch
    %9 = sbr.rel target = $region3
  $region8: #{vision_decoder_forward.9} parent=0 // loop_exit
    _

</llo_original>
